<compile_context>
chip_gen: v7x
topology: tpu7x:2x2x1
jax: 0.10.0
libtpu: 0.0.40
codegen_flags: <defaults>
</compile_context>

<pallas_src>
import functools

import jax
import jax.numpy as jnp
from jax.experimental import pallas as pl
from jax.experimental.pallas import tpu as pltpu

F32 = jnp.float32
BF16 = jnp.bfloat16
LANE = 128

# ----------------------------------------------------------------------------
# Model configuration (small, deterministic)
# ----------------------------------------------------------------------------

CLASSES = ("__background__", "car", "person", "bike")
N_CLASSES = len(CLASSES)          # 4
CLASS_AGNOSTIC = False
TRAINING = True

IMG_H = IMG_W = 32
FEAT_STRIDE = 4                   # backbone downsample (stands in for /16)
SPATIAL_SCALE = 1.0 / FEAT_STRIDE
DOUT_BASE = 32                    # stands in for 512
POOLING_SIZE = 4
NUM_ROIS = 8                      # stands in for 256 proposals / image
NUM_ANCHORS = 3
ANCHOR_SIZES = jnp.array([8.0, 16.0, 32.0], F32)
FC_DIM = 64                       # head hidden dim (stands in for 4096)
DG_HIDDEN = 32                    # image DG hidden channels
INS_HIDDEN = 32                   # instance DG hidden units

# packed loss-aux buffer column layout (one lane-dense [3R, 128] input)
AUX_OH = 0                        # one-hot labels                 [N_CLASSES]
AUX_TGT = 8                       # bbox regression targets        [4]
AUX_IW = 16                       # inside weights                 [4]
AUX_OW = 24                       # outside weights                [4]
AUX_OHX = 32                      # one-hot expanded (4 per class) [4*N_CLASSES]

VMEM_LIMIT = 32 * 1024 * 1024     # explicit scoped-VMEM limit (v5e default 16 MiB)


# ----------------------------------------------------------------------------
# Small in-kernel helpers
# ----------------------------------------------------------------------------


def _pack_lanes(vals, width=LANE):
    """Pack a few scalars / (1,1) values into one (1, width) lane-dense store.
    A handful of VPU select/adds; negligible (kept for simplicity)."""
    lane = jax.lax.broadcasted_iota(jnp.int32, (1, width), 1)
    out = jnp.zeros((1, width), F32)
    for k, v in enumerate(vals):
        out = out + jnp.where(lane == k, v, 0.0)
    return out


# ----------------------------------------------------------------------------
# Kernel 1/2: fused (matmul + bias + activation) chain, M tiled 'parallel'
# ----------------------------------------------------------------------------


def _chain_kernel(*refs, acts, n_out):
    o_ref = refs[-1]
    h = refs[0][...]
    for li, act in enumerate(acts):
        w = refs[1 + 2 * li][...]
        b = refs[2 + 2 * li][...]
        h = jnp.dot(h.astype(BF16), w, preferred_element_type=F32) + b
        if act == "relu":
            h = jnp.maximum(h, 0.0)
        elif act == "sigmoid":
            h = jax.nn.sigmoid(h)
    if h.shape[-1] != n_out:           # drop padded lanes before the HBM store
        h = h[:, :n_out]
    o_ref[...] = h


def pallas_chain(x, layers, n_out, m_tiles=2):
    """Fused MLP/conv-as-matmul chain.  `layers` must already be prepared
    (bf16 weights, (1,N) f32 biases, lane padding) by prepare_params().
    M is tiled on a 'parallel' grid axis so both v7x TensorCores get work; the
    extra grid step is ~free on v5e/v6e.
    TODO(synk): at production sizes (FC_DIM=4096, K=25088) add a K grid axis
    ('arbitrary') with an f32 VMEM accumulator and cap tm at 256 for v7x's
    64 MiB VMEM."""
    M, K0 = x.shape
    acts = tuple(a for _, _, a in layers)
    if M % (8 * m_tiles):
        m_tiles = 1
    tm = M // m_tiles

    args = [x]
    in_specs = [pl.BlockSpec((tm, K0), lambda i: (i, 0))]
    for w, b, _ in layers:
        args += [w, b]
        in_specs.append(pl.BlockSpec(w.shape, lambda i: (0, 0)))
        in_specs.append(pl.BlockSpec(b.shape, lambda i: (0, 0)))

    return pl.pallas_call(
        functools.partial(_chain_kernel, acts=acts, n_out=n_out),
        out_shape=jax.ShapeDtypeStruct((M, n_out), F32),
        grid=(m_tiles,),
        in_specs=in_specs,
        out_specs=pl.BlockSpec((tm, n_out), lambda i: (i, 0)),
        compiler_params=pltpu.CompilerParams(
            dimension_semantics=("parallel",),
            vmem_limit_bytes=VMEM_LIMIT),
    )(*args)


# ----------------------------------------------------------------------------
# Kernel 3: fc1 + fc2 + fused cls/bbox head + softmax/CE/smooth-L1, one call
# ----------------------------------------------------------------------------


def _head_loss_kernel(x_ref, w1_ref, b1_ref, w2_ref, b2_ref, hw_ref, hb_ref,
                      aux_ref, feat_ref, prob_ref, bbox_ref, loss_ref):
    x = x_ref[...]
    h1 = jnp.maximum(
        jnp.dot(x.astype(BF16), w1_ref[...], preferred_element_type=F32)
        + b1_ref[...], 0.0)
    h2 = jnp.maximum(
        jnp.dot(h1.astype(BF16), w2_ref[...], preferred_element_type=F32)
        + b2_ref[...], 0.0)
    feat_ref[...] = h2                                   # consumed by DG kernel
    head = (jnp.dot(h2.astype(BF16), hw_ref[...], preferred_element_type=F32)
            + hb_ref[...])                               # [3R, 128] in VMEM only

    aux = aux_ref[...]
    onehot = aux[:, AUX_OH:AUX_OH + N_CLASSES]
    tgt = aux[:, AUX_TGT:AUX_TGT + 4]
    iw = aux[:, AUX_IW:AUX_IW + 4]
    ow = aux[:, AUX_OW:AUX_OW + 4]
    oh_exp = aux[:, AUX_OHX:AUX_OHX + 4 * N_CLASSES]

    # softmax + cross-entropy (sum of the 3 per-domain means)
    s = head[:, 0:N_CLASSES]
    m = jnp.max(s, axis=-1, keepdims=True)
    z = s - m
    e = jnp.exp(z)
    denom = jnp.sum(e, axis=-1, keepdims=True)
    prob_ref[...] = e / denom
    logp = z - jnp.log(denom)
    loss_cls = jnp.sum(onehot * (-logp)) / NUM_ROIS

    # per-class bbox selection (== torch.gather along the class axis) + smooth-L1
    bb = head[:, N_CLASSES:N_CLASSES + 4 * N_CLASSES] * oh_exp
    bsel = bb[:, 0:4]
    for c in range(1, N_CLASSES):
        bsel = bsel + bb[:, 4 * c:4 * c + 4]
    bbox_ref[...] = bsel
    diff = iw * (bsel - tgt)
    ad = jnp.abs(diff)
    small = (ad < 1.0).astype(F32)
    sl1 = ow * (small * 0.5 * diff * diff + (1.0 - small) * (ad - 0.5))
    loss_bbox = jnp.sum(sl1) / NUM_ROIS

    loss_ref[...] = _pack_lanes([loss_cls, loss_bbox])


def head_and_rcnn_loss(prep, pooled_2d, aux):
    M, K0 = pooled_2d.shape

    def spec(shape):
        return pl.BlockSpec(shape, lambda i: (0, 0))

    return pl.pallas_call(
        _head_loss_kernel,
        out_shape=(jax.ShapeDtypeStruct((M, FC_DIM), F32),
                   jax.ShapeDtypeStruct((M, N_CLASSES), F32),
                   jax.ShapeDtypeStruct((M, 4), F32),
                   jax.ShapeDtypeStruct((1, LANE), F32)),
        grid=(1,),
        in_specs=[spec((M, K0)),
                  spec(prep["fc1_w"].shape), spec(prep["fc1_b"].shape),
                  spec(prep["fc2_w"].shape), spec(prep["fc2_b"].shape),
                  spec(prep["head_w"].shape), spec(prep["head_b"].shape),
                  spec((M, LANE))],
        out_specs=(spec((M, FC_DIM)), spec((M, N_CLASSES)), spec((M, 4)),
                   spec((1, LANE))),
        compiler_params=pltpu.CompilerParams(
            dimension_semantics=("arbitrary",),
            vmem_limit_bytes=VMEM_LIMIT),
    )(pooled_2d, prep["fc1_w"], prep["fc1_b"], prep["fc2_w"], prep["fc2_b"],
      prep["head_w"], prep["head_b"], aux)


# ----------------------------------------------------------------------------
# Kernel 4: all six (pairing, domain) image + instance DG heads AND losses
# ----------------------------------------------------------------------------


def _dg_kernel(dom_ref, base_ref, pooled_ref,
               iw1_ref, ib1_ref, iw2_ref, ib2_ref,
               nw1_ref, nb1_ref, nw2_ref, nb2_ref, nw3_ref, nb3_ref,
               out_ref, *, hw_count, r_count):
    del dom_ref                          # consumed only by the index_maps
    half = pl.program_id(1)
    f = (half == 0).astype(F32)          # 1.0 -> label-1 domain, 0.0 -> label-0

    # ---- image-level domain classifier (1x1 conv stack == per-pixel MLP) ----
    x = base_ref[...]                                            # [HW, C]
    h = jnp.maximum(
        jnp.dot(x.astype(BF16), iw1_ref[...], preferred_element_type=F32)
        + ib1_ref[...], 0.0)
    sc = (jnp.dot(h.astype(BF16), iw2_ref[...], preferred_element_type=F32)
          + ib2_ref[...])[:, 0:2]
    m = jnp.max(sc, axis=-1, keepdims=True)
    z = sc - m
    denom = jnp.sum(jnp.exp(z), axis=-1, keepdims=True)
    logp = z - jnp.log(denom)
    # reductions only touch the live domain's rows now (no masked dead half)
    col_logp = jnp.sum(logp, axis=0, keepdims=True)              # (1, 2)
    img_loss = -(f * col_logp[:, 1:2] + (1.0 - f) * col_logp[:, 0:1]) / hw_count
    cprob = jnp.sum(jnp.exp(logp[:, 1:2])) / hw_count            # mean fg prob

    # ---- instance-level domain classifier ----
    # TODO(synk): dropout inside the instance-level domain classifier skipped.
    y = pooled_ref[...]                                          # [R, FC]
    g1 = jnp.maximum(
        jnp.dot(y.astype(BF16), nw1_ref[...], preferred_element_type=F32)
        + nb1_ref[...], 0.0)
    g2 = jnp.maximum(
        jnp.dot(g1.astype(BF16), nw2_ref[...], preferred_element_type=F32)
        + nb2_ref[...], 0.0)
    sig = jax.nn.sigmoid(
        jnp.dot(g2.astype(BF16), nw3_ref[...], preferred_element_type=F32)
        + nb3_ref[...])[:, 0:1]
    sigc = jnp.clip(sig, 1e-7, 1.0 - 1e-7)
    bce = f * (-jnp.log(sigc)) + (1.0 - f) * (-jnp.log(1.0 - sigc))
    ins_loss = jnp.sum(bce) / r_count
    cst_loss = jnp.sum((sig - cprob) ** 2)       # MSELoss(size_average=False)

    out_ref[...] = _pack_lanes([img_loss, ins_loss, cst_loss])


def dg_losses(prep, base_flat, pooled3):
    """base_flat [3, HW, C], pooled3 [3, R, FC].  One pallas_call over a
    (pairing, half) grid; a scalar-prefetched domain-id table drives the
    input index_maps so the domain features are read straight from the
    producers' buffers (no stack/concat duplication)."""
    _, HW, C = base_flat.shape
    R, FC = pooled3.shape[1], pooled3.shape[2]

    def x_map(g, h, dom):
        return (dom[g, h], 0, 0)

    def w_map(g, h, dom):
        return (g, 0, 0)

    def o_map(g, h, dom):
        return (g * 2 + h, 0, 0)

    def wspec(arr):
        return pl.BlockSpec((None,) + arr.shape[1:], w_map)

    gs = pltpu.PrefetchScalarGridSpec(
        num_scalar_prefetch=1,
        grid=(3, 2),
        in_specs=[
            pl.BlockSpec((None, HW, C), x_map),
            pl.BlockSpec((None, R, FC), x_map),
            wspec(prep["img_w1"]), wspec(prep["img_b1"]),
            wspec(prep["img_w2"]), wspec(prep["img_b2"]),
            wspec(prep["ins_w1"]), wspec(prep["ins_b1"]),
            wspec(prep["ins_w2"]), wspec(prep["ins_b2"]),
            wspec(prep["ins_w3"]), wspec(prep["ins_b3"]),
        ],
        out_specs=pl.BlockSpec((None, 1, LANE), o_map),
    )
    out = pl.pallas_call(
        functools.partial(_dg_kernel, hw_count=HW, r_count=R),
        grid_spec=gs,
        out_shape=jax.ShapeDtypeStruct((6, 1, LANE), F32),
        compiler_params=pltpu.CompilerParams(
            dimension_semantics=("arbitrary", "arbitrary"),
            vmem_limit_bytes=VMEM_LIMIT),
    )(prep["dom_tbl"], base_flat, pooled3,
      prep["img_w1"], prep["img_b1"], prep["img_w2"], prep["img_b2"],
      prep["ins_w1"], prep["ins_b1"], prep["ins_w2"], prep["ins_b2"],
      prep["ins_w3"], prep["ins_b3"])
    return out.reshape(3, 2, LANE)[:, :, :3]     # [pairing, half, (img,ins,cst)]


# ----------------------------------------------------------------------------
# Conv = im2col (glue) + fused Pallas chain
# ----------------------------------------------------------------------------


def _im2col(x_nhwc, kh, kw, stride, pad):
    # TODO(synk): at production channel counts this should become an in-kernel
    # tap-reduction conv (9 shifted bf16 matmuls into an f32 VMEM accumulator);
    # at toy sizes the host-side im2col is negligible.
    N, H, W, _ = x_nhwc.shape
    xp = jnp.pad(x_nhwc, ((0, 0), (pad, pad), (pad, pad), (0, 0)))
    Ho = (H + 2 * pad - kh) // stride + 1
    Wo = (W + 2 * pad - kw) // stride + 1
    cols = []
    for i in range(kh):
        for j in range(kw):
            stop_i = i + stride * (Ho - 1) + 1
            stop_j = j + stride * (Wo - 1) + 1
            cols.append(xp[:, i:stop_i:stride, j:stop_j:stride, :])
    return jnp.concatenate(cols, axis=-1), Ho, Wo


# ----------------------------------------------------------------------------
# Parameters
# ----------------------------------------------------------------------------


def init_params(key):
    def nrm(k, shape, std=0.01):
        return std * jax.random.normal(k, shape, F32)

    ks = iter(jax.random.split(key, 64))
    p = {}
    # backbone: 3x3 conv, stride FEAT_STRIDE (RCNN_base)
    p["base_w"] = nrm(next(ks), (DOUT_BASE, 3, 3, 3), 0.05)
    p["base_b"] = jnp.zeros((DOUT_BASE,), F32)
    # RPN
    p["rpn_conv_w"] = nrm(next(ks), (DOUT_BASE, DOUT_BASE, 3, 3))
    p["rpn_conv_b"] = jnp.zeros((DOUT_BASE,), F32)
    p["rpn_cls_w"] = nrm(next(ks), (2 * NUM_ANCHORS, DOUT_BASE, 1, 1))
    p["rpn_cls_b"] = jnp.zeros((2 * NUM_ANCHORS,), F32)
    # declared for module fidelity; its output is dead in this forward.
    p["rpn_bbox_w"] = nrm(next(ks), (4 * NUM_ANCHORS, DOUT_BASE, 1, 1))
    p["rpn_bbox_b"] = jnp.zeros((4 * NUM_ANCHORS,), F32)
    # head-to-tail (two fc layers)
    p["fc1_w"] = nrm(next(ks), (DOUT_BASE * POOLING_SIZE * POOLING_SIZE, FC_DIM), 0.02)
    p["fc1_b"] = jnp.zeros((FC_DIM,), F32)
    p["fc2_w"] = nrm(next(ks), (FC_DIM, FC_DIM), 0.02)
    p["fc2_b"] = jnp.zeros((FC_DIM,), F32)
    # RCNN heads
    p["cls_w"] = nrm(next(ks), (FC_DIM, N_CLASSES), 0.01)
    p["cls_b"] = jnp.zeros((N_CLASSES,), F32)
    nb = 4 if CLASS_AGNOSTIC else 4 * N_CLASSES
    p["bbox_w"] = nrm(next(ks), (FC_DIM, nb), 0.001)
    p["bbox_b"] = jnp.zeros((nb,), F32)
    # three image-level domain classifiers (1x1 conv stacks)
    for name in ("d01", "dl2", "d02"):
        p[f"img_{name}_w1"] = nrm(next(ks), (DG_HIDDEN, DOUT_BASE, 1, 1))
        p[f"img_{name}_b1"] = jnp.zeros((DG_HIDDEN,), F32)
        p[f"img_{name}_w2"] = nrm(next(ks), (2, DG_HIDDEN, 1, 1))
        p[f"img_{name}_b2"] = jnp.zeros((2,), F32)
    # three instance-level domain classifiers (fc stacks)
    for name in ("d01", "d12", "d02"):
        p[f"ins_{name}_w1"] = nrm(next(ks), (FC_DIM, INS_HIDDEN), 0.02)
        p[f"ins_{name}_b1"] = jnp.zeros((INS_HIDDEN,), F32)
        p[f"ins_{name}_w2"] = nrm(next(ks), (INS_HIDDEN, INS_HIDDEN), 0.02)
        p[f"ins_{name}_b2"] = jnp.zeros((INS_HIDDEN,), F32)
        p[f"ins_{name}_w3"] = nrm(next(ks), (INS_HIDDEN, 1), 0.02)
        p[f"ins_{name}_b3"] = jnp.zeros((1,), F32)
    return p


def prepare_params(p):
    """One-time weight preparation (outside the per-step path): bf16 casts,
    conv->matmul reshapes, (w_fg - w_bg) RPN fold, cls/bbox concat, lane
    padding, per-pairing stacking of the DG classifiers."""
    prep = {}
    prep["base_w"] = jnp.transpose(p["base_w"], (2, 3, 1, 0)).reshape(
        3 * 3 * 3, DOUT_BASE).astype(BF16)
    prep["base_b"] = p["base_b"].reshape(1, -1)

    prep["rpn_conv_w"] = jnp.transpose(p["rpn_conv_w"], (2, 3, 1, 0)).reshape(
        9 * DOUT_BASE, DOUT_BASE).astype(BF16)
    prep["rpn_conv_b"] = p["rpn_conv_b"].reshape(1, -1)

    # PyTorch reshapes [1,2A,H,W] -> [1,2,A*H,W] before softmax(dim=1), pairing
    # bg channel a with fg channel A+a; the 2-way-softmax fg probability equals
    # sigmoid(fg_logit - bg_logit), so the cls 1x1 conv + softmax fold into one
    # sigmoid matmul on (w_fg - w_bg).
    w_cls = p["rpn_cls_w"][:, :, 0, 0].T                         # [C, 2A]
    wd = w_cls[:, NUM_ANCHORS:] - w_cls[:, :NUM_ANCHORS]         # [C, A]
    bd = p["rpn_cls_b"][NUM_ANCHORS:] - p["rpn_cls_b"][:NUM_ANCHORS]
    prep["rpn_cls_w"] = jnp.pad(wd, ((0, 0), (0, LANE - NUM_ANCHORS))).astype(BF16)
    prep["rpn_cls_b"] = jnp.pad(bd, ((0, LANE - NUM_ANCHORS),)).reshape(1, -1)

    prep["fc1_w"] = p["fc1_w"].astype(BF16)
    prep["fc1_b"] = p["fc1_b"].reshape(1, -1)
    prep["fc2_w"] = p["fc2_w"].astype(BF16)
    prep["fc2_b"] = p["fc2_b"].reshape(1, -1)

    head_w = jnp.concatenate([p["cls_w"], p["bbox_w"]], axis=1)  # [FC, 20]
    head_b = jnp.concatenate([p["cls_b"], p["bbox_b"]])
    nh = head_w.shape[1]
    prep["head_w"] = jnp.pad(head_w, ((0, 0), (0, LANE - nh))).astype(BF16)
    prep["head_b"] = jnp.pad(head_b, ((0, LANE - nh),)).reshape(1, -1)

    img_names = ("d01", "dl2", "d02")
    ins_names = ("d01", "d12", "d02")
    prep["img_w1"] = jnp.stack(
        [p[f"img_{n}_w1"][:, :, 0, 0].T for n in img_names]).astype(BF16)
    prep["img_b1"] = jnp.stack(
        [p[f"img_{n}_b1"] for n in img_names]).reshape(3, 1, -1)
    iw2 = jnp.stack([p[f"img_{n}_w2"][:, :, 0, 0].T for n in img_names])  # [3,H,2]
    ib2 = jnp.stack([p[f"img_{n}_b2"] for n in img_names])                # [3,2]
    prep["img_w2"] = jnp.pad(iw2, ((0, 0), (0, 0), (0, LANE - 2))).astype(BF16)
    prep["img_b2"] = jnp.pad(ib2, ((0, 0), (0, LANE - 2))).reshape(3, 1, LANE)

    prep["ins_w1"] = jnp.stack([p[f"ins_{n}_w1"] for n in ins_names]).astype(BF16)
    prep["ins_b1"] = jnp.stack([p[f"ins_{n}_b1"] for n in ins_names]).reshape(3, 1, -1)
    prep["ins_w2"] = jnp.stack([p[f"ins_{n}_w2"] for n in ins_names]).astype(BF16)
    prep["ins_b2"] = jnp.stack([p[f"ins_{n}_b2"] for n in ins_names]).reshape(3, 1, -1)
    nw3 = jnp.stack([p[f"ins_{n}_w3"] for n in ins_names])                # [3,H,1]
    nb3 = jnp.stack([p[f"ins_{n}_b3"] for n in ins_names])                # [3,1]
    prep["ins_w3"] = jnp.pad(nw3, ((0, 0), (0, 0), (0, LANE - 1))).astype(BF16)
    prep["ins_b3"] = jnp.pad(nb3, ((0, 0), (0, LANE - 1))).reshape(3, 1, LANE)

    # pairing table: row g -> (label-1 domain, label-0 domain)
    #   0: img 'd01' / ins 'd01' on (d0, d1)
    #   1: img 'dl2' / ins 'd12' on (d2, d1)
    #   2: img 'd02' / ins 'd02' on (d0, d2)
    prep["dom_tbl"] = jnp.array([[0, 1], [2, 1], [0, 2]], jnp.int32)
    return prep


# ----------------------------------------------------------------------------
# Model glue (RPN proposals, proposal targets, RoIAlign)
# ----------------------------------------------------------------------------


def rpn_proposals(fg, Hf, Wf):
    """fg [3, Hf*Wf*A] fg probabilities -> rois [3, R, 5].
    TODO(synk): NMS, bbox-delta decoding and anchor-target RPN losses omitted;
    proposals = top-k fg anchors, RPN losses returned as 0."""
    _, idx = jax.lax.top_k(fg, NUM_ROIS)
    cell = idx // NUM_ANCHORS
    a = idx % NUM_ANCHORS
    yc = (cell // Wf).astype(F32)
    xc = (cell % Wf).astype(F32)
    ctr_x = (xc + 0.5) * FEAT_STRIDE
    ctr_y = (yc + 0.5) * FEAT_STRIDE
    sz = ANCHOR_SIZES[a]
    x1 = jnp.clip(ctr_x - sz / 2, 0.0, IMG_W - 1.0)
    y1 = jnp.clip(ctr_y - sz / 2, 0.0, IMG_H - 1.0)
    x2 = jnp.clip(ctr_x + sz / 2, 0.0, IMG_W - 1.0)
    y2 = jnp.clip(ctr_y + sz / 2, 0.0, IMG_H - 1.0)
    return jnp.stack([jnp.zeros_like(x1), x1, y1, x2, y2], axis=-1)


def proposal_target(rois):
    """Deterministic stand-in for _ProposalTargetLayer (same labels per domain).
    Also builds the packed lane-dense loss-aux buffer consumed by kernel 3.
    TODO(synk): the real layer does IoU matching + random fg/bg sampling."""
    R = rois.shape[1]
    labels = (jnp.arange(R) % N_CLASSES).astype(jnp.int32)
    targets = 0.1 * jnp.sin(jnp.arange(R * 4, dtype=F32)).reshape(R, 4)
    iw = (labels > 0).astype(F32)[:, None] * jnp.ones((1, 4), F32)
    labels_all = jnp.tile(labels, 3)                             # [3R]
    targets_all = jnp.tile(targets, (3, 1))
    iw_all = jnp.tile(iw, (3, 1))
    onehot = jax.nn.one_hot(labels_all, N_CLASSES, dtype=F32)
    onehot_exp = jnp.repeat(onehot, 4, axis=1)                   # [3R, 4C]
    aux = jnp.zeros((3 * R, LANE), F32)
    aux = aux.at[:, AUX_OH:AUX_OH + N_CLASSES].set(onehot)
    aux = aux.at[:, AUX_TGT:AUX_TGT + 4].set(targets_all)
    aux = aux.at[:, AUX_IW:AUX_IW + 4].set(iw_all)
    aux = aux.at[:, AUX_OW:AUX_OW + 4].set(iw_all)
    aux = aux.at[:, AUX_OHX:AUX_OHX + 4 * N_CLASSES].set(onehot_exp)
    return rois, labels_all, aux


def roi_align_batched(base_feat, rois):
    """RoIAlignAvg (1 bilinear sample per bin), batched over the 3 domains.
    TODO(synk): bilinear gather left in plain JAX (data-dependent gather)."""
    _, H, W, _ = base_feat.shape
    P = POOLING_SIZE

    def single(fm, r):
        x1 = r[:, 1] * SPATIAL_SCALE
        y1 = r[:, 2] * SPATIAL_SCALE
        x2 = r[:, 3] * SPATIAL_SCALE
        y2 = r[:, 4] * SPATIAL_SCALE
        bw = jnp.maximum(x2 - x1, 1.0) / P
        bh = jnp.maximum(y2 - y1, 1.0) / P
        ii = jnp.arange(P, dtype=F32) + 0.5
        cy = jnp.clip(y1[:, None] + bh[:, None] * ii[None, :], 0.0, H - 1.0)
        cx = jnp.clip(x1[:, None] + bw[:, None] * ii[None, :], 0.0, W - 1.0)
        y0 = jnp.floor(cy).astype(jnp.int32)
        x0 = jnp.floor(cx).astype(jnp.int32)
        y1i = jnp.minimum(y0 + 1, H - 1)
        x1i = jnp.minimum(x0 + 1, W - 1)
        wy = (cy - y0.astype(F32))[:, :, None, None]
        wx = (cx - x0.astype(F32))[:, None, :, None]

        def gather(yi, xi):
            return fm[yi[:, :, None], xi[:, None, :], :]

        v00 = gather(y0, x0)
        v01 = gather(y0, x1i)
        v10 = gather(y1i, x0)
        v11 = gather(y1i, x1i)
        return ((1 - wy) * (1 - wx) * v00 + (1 - wy) * wx * v01 +
                wy * (1 - wx) * v10 + wy * wx * v11)             # [R,P,P,C]

    return jax.vmap(single)(base_feat, rois)                     # [3,R,P,P,C]


# ----------------------------------------------------------------------------
# Full forward
# ----------------------------------------------------------------------------


def faster_rcnn_forward(prep, im_data, im_info, gt_boxes, num_boxes):
    del im_info, gt_boxes, num_boxes   # consumed only by the omitted RPN/target layers
    im_nhwc = jnp.transpose(im_data, (0, 2, 3, 1))               # [3,H,W,3]

    # -- Kernel 1: batched backbone conv (im2col glue + fused matmul/relu) --
    cols0, Hf, Wf = _im2col(im_nhwc, 3, 3, FEAT_STRIDE, 1)
    base2d = pallas_chain(cols0.reshape(3 * Hf * Wf, -1),
                          [(prep["base_w"], prep["base_b"], "relu")],
                          n_out=DOUT_BASE)
    base_feat = base2d.reshape(3, Hf, Wf, DOUT_BASE)

    # -- Kernel 2: RPN 3x3 conv + (fg-bg) sigmoid cls head, fused --
    cols1, _, _ = _im2col(base_feat, 3, 3, 1, 1)
    fg = pallas_chain(cols1.reshape(3 * Hf * Wf, -1),
                      [(prep["rpn_conv_w"], prep["rpn_conv_b"], "relu"),
                       (prep["rpn_cls_w"], prep["rpn_cls_b"], "sigmoid")],
                      n_out=NUM_ANCHORS)
    rois = rpn_proposals(fg.reshape(3, Hf * Wf * NUM_ANCHORS), Hf, Wf)
    rpn_loss_cls = jnp.float32(0.0)
    rpn_loss_bbox = jnp.float32(0.0)

    rois, labels_all, aux = proposal_target(rois)

    # -- ROI pooling (plain JAX gather) --
    pooled = roi_align_batched(base_feat, rois)                  # [3,R,P,P,C]
    pooled_2d = pooled.reshape(3 * NUM_ROIS, -1)

    # -- Kernel 3: fc1 + fc2 + cls/bbox head + softmax/CE/smooth-L1, fused --
    pooled_feat, cls_prob_all, bbox_sel, loss = head_and_rcnn_loss(
        prep, pooled_2d, aux)
    rcnn_loss_cls = loss[0, 0]
    rcnn_loss_bbox = loss[0, 1]

    # -- Kernel 4: all six (pairing, domain) image + instance DG losses --
    base_flat = base2d.reshape(3, Hf * Wf, DOUT_BASE)
    pooled3 = pooled_feat.reshape(3, NUM_ROIS, FC_DIM)
    dg = dg_losses(prep, base_flat, pooled3)                     # [3,2,3]

    # -- outputs (reference ordering) --
    R = NUM_ROIS
    rois_d0 = rois[0:1]                                          # [1,R,5]
    cls_prob_d0 = cls_prob_all[:R].reshape(1, R, -1)
    bbox_pred_d0 = bbox_sel[:R].reshape(1, R, -1)
    rois_label_d0 = labels_all[:R]

    return (rois_d0, cls_prob_d0, bbox_pred_d0,
            rpn_loss_cls, rpn_loss_bbox, rcnn_loss_cls, rcnn_loss_bbox,
            rois_label_d0,
            dg[0, 0, 0], dg[0, 0, 1], dg[0, 0, 2],   # d0_d01 img / ins / cst
            dg[0, 1, 0], dg[0, 1, 1], dg[0, 1, 2],   # d1_d01
            dg[2, 0, 0], dg[2, 0, 1], dg[2, 0, 2],   # d0_d02
            dg[2, 1, 0], dg[2, 1, 1], dg[2, 1, 2],   # d2_d02
            dg[1, 1, 0], dg[1, 1, 1], dg[1, 1, 2],   # d1_d12
            dg[1, 0, 0], dg[1, 0, 1], dg[1, 0, 2])   # d2_d12


# ----------------------------------------------------------------------------
# Main
# ----------------------------------------------------------------------------

if __name__ == "__main__":
    key = jax.random.PRNGKey(0)
    kp, kd, kg = jax.random.split(key, 3)
    params = init_params(kp)
    prep = prepare_params(params)       # one-time weight prep (not per-step)

    # Inputs matching the module's forward: 3 domains stacked on axis 0.
    im_data = jax.random.normal(kd, (3, 3, IMG_H, IMG_W), F32)          # NCHW
    im_info = jnp.tile(jnp.array([[IMG_H, IMG_W, 1.0]], F32), (3, 1))   # [3,3]
    gt_boxes = jnp.abs(jax.random.normal(kg, (3, 5, 5), F32)) * 8.0     # [3,5,5]
    num_boxes = jnp.array([2, 2, 2], jnp.int32)                         # [3]

    forward = jax.jit(faster_rcnn_forward)
    outputs = forward(prep, im_data, im_info, gt_boxes, num_boxes)
    jax.block_until_ready(outputs)

    rois_d0, cls_prob_d0, bbox_pred_d0 = outputs[0], outputs[1], outputs[2]
    assert rois_d0.shape == (1, NUM_ROIS, 5)
    assert cls_prob_d0.shape == (1, NUM_ROIS, N_CLASSES)
    assert bbox_pred_d0.shape == (1, NUM_ROIS, 4)
    assert len(outputs) == 26
    assert all(bool(jnp.all(jnp.isfinite(jnp.asarray(o, F32)))) for o in outputs)
    print("KERNEL_OK")
</pallas_src>

<mosaic_0001>
module attributes {stable_mosaic.version = 11 : i64} {
  func.func @_chain_kernel(%arg0: i32, %arg1: memref<96x27xf32, #tpu.memory_space<vmem>>, %arg2: memref<27x32xbf16, #tpu.memory_space<vmem>>, %arg3: memref<1x32xf32, #tpu.memory_space<vmem>>, %arg4: memref<96x32xf32, #tpu.memory_space<vmem>>) attributes {dimension_semantics = [#tpu.dimension_semantics<parallel>], iteration_bounds = array<i64: 2>, scalar_prefetch = 0 : i64, scratch_operands = 0 : i64, tpu.core_type = #tpu.core_type<tc>, window_params = [{transform_indices = @transform_0, window_bounds = array<i64: 96, 27>}, {pipeline_mode = #tpu.pipeline_mode<synchronous>, transform_indices = @transform_1, window_bounds = array<i64: 27, 32>}, {pipeline_mode = #tpu.pipeline_mode<synchronous>, transform_indices = @transform_2, window_bounds = array<i64: 1, 32>}, {transform_indices = @transform_3, window_bounds = array<i64: 96, 32>}]} {
    %c0 = arith.constant 0 : index
    %c0_0 = arith.constant 0 : index
    %0 = vector.load %arg1[%c0, %c0_0] : memref<96x27xf32, #tpu.memory_space<vmem>>, vector<96x27xf32>
    %c0_1 = arith.constant 0 : index
    %c0_2 = arith.constant 0 : index
    %1 = vector.load %arg2[%c0_1, %c0_2] : memref<27x32xbf16, #tpu.memory_space<vmem>>, vector<27x32xbf16>
    %c0_3 = arith.constant 0 : index
    %c0_4 = arith.constant 0 : index
    %2 = vector.load %arg3[%c0_3, %c0_4] : memref<1x32xf32, #tpu.memory_space<vmem>>, vector<1x32xf32>
    %3 = arith.truncf %0 : vector<96x27xf32> to vector<96x27xbf16>
    %cst = arith.constant dense<0.000000e+00> : vector<96x32xf32>
    %4 = tpu.matmul %3, %1, %cst {dimension_numbers = #tpu.dot_dimension_numbers<[1], [0], [0], [1], [0, 0, 1, 1], [], []>} : vector<96x27xbf16>, vector<27x32xbf16>, vector<96x32xf32> -> vector<96x32xf32>
    %5 = vector.broadcast %2 : vector<1x32xf32> to vector<96x32xf32>
    %6 = arith.addf %4, %5 : vector<96x32xf32>
    %cst_5 = arith.constant 0.000000e+00 : f32
    %7 = vector.broadcast %cst_5 : f32 to vector<96x32xf32>
    %8 = arith.maximumf %6, %7 : vector<96x32xf32>
    %c0_6 = arith.constant 0 : index
    %c0_7 = arith.constant 0 : index
    %9 = vector.load %arg4[%c0_6, %c0_7] : memref<96x32xf32, #tpu.memory_space<vmem>>, vector<96x32xf32>
    tpu.vector_store %arg4[%c0_6, %c0_7], %8 {strides = array<i32>} : memref<96x32xf32, #tpu.memory_space<vmem>>, vector<96x32xf32>,
    return
  }
  func.func @transform_0(%arg0: i32) -> (i32, i32) {
    %c0_i32 = arith.constant 0 : i32
    %c0_i32_0 = arith.constant 0 : i32
    return %arg0, %c0_i32 : i32, i32
  }
  func.func @transform_1(%arg0: i32) -> (i32, i32) {
    %c0_i32 = arith.constant 0 : i32
    %c0_i32_0 = arith.constant 0 : i32
    %c0_i32_1 = arith.constant 0 : i32
    return %c0_i32, %c0_i32_0 : i32, i32
  }
  func.func @transform_2(%arg0: i32) -> (i32, i32) {
    %c0_i32 = arith.constant 0 : i32
    %c0_i32_0 = arith.constant 0 : i32
    %c0_i32_1 = arith.constant 0 : i32
    return %c0_i32, %c0_i32_0 : i32, i32
  }
  func.func @transform_3(%arg0: i32) -> (i32, i32) {
    %c0_i32 = arith.constant 0 : i32
    %c0_i32_0 = arith.constant 0 : i32
    return %arg0, %c0_i32 : i32, i32
  }
}

module attributes {stable_mosaic.version = 11 : i64} {
  func.func @_chain_kernel(%arg0: i32, %arg1: memref<96x288xf32, #tpu.memory_space<vmem>>, %arg2: memref<288x32xbf16, #tpu.memory_space<vmem>>, %arg3: memref<1x32xf32, #tpu.memory_space<vmem>>, %arg4: memref<32x128xbf16, #tpu.memory_space<vmem>>, %arg5: memref<1x128xf32, #tpu.memory_space<vmem>>, %arg6: memref<96x3xf32, #tpu.memory_space<vmem>>) attributes {dimension_semantics = [#tpu.dimension_semantics<parallel>], iteration_bounds = array<i64: 2>, scalar_prefetch = 0 : i64, scratch_operands = 0 : i64, tpu.core_type = #tpu.core_type<tc>, window_params = [{transform_indices = @transform_0, window_bounds = array<i64: 96, 288>}, {pipeline_mode = #tpu.pipeline_mode<synchronous>, transform_indices = @transform_1, window_bounds = array<i64: 288, 32>}, {pipeline_mode = #tpu.pipeline_mode<synchronous>, transform_indices = @transform_2, window_bounds = array<i64: 1, 32>}, {pipeline_mode = #tpu.pipeline_mode<synchronous>, transform_indices = @transform_3, window_bounds = array<i64: 32, 128>}, {pipeline_mode = #tpu.pipeline_mode<synchronous>, transform_indices = @transform_4, window_bounds = array<i64: 1, 128>}, {transform_indices = @transform_5, window_bounds = array<i64: 96, 3>}]} {
    %c0 = arith.constant 0 : index
    %c0_0 = arith.constant 0 : index
    %0 = vector.load %arg1[%c0, %c0_0] : memref<96x288xf32, #tpu.memory_space<vmem>>, vector<96x288xf32>
    %c0_1 = arith.constant 0 : index
    %c0_2 = arith.constant 0 : index
    %1 = vector.load %arg2[%c0_1, %c0_2] : memref<288x32xbf16, #tpu.memory_space<vmem>>, vector<288x32xbf16>
    %c0_3 = arith.constant 0 : index
    %c0_4 = arith.constant 0 : index
    %2 = vector.load %arg3[%c0_3, %c0_4] : memref<1x32xf32, #tpu.memory_space<vmem>>, vector<1x32xf32>
    %3 = arith.truncf %0 : vector<96x288xf32> to vector<96x288xbf16>
    %cst = arith.constant dense<0.000000e+00> : vector<96x32xf32>
    %4 = tpu.matmul %3, %1, %cst {dimension_numbers = #tpu.dot_dimension_numbers<[1], [0], [0], [1], [0, 0, 1, 1], [], []>} : vector<96x288xbf16>, vector<288x32xbf16>, vector<96x32xf32> -> vector<96x32xf32>
    %5 = vector.broadcast %2 : vector<1x32xf32> to vector<96x32xf32>
    %6 = arith.addf %4, %5 : vector<96x32xf32>
    %cst_5 = arith.constant 0.000000e+00 : f32
    %7 = vector.broadcast %cst_5 : f32 to vector<96x32xf32>
    %8 = arith.maximumf %6, %7 : vector<96x32xf32>
    %c0_6 = arith.constant 0 : index
    %c0_7 = arith.constant 0 : index
    %9 = vector.load %arg4[%c0_6, %c0_7] : memref<32x128xbf16, #tpu.memory_space<vmem>>, vector<32x128xbf16>
    %c0_8 = arith.constant 0 : index
    %c0_9 = arith.constant 0 : index
    %10 = vector.load %arg5[%c0_8, %c0_9] : memref<1x128xf32, #tpu.memory_space<vmem>>, vector<1x128xf32>
    %11 = arith.truncf %8 : vector<96x32xf32> to vector<96x32xbf16>
    %cst_10 = arith.constant dense<0.000000e+00> : vector<96x128xf32>
    %12 = tpu.matmul %11, %9, %cst_10 {dimension_numbers = #tpu.dot_dimension_numbers<[1], [0], [0], [1], [0, 0, 1, 1], [], []>} : vector<96x32xbf16>, vector<32x128xbf16>, vector<96x128xf32> -> vector<96x128xf32>
    %13 = vector.broadcast %10 : vector<1x128xf32> to vector<96x128xf32>
    %14 = arith.addf %12, %13 : vector<96x128xf32>
    %15 = arith.negf %14 : vector<96x128xf32>
    %16 = math.exp %15 : vector<96x128xf32>
    %cst_11 = arith.constant 1.000000e+00 : f32
    %17 = vector.broadcast %cst_11 : f32 to vector<96x128xf32>
    %18 = arith.addf %17, %16 : vector<96x128xf32>
    %19 = arith.divf %17, %18 : vector<96x128xf32>
    %20 = vector.extract_strided_slice %19 {offsets = [0, 0], sizes = [96, 3], strides = [1, 1]} : vector<96x128xf32> to vector<96x3xf32>
    %c0_12 = arith.constant 0 : index
    %c0_13 = arith.constant 0 : index
    %21 = vector.load %arg6[%c0_12, %c0_13] : memref<96x3xf32, #tpu.memory_space<vmem>>, vector<96x3xf32>
    tpu.vector_store %arg6[%c0_12, %c0_13], %20 {strides = array<i32>} : memref<96x3xf32, #tpu.memory_space<vmem>>, vector<96x3xf32>,
    return
  }
  func.func @transform_0(%arg0: i32) -> (i32, i32) {
    %c0_i32 = arith.constant 0 : i32
    %c0_i32_0 = arith.constant 0 : i32
    return %arg0, %c0_i32 : i32, i32
  }
  func.func @transform_1(%arg0: i32) -> (i32, i32) {
    %c0_i32 = arith.constant 0 : i32
    %c0_i32_0 = arith.constant 0 : i32
    %c0_i32_1 = arith.constant 0 : i32
    return %c0_i32, %c0_i32_0 : i32, i32
  }
  func.func @transform_2(%arg0: i32) -> (i32, i32) {
    %c0_i32 = arith.constant 0 : i32
    %c0_i32_0 = arith.constant 0 : i32
    %c0_i32_1 = arith.constant 0 : i32
    return %c0_i32, %c0_i32_0 : i32, i32
  }
  func.func @transform_3(%arg0: i32) -> (i32, i32) {
    %c0_i32 = arith.constant 0 : i32
    %c0_i32_0 = arith.constant 0 : i32
    %c0_i32_1 = arith.constant 0 : i32
    return %c0_i32, %c0_i32_0 : i32, i32
  }
  func.func @transform_4(%arg0: i32) -> (i32, i32) {
    %c0_i32 = arith.constant 0 : i32
    %c0_i32_0 = arith.constant 0 : i32
    %c0_i32_1 = arith.constant 0 : i32
    return %c0_i32, %c0_i32_0 : i32, i32
  }
  func.func @transform_5(%arg0: i32) -> (i32, i32) {
    %c0_i32 = arith.constant 0 : i32
    %c0_i32_0 = arith.constant 0 : i32
    return %arg0, %c0_i32 : i32, i32
  }
}

module attributes {stable_mosaic.version = 11 : i64} {
  func.func @_head_loss_kernel(%arg0: i32, %arg1: memref<24x512xf32, #tpu.memory_space<vmem>>, %arg2: memref<512x64xbf16, #tpu.memory_space<vmem>>, %arg3: memref<1x64xf32, #tpu.memory_space<vmem>>, %arg4: memref<64x64xbf16, #tpu.memory_space<vmem>>, %arg5: memref<1x64xf32, #tpu.memory_space<vmem>>, %arg6: memref<64x128xbf16, #tpu.memory_space<vmem>>, %arg7: memref<1x128xf32, #tpu.memory_space<vmem>>, %arg8: memref<24x128xf32, #tpu.memory_space<vmem>>, %arg9: memref<24x64xf32, #tpu.memory_space<vmem>>, %arg10: memref<24x4xf32, #tpu.memory_space<vmem>>, %arg11: memref<24x4xf32, #tpu.memory_space<vmem>>, %arg12: memref<1x128xf32, #tpu.memory_space<vmem>>) attributes {dimension_semantics = [#tpu.dimension_semantics<arbitrary>], iteration_bounds = array<i64: 1>, scalar_prefetch = 0 : i64, scratch_operands = 0 : i64, tpu.core_type = #tpu.core_type<tc>, window_params = [{pipeline_mode = #tpu.pipeline_mode<synchronous>, transform_indices = @transform_0, window_bounds = array<i64: 24, 512>}, {pipeline_mode = #tpu.pipeline_mode<synchronous>, transform_indices = @transform_1, window_bounds = array<i64: 512, 64>}, {pipeline_mode = #tpu.pipeline_mode<synchronous>, transform_indices = @transform_2, window_bounds = array<i64: 1, 64>}, {pipeline_mode = #tpu.pipeline_mode<synchronous>, transform_indices = @transform_3, window_bounds = array<i64: 64, 64>}, {pipeline_mode = #tpu.pipeline_mode<synchronous>, transform_indices = @transform_4, window_bounds = array<i64: 1, 64>}, {pipeline_mode = #tpu.pipeline_mode<synchronous>, transform_indices = @transform_5, window_bounds = array<i64: 64, 128>}, {pipeline_mode = #tpu.pipeline_mode<synchronous>, transform_indices = @transform_6, window_bounds = array<i64: 1, 128>}, {pipeline_mode = #tpu.pipeline_mode<synchronous>, transform_indices = @transform_7, window_bounds = array<i64: 24, 128>}, {pipeline_mode = #tpu.pipeline_mode<synchronous>, transform_indices = @transform_8, window_bounds = array<i64: 24, 64>}, {pipeline_mode = #tpu.pipeline_mode<synchronous>, transform_indices = @transform_9, window_bounds = array<i64: 24, 4>}, {pipeline_mode = #tpu.pipeline_mode<synchronous>, transform_indices = @transform_10, window_bounds = array<i64: 24, 4>}, {pipeline_mode = #tpu.pipeline_mode<synchronous>, transform_indices = @transform_11, window_bounds = array<i64: 1, 128>}]} {
    %c0 = arith.constant 0 : index
    %c0_0 = arith.constant 0 : index
    %0 = vector.load %arg1[%c0, %c0_0] : memref<24x512xf32, #tpu.memory_space<vmem>>, vector<24x512xf32>
    %1 = arith.truncf %0 : vector<24x512xf32> to vector<24x512xbf16>
    %c0_1 = arith.constant 0 : index
    %c0_2 = arith.constant 0 : index
    %2 = vector.load %arg2[%c0_1, %c0_2] : memref<512x64xbf16, #tpu.memory_space<vmem>>, vector<512x64xbf16>
    %cst = arith.constant dense<0.000000e+00> : vector<24x64xf32>
    %3 = tpu.matmul %1, %2, %cst {dimension_numbers = #tpu.dot_dimension_numbers<[1], [0], [0], [1], [0, 0, 1, 1], [], []>} : vector<24x512xbf16>, vector<512x64xbf16>, vector<24x64xf32> -> vector<24x64xf32>
    %c0_3 = arith.constant 0 : index
    %c0_4 = arith.constant 0 : index
    %4 = vector.load %arg3[%c0_3, %c0_4] : memref<1x64xf32, #tpu.memory_space<vmem>>, vector<1x64xf32>
    %5 = vector.broadcast %4 : vector<1x64xf32> to vector<24x64xf32>
    %6 = arith.addf %3, %5 : vector<24x64xf32>
    %cst_5 = arith.constant 0.000000e+00 : f32
    %7 = vector.broadcast %cst_5 : f32 to vector<24x64xf32>
    %8 = arith.maximumf %6, %7 : vector<24x64xf32>
    %9 = arith.truncf %8 : vector<24x64xf32> to vector<24x64xbf16>
    %c0_6 = arith.constant 0 : index
    %c0_7 = arith.constant 0 : index
    %10 = vector.load %arg4[%c0_6, %c0_7] : memref<64x64xbf16, #tpu.memory_space<vmem>>, vector<64x64xbf16>
    %cst_8 = arith.constant dense<0.000000e+00> : vector<24x64xf32>
    %11 = tpu.matmul %9, %10, %cst_8 {dimension_numbers = #tpu.dot_dimension_numbers<[1], [0], [0], [1], [0, 0, 1, 1], [], []>} : vector<24x64xbf16>, vector<64x64xbf16>, vector<24x64xf32> -> vector<24x64xf32>
    %c0_9 = arith.constant 0 : index
    %c0_10 = arith.constant 0 : index
    %12 = vector.load %arg5[%c0_9, %c0_10] : memref<1x64xf32, #tpu.memory_space<vmem>>, vector<1x64xf32>
    %13 = vector.broadcast %12 : vector<1x64xf32> to vector<24x64xf32>
    %14 = arith.addf %11, %13 : vector<24x64xf32>
    %cst_11 = arith.constant 0.000000e+00 : f32
    %15 = vector.broadcast %cst_11 : f32 to vector<24x64xf32>
    %16 = arith.maximumf %14, %15 : vector<24x64xf32>
    %c0_12 = arith.constant 0 : index
    %c0_13 = arith.constant 0 : index
    %17 = vector.load %arg9[%c0_12, %c0_13] : memref<24x64xf32, #tpu.memory_space<vmem>>, vector<24x64xf32>
    tpu.vector_store %arg9[%c0_12, %c0_13], %16 {strides = array<i32>} : memref<24x64xf32, #tpu.memory_space<vmem>>, vector<24x64xf32>,
    %18 = arith.truncf %16 : vector<24x64xf32> to vector<24x64xbf16>
    %c0_14 = arith.constant 0 : index
    %c0_15 = arith.constant 0 : index
    %19 = vector.load %arg6[%c0_14, %c0_15] : memref<64x128xbf16, #tpu.memory_space<vmem>>, vector<64x128xbf16>
    %cst_16 = arith.constant dense<0.000000e+00> : vector<24x128xf32>
    %20 = tpu.matmul %18, %19, %cst_16 {dimension_numbers = #tpu.dot_dimension_numbers<[1], [0], [0], [1], [0, 0, 1, 1], [], []>} : vector<24x64xbf16>, vector<64x128xbf16>, vector<24x128xf32> -> vector<24x128xf32>
    %c0_17 = arith.constant 0 : index
    %c0_18 = arith.constant 0 : index
    %21 = vector.load %arg7[%c0_17, %c0_18] : memref<1x128xf32, #tpu.memory_space<vmem>>, vector<1x128xf32>
    %22 = vector.broadcast %21 : vector<1x128xf32> to vector<24x128xf32>
    %23 = arith.addf %20, %22 : vector<24x128xf32>
    %c0_19 = arith.constant 0 : index
    %c0_20 = arith.constant 0 : index
    %24 = vector.load %arg8[%c0_19, %c0_20] : memref<24x128xf32, #tpu.memory_space<vmem>>, vector<24x128xf32>
    %25 = vector.extract_strided_slice %24 {offsets = [0, 0], sizes = [24, 4], strides = [1, 1]} : vector<24x128xf32> to vector<24x4xf32>
    %26 = vector.extract_strided_slice %24 {offsets = [0, 8], sizes = [24, 4], strides = [1, 1]} : vector<24x128xf32> to vector<24x4xf32>
    %27 = vector.extract_strided_slice %24 {offsets = [0, 16], sizes = [24, 4], strides = [1, 1]} : vector<24x128xf32> to vector<24x4xf32>
    %28 = vector.extract_strided_slice %24 {offsets = [0, 24], sizes = [24, 4], strides = [1, 1]} : vector<24x128xf32> to vector<24x4xf32>
    %29 = vector.extract_strided_slice %24 {offsets = [0, 32], sizes = [24, 16], strides = [1, 1]} : vector<24x128xf32> to vector<24x16xf32>
    %30 = vector.extract_strided_slice %23 {offsets = [0, 0], sizes = [24, 4], strides = [1, 1]} : vector<24x128xf32> to vector<24x4xf32>
    %cst_21 = arith.constant dense<0xFF800000> : vector<24xf32>
    %31 = vector.multi_reduction <maximumf>, %30, %cst_21 [1] : vector<24x4xf32> to vector<24xf32>
    %32 = vector.shape_cast %31 : vector<24xf32> to vector<24x1xf32>
    %33 = vector.broadcast %32 : vector<24x1xf32> to vector<24x4xf32>
    %34 = arith.subf %30, %33 : vector<24x4xf32>
    %35 = math.exp %34 : vector<24x4xf32>
    %cst_22 = arith.constant dense<0.000000e+00> : vector<24xf32>
    %36 = vector.multi_reduction <add>, %35, %cst_22 [1] : vector<24x4xf32> to vector<24xf32>
    %37 = vector.shape_cast %36 : vector<24xf32> to vector<24x1xf32>
    %38 = vector.broadcast %37 : vector<24x1xf32> to vector<24x4xf32>
    %39 = arith.divf %35, %38 : vector<24x4xf32>
    %c0_23 = arith.constant 0 : index
    %c0_24 = arith.constant 0 : index
    %40 = vector.load %arg10[%c0_23, %c0_24] : memref<24x4xf32, #tpu.memory_space<vmem>>, vector<24x4xf32>
    tpu.vector_store %arg10[%c0_23, %c0_24], %39 {strides = array<i32>} : memref<24x4xf32, #tpu.memory_space<vmem>>, vector<24x4xf32>,
    %41 = math.log %37 : vector<24x1xf32>
    %42 = vector.broadcast %41 : vector<24x1xf32> to vector<24x4xf32>
    %43 = arith.subf %34, %42 : vector<24x4xf32>
    %cst_25 = arith.constant 0.000000e+00 : f32
    %44 = vector.broadcast %cst_25 : f32 to vector<24x4xf32>
    %45 = arith.subf %44, %43 : vector<24x4xf32>
    %46 = arith.mulf %25, %45 : vector<24x4xf32>
    %47 = vector.shape_cast %46 : vector<24x4xf32> to vector<1x24x4xf32>
    %cst_26 = arith.constant dense<0.000000e+00> : vector<1xf32>
    %48 = vector.multi_reduction <add>, %47, %cst_26 [1, 2] : vector<1x24x4xf32> to vector<1xf32>
    %49 = vector.shape_cast %48 : vector<1xf32> to vector<1x1x1xf32>
    %50 = vector.extract %49[0, 0, 0] : f32 from vector<1x1x1xf32>
    %cst_27 = arith.constant 8.000000e+00 : f32
    %51 = arith.divf %50, %cst_27 : f32
    %52 = vector.extract_strided_slice %23 {offsets = [0, 4], sizes = [24, 16], strides = [1, 1]} : vector<24x128xf32> to vector<24x16xf32>
    %53 = arith.mulf %52, %29 : vector<24x16xf32>
    %54 = vector.extract_strided_slice %53 {offsets = [0, 0], sizes = [24, 4], strides = [1, 1]} : vector<24x16xf32> to vector<24x4xf32>
    %55 = vector.extract_strided_slice %53 {offsets = [0, 4], sizes = [24, 4], strides = [1, 1]} : vector<24x16xf32> to vector<24x4xf32>
    %56 = arith.addf %54, %55 : vector<24x4xf32>
    %57 = vector.extract_strided_slice %53 {offsets = [0, 8], sizes = [24, 4], strides = [1, 1]} : vector<24x16xf32> to vector<24x4xf32>
    %58 = arith.addf %56, %57 : vector<24x4xf32>
    %59 = vector.extract_strided_slice %53 {offsets = [0, 12], sizes = [24, 4], strides = [1, 1]} : vector<24x16xf32> to vector<24x4xf32>
    %60 = arith.addf %58, %59 : vector<24x4xf32>
    %c0_28 = arith.constant 0 : index
    %c0_29 = arith.constant 0 : index
    %61 = vector.load %arg11[%c0_28, %c0_29] : memref<24x4xf32, #tpu.memory_space<vmem>>, vector<24x4xf32>
    tpu.vector_store %arg11[%c0_28, %c0_29], %60 {strides = array<i32>} : memref<24x4xf32, #tpu.memory_space<vmem>>, vector<24x4xf32>,
    %62 = arith.subf %60, %26 : vector<24x4xf32>
    %63 = arith.mulf %27, %62 : vector<24x4xf32>
    %64 = math.absf %63 : vector<24x4xf32>
    %cst_30 = arith.constant 1.000000e+00 : f32
    %65 = vector.broadcast %cst_30 : f32 to vector<24x4xf32>
    %66 = arith.cmpf olt, %64, %65 : vector<24x4xf32>
    %67 = arith.extui %66 : vector<24x4xi1> to vector<24x4xi32>
    %68 = arith.sitofp %67 : vector<24x4xi32> to vector<24x4xf32>
    %cst_31 = arith.constant 5.000000e-01 : f32
    %69 = vector.broadcast %cst_31 : f32 to vector<24x4xf32>
    %70 = arith.mulf %68, %69 : vector<24x4xf32>
    %71 = arith.mulf %70, %63 : vector<24x4xf32>
    %72 = arith.mulf %71, %63 : vector<24x4xf32>
    %cst_32 = arith.constant 1.000000e+00 : f32
    %73 = vector.broadcast %cst_32 : f32 to vector<24x4xf32>
    %74 = arith.subf %73, %68 : vector<24x4xf32>
    %cst_33 = arith.constant 5.000000e-01 : f32
    %75 = vector.broadcast %cst_33 : f32 to vector<24x4xf32>
    %76 = arith.subf %64, %75 : vector<24x4xf32>
    %77 = arith.mulf %74, %76 : vector<24x4xf32>
    %78 = arith.addf %72, %77 : vector<24x4xf32>
    %79 = arith.mulf %28, %78 : vector<24x4xf32>
    %80 = vector.shape_cast %79 : vector<24x4xf32> to vector<1x24x4xf32>
    %cst_34 = arith.constant dense<0.000000e+00> : vector<1xf32>
    %81 = vector.multi_reduction <add>, %80, %cst_34 [1, 2] : vector<1x24x4xf32> to vector<1xf32>
    %82 = vector.shape_cast %81 : vector<1xf32> to vector<1x1x1xf32>
    %83 = vector.extract %82[0, 0, 0] : f32 from vector<1x1x1xf32>
    %cst_35 = arith.constant 8.000000e+00 : f32
    %84 = arith.divf %83, %cst_35 : f32
    %85 = tpu.iota {dimensions = array<i32: 1>} : vector<1x128xi32>
    %cst_36 = arith.constant 0.000000e+00 : f32
    %86 = vector.broadcast %cst_36 : f32 to vector<1x128xf32>
    %c0_i32 = arith.constant 0 : i32
    %87 = vector.broadcast %c0_i32 : i32 to vector<1x128xi32>
    %88 = arith.cmpi eq, %85, %87 : vector<1x128xi32>
    %cst_37 = arith.constant 0.000000e+00 : f32
    %89 = vector.broadcast %51 : f32 to vector<1x128xf32>
    %90 = vector.broadcast %cst_37 : f32 to vector<1x128xf32>
    %91 = arith.select %88, %89, %90 : vector<1x128xi1>, vector<1x128xf32>
    %92 = arith.addf %86, %91 : vector<1x128xf32>
    %c1_i32 = arith.constant 1 : i32
    %93 = vector.broadcast %c1_i32 : i32 to vector<1x128xi32>
    %94 = arith.cmpi eq, %85, %93 : vector<1x128xi32>
    %cst_38 = arith.constant 0.000000e+00 : f32
    %95 = vector.broadcast %84 : f32 to vector<1x128xf32>
    %96 = vector.broadcast %cst_38 : f32 to vector<1x128xf32>
    %97 = arith.select %94, %95, %96 : vector<1x128xi1>, vector<1x128xf32>
    %98 = arith.addf %92, %97 : vector<1x128xf32>
    %c0_39 = arith.constant 0 : index
    %c0_40 = arith.constant 0 : index
    %99 = vector.load %arg12[%c0_39, %c0_40] : memref<1x128xf32, #tpu.memory_space<vmem>>, vector<1x128xf32>
    tpu.vector_store %arg12[%c0_39, %c0_40], %98 {strides = array<i32>} : memref<1x128xf32, #tpu.memory_space<vmem>>, vector<1x128xf32>,
    return
  }
  func.func @transform_0(%arg0: i32) -> (i32, i32) {
    %c0_i32 = arith.constant 0 : i32
    %c0_i32_0 = arith.constant 0 : i32
    %c0_i32_1 = arith.constant 0 : i32
    return %c0_i32, %c0_i32_0 : i32, i32
  }
  func.func @transform_1(%arg0: i32) -> (i32, i32) {
    %c0_i32 = arith.constant 0 : i32
    %c0_i32_0 = arith.constant 0 : i32
    %c0_i32_1 = arith.constant 0 : i32
    return %c0_i32, %c0_i32_0 : i32, i32
  }
  func.func @transform_2(%arg0: i32) -> (i32, i32) {
    %c0_i32 = arith.constant 0 : i32
    %c0_i32_0 = arith.constant 0 : i32
    %c0_i32_1 = arith.constant 0 : i32
    return %c0_i32, %c0_i32_0 : i32, i32
  }
  func.func @transform_3(%arg0: i32) -> (i32, i32) {
    %c0_i32 = arith.constant 0 : i32
    %c0_i32_0 = arith.constant 0 : i32
    %c0_i32_1 = arith.constant 0 : i32
    return %c0_i32, %c0_i32_0 : i32, i32
  }
  func.func @transform_4(%arg0: i32) -> (i32, i32) {
    %c0_i32 = arith.constant 0 : i32
    %c0_i32_0 = arith.constant 0 : i32
    %c0_i32_1 = arith.constant 0 : i32
    return %c0_i32, %c0_i32_0 : i32, i32
  }
  func.func @transform_5(%arg0: i32) -> (i32, i32) {
    %c0_i32 = arith.constant 0 : i32
    %c0_i32_0 = arith.constant 0 : i32
    %c0_i32_1 = arith.constant 0 : i32
    return %c0_i32, %c0_i32_0 : i32, i32
  }
  func.func @transform_6(%arg0: i32) -> (i32, i32) {
    %c0_i32 = arith.constant 0 : i32
    %c0_i32_0 = arith.constant 0 : i32
    %c0_i32_1 = arith.constant 0 : i32
    return %c0_i32, %c0_i32_0 : i32, i32
  }
  func.func @transform_7(%arg0: i32) -> (i32, i32) {
    %c0_i32 = arith.constant 0 : i32
    %c0_i32_0 = arith.constant 0 : i32
    %c0_i32_1 = arith.constant 0 : i32
    return %c0_i32, %c0_i32_0 : i32, i32
  }
  func.func @transform_8(%arg0: i32) -> (i32, i32) {
    %c0_i32 = arith.constant 0 : i32
    %c0_i32_0 = arith.constant 0 : i32
    %c0_i32_1 = arith.constant 0 : i32
    return %c0_i32, %c0_i32_0 : i32, i32
  }
  func.func @transform_9(%arg0: i32) -> (i32, i32) {
    %c0_i32 = arith.constant 0 : i32
    %c0_i32_0 = arith.constant 0 : i32
    %c0_i32_1 = arith.constant 0 : i32
    return %c0_i32, %c0_i32_0 : i32, i32
  }
  func.func @transform_10(%arg0: i32) -> (i32, i32) {
    %c0_i32 = arith.constant 0 : i32
    %c0_i32_0 = arith.constant 0 : i32
    %c0_i32_1 = arith.constant 0 : i32
    return %c0_i32, %c0_i32_0 : i32, i32
  }
  func.func @transform_11(%arg0: i32) -> (i32, i32) {
    %c0_i32 = arith.constant 0 : i32
    %c0_i32_0 = arith.constant 0 : i32
    %c0_i32_1 = arith.constant 0 : i32
    return %c0_i32, %c0_i32_0 : i32, i32
  }
}

module attributes {stable_mosaic.version = 11 : i64} {
  func.func @_dg_kernel(%arg0: i32, %arg1: i32, %arg2: memref<3x2xi32, #tpu.memory_space<smem>>, %arg3: memref<1x64x32xf32, #tpu.memory_space<vmem>>, %arg4: memref<1x8x64xf32, #tpu.memory_space<vmem>>, %arg5: memref<1x32x32xbf16, #tpu.memory_space<vmem>>, %arg6: memref<1x1x32xf32, #tpu.memory_space<vmem>>, %arg7: memref<1x32x128xbf16, #tpu.memory_space<vmem>>, %arg8: memref<1x1x128xf32, #tpu.memory_space<vmem>>, %arg9: memref<1x64x32xbf16, #tpu.memory_space<vmem>>, %arg10: memref<1x1x32xf32, #tpu.memory_space<vmem>>, %arg11: memref<1x32x32xbf16, #tpu.memory_space<vmem>>, %arg12: memref<1x1x32xf32, #tpu.memory_space<vmem>>, %arg13: memref<1x32x128xbf16, #tpu.memory_space<vmem>>, %arg14: memref<1x1x128xf32, #tpu.memory_space<vmem>>, %arg15: memref<1x1x128xf32, #tpu.memory_space<vmem>>) attributes {dimension_semantics = [#tpu.dimension_semantics<arbitrary>, #tpu.dimension_semantics<arbitrary>], iteration_bounds = array<i64: 3, 2>, scalar_prefetch = 1 : i64, scratch_operands = 0 : i64, tpu.core_type = #tpu.core_type<tc>, window_params = [{transform_indices = @transform_0, window_bounds = array<i64: 1, 64, 32>}, {transform_indices = @transform_1, window_bounds = array<i64: 1, 8, 64>}, {transform_indices = @transform_2, window_bounds = array<i64: 1, 32, 32>}, {transform_indices = @transform_3, window_bounds = array<i64: 1, 1, 32>}, {transform_indices = @transform_4, window_bounds = array<i64: 1, 32, 128>}, {transform_indices = @transform_5, window_bounds = array<i64: 1, 1, 128>}, {transform_indices = @transform_6, window_bounds = array<i64: 1, 64, 32>}, {transform_indices = @transform_7, window_bounds = array<i64: 1, 1, 32>}, {transform_indices = @transform_8, window_bounds = array<i64: 1, 32, 32>}, {transform_indices = @transform_9, window_bounds = array<i64: 1, 1, 32>}, {transform_indices = @transform_10, window_bounds = array<i64: 1, 32, 128>}, {transform_indices = @transform_11, window_bounds = array<i64: 1, 1, 128>}, {transform_indices = @transform_12, window_bounds = array<i64: 1, 1, 128>}]} {
    %c0_i32 = arith.constant 0 : i32
    %0 = arith.cmpi eq, %arg1, %c0_i32 : i32
    %1 = arith.extui %0 : i1 to i32
    %2 = arith.sitofp %1 : i32 to f32
    %c0 = arith.constant 0 : index
    %c0_0 = arith.constant 0 : index
    %c0_1 = arith.constant 0 : index
    %3 = vector.load %arg3[%c0, %c0_0, %c0_1] : memref<1x64x32xf32, #tpu.memory_space<vmem>>, vector<1x64x32xf32>
    %4 = vector.shape_cast %3 : vector<1x64x32xf32> to vector<64x32xf32>
    %5 = arith.truncf %4 : vector<64x32xf32> to vector<64x32xbf16>
    %c0_2 = arith.constant 0 : index
    %c0_3 = arith.constant 0 : index
    %c0_4 = arith.constant 0 : index
    %6 = vector.load %arg5[%c0_2, %c0_3, %c0_4] : memref<1x32x32xbf16, #tpu.memory_space<vmem>>, vector<1x32x32xbf16>
    %7 = vector.shape_cast %6 : vector<1x32x32xbf16> to vector<32x32xbf16>
    %cst = arith.constant dense<0.000000e+00> : vector<64x32xf32>
    %8 = tpu.matmul %5, %7, %cst {dimension_numbers = #tpu.dot_dimension_numbers<[1], [0], [0], [1], [0, 0, 1, 1], [], []>} : vector<64x32xbf16>, vector<32x32xbf16>, vector<64x32xf32> -> vector<64x32xf32>
    %c0_5 = arith.constant 0 : index
    %c0_6 = arith.constant 0 : index
    %c0_7 = arith.constant 0 : index
    %9 = vector.load %arg6[%c0_5, %c0_6, %c0_7] : memref<1x1x32xf32, #tpu.memory_space<vmem>>, vector<1x1x32xf32>
    %10 = vector.shape_cast %9 : vector<1x1x32xf32> to vector<1x32xf32>
    %11 = vector.broadcast %10 : vector<1x32xf32> to vector<64x32xf32>
    %12 = arith.addf %8, %11 : vector<64x32xf32>
    %cst_8 = arith.constant 0.000000e+00 : f32
    %13 = vector.broadcast %cst_8 : f32 to vector<64x32xf32>
    %14 = arith.maximumf %12, %13 : vector<64x32xf32>
    %15 = arith.truncf %14 : vector<64x32xf32> to vector<64x32xbf16>
    %c0_9 = arith.constant 0 : index
    %c0_10 = arith.constant 0 : index
    %c0_11 = arith.constant 0 : index
    %16 = vector.load %arg7[%c0_9, %c0_10, %c0_11] : memref<1x32x128xbf16, #tpu.memory_space<vmem>>, vector<1x32x128xbf16>
    %17 = vector.shape_cast %16 : vector<1x32x128xbf16> to vector<32x128xbf16>
    %cst_12 = arith.constant dense<0.000000e+00> : vector<64x128xf32>
    %18 = tpu.matmul %15, %17, %cst_12 {dimension_numbers = #tpu.dot_dimension_numbers<[1], [0], [0], [1], [0, 0, 1, 1], [], []>} : vector<64x32xbf16>, vector<32x128xbf16>, vector<64x128xf32> -> vector<64x128xf32>
    %c0_13 = arith.constant 0 : index
    %c0_14 = arith.constant 0 : index
    %c0_15 = arith.constant 0 : index
    %19 = vector.load %arg8[%c0_13, %c0_14, %c0_15] : memref<1x1x128xf32, #tpu.memory_space<vmem>>, vector<1x1x128xf32>
    %20 = vector.shape_cast %19 : vector<1x1x128xf32> to vector<1x128xf32>
    %21 = vector.broadcast %20 : vector<1x128xf32> to vector<64x128xf32>
    %22 = arith.addf %18, %21 : vector<64x128xf32>
    %23 = vector.extract_strided_slice %22 {offsets = [0, 0], sizes = [64, 2], strides = [1, 1]} : vector<64x128xf32> to vector<64x2xf32>
    %cst_16 = arith.constant dense<0xFF800000> : vector<64xf32>
    %24 = vector.multi_reduction <maximumf>, %23, %cst_16 [1] : vector<64x2xf32> to vector<64xf32>
    %25 = vector.shape_cast %24 : vector<64xf32> to vector<64x1xf32>
    %26 = vector.broadcast %25 : vector<64x1xf32> to vector<64x2xf32>
    %27 = arith.subf %23, %26 : vector<64x2xf32>
    %28 = math.exp %27 : vector<64x2xf32>
    %cst_17 = arith.constant dense<0.000000e+00> : vector<64xf32>
    %29 = vector.multi_reduction <add>, %28, %cst_17 [1] : vector<64x2xf32> to vector<64xf32>
    %30 = vector.shape_cast %29 : vector<64xf32> to vector<64x1xf32>
    %31 = math.log %30 : vector<64x1xf32>
    %32 = vector.broadcast %31 : vector<64x1xf32> to vector<64x2xf32>
    %33 = arith.subf %27, %32 : vector<64x2xf32>
    %cst_18 = arith.constant dense<0.000000e+00> : vector<2xf32>
    %34 = vector.multi_reduction <add>, %33, %cst_18 [0] : vector<64x2xf32> to vector<2xf32>
    %35 = vector.shape_cast %34 : vector<2xf32> to vector<1x2xf32>
    %36 = vector.extract_strided_slice %35 {offsets = [0, 1], sizes = [1, 1], strides = [1, 1]} : vector<1x2xf32> to vector<1x1xf32>
    %37 = vector.broadcast %2 : f32 to vector<1x1xf32>
    %38 = arith.mulf %37, %36 : vector<1x1xf32>
    %cst_19 = arith.constant 1.000000e+00 : f32
    %39 = arith.subf %cst_19, %2 : f32
    %40 = vector.extract_strided_slice %35 {offsets = [0, 0], sizes = [1, 1], strides = [1, 1]} : vector<1x2xf32> to vector<1x1xf32>
    %41 = vector.broadcast %39 : f32 to vector<1x1xf32>
    %42 = arith.mulf %41, %40 : vector<1x1xf32>
    %43 = arith.addf %38, %42 : vector<1x1xf32>
    %cst_20 = arith.constant 0.000000e+00 : f32
    %44 = vector.broadcast %cst_20 : f32 to vector<1x1xf32>
    %45 = arith.subf %44, %43 : vector<1x1xf32>
    %cst_21 = arith.constant 6.400000e+01 : f32
    %46 = vector.broadcast %cst_21 : f32 to vector<1x1xf32>
    %47 = arith.divf %45, %46 : vector<1x1xf32>
    %48 = vector.extract_strided_slice %33 {offsets = [0, 1], sizes = [64, 1], strides = [1, 1]} : vector<64x2xf32> to vector<64x1xf32>
    %49 = math.exp %48 : vector<64x1xf32>
    %50 = vector.shape_cast %49 : vector<64x1xf32> to vector<1x64x1xf32>
    %cst_22 = arith.constant dense<0.000000e+00> : vector<1xf32>
    %51 = vector.multi_reduction <add>, %50, %cst_22 [1, 2] : vector<1x64x1xf32> to vector<1xf32>
    %52 = vector.shape_cast %51 : vector<1xf32> to vector<1x1x1xf32>
    %53 = vector.extract %52[0, 0, 0] : f32 from vector<1x1x1xf32>
    %cst_23 = arith.constant 6.400000e+01 : f32
    %54 = arith.divf %53, %cst_23 : f32
    %c0_24 = arith.constant 0 : index
    %c0_25 = arith.constant 0 : index
    %c0_26 = arith.constant 0 : index
    %55 = vector.load %arg4[%c0_24, %c0_25, %c0_26] : memref<1x8x64xf32, #tpu.memory_space<vmem>>, vector<1x8x64xf32>
    %56 = vector.shape_cast %55 : vector<1x8x64xf32> to vector<8x64xf32>
    %57 = arith.truncf %56 : vector<8x64xf32> to vector<8x64xbf16>
    %c0_27 = arith.constant 0 : index
    %c0_28 = arith.constant 0 : index
    %c0_29 = arith.constant 0 : index
    %58 = vector.load %arg9[%c0_27, %c0_28, %c0_29] : memref<1x64x32xbf16, #tpu.memory_space<vmem>>, vector<1x64x32xbf16>
    %59 = vector.shape_cast %58 : vector<1x64x32xbf16> to vector<64x32xbf16>
    %cst_30 = arith.constant dense<0.000000e+00> : vector<8x32xf32>
    %60 = tpu.matmul %57, %59, %cst_30 {dimension_numbers = #tpu.dot_dimension_numbers<[1], [0], [0], [1], [0, 0, 1, 1], [], []>} : vector<8x64xbf16>, vector<64x32xbf16>, vector<8x32xf32> -> vector<8x32xf32>
    %c0_31 = arith.constant 0 : index
    %c0_32 = arith.constant 0 : index
    %c0_33 = arith.constant 0 : index
    %61 = vector.load %arg10[%c0_31, %c0_32, %c0_33] : memref<1x1x32xf32, #tpu.memory_space<vmem>>, vector<1x1x32xf32>
    %62 = vector.shape_cast %61 : vector<1x1x32xf32> to vector<1x32xf32>
    %63 = vector.broadcast %62 : vector<1x32xf32> to vector<8x32xf32>
    %64 = arith.addf %60, %63 : vector<8x32xf32>
    %cst_34 = arith.constant 0.000000e+00 : f32
    %65 = vector.broadcast %cst_34 : f32 to vector<8x32xf32>
    %66 = arith.maximumf %64, %65 : vector<8x32xf32>
    %67 = arith.truncf %66 : vector<8x32xf32> to vector<8x32xbf16>
    %c0_35 = arith.constant 0 : index
    %c0_36 = arith.constant 0 : index
    %c0_37 = arith.constant 0 : index
    %68 = vector.load %arg11[%c0_35, %c0_36, %c0_37] : memref<1x32x32xbf16, #tpu.memory_space<vmem>>, vector<1x32x32xbf16>
    %69 = vector.shape_cast %68 : vector<1x32x32xbf16> to vector<32x32xbf16>
    %cst_38 = arith.constant dense<0.000000e+00> : vector<8x32xf32>
    %70 = tpu.matmul %67, %69, %cst_38 {dimension_numbers = #tpu.dot_dimension_numbers<[1], [0], [0], [1], [0, 0, 1, 1], [], []>} : vector<8x32xbf16>, vector<32x32xbf16>, vector<8x32xf32> -> vector<8x32xf32>
    %c0_39 = arith.constant 0 : index
    %c0_40 = arith.constant 0 : index
    %c0_41 = arith.constant 0 : index
    %71 = vector.load %arg12[%c0_39, %c0_40, %c0_41] : memref<1x1x32xf32, #tpu.memory_space<vmem>>, vector<1x1x32xf32>
    %72 = vector.shape_cast %71 : vector<1x1x32xf32> to vector<1x32xf32>
    %73 = vector.broadcast %72 : vector<1x32xf32> to vector<8x32xf32>
    %74 = arith.addf %70, %73 : vector<8x32xf32>
    %cst_42 = arith.constant 0.000000e+00 : f32
    %75 = vector.broadcast %cst_42 : f32 to vector<8x32xf32>
    %76 = arith.maximumf %74, %75 : vector<8x32xf32>
    %77 = arith.truncf %76 : vector<8x32xf32> to vector<8x32xbf16>
    %c0_43 = arith.constant 0 : index
    %c0_44 = arith.constant 0 : index
    %c0_45 = arith.constant 0 : index
    %78 = vector.load %arg13[%c0_43, %c0_44, %c0_45] : memref<1x32x128xbf16, #tpu.memory_space<vmem>>, vector<1x32x128xbf16>
    %79 = vector.shape_cast %78 : vector<1x32x128xbf16> to vector<32x128xbf16>
    %cst_46 = arith.constant dense<0.000000e+00> : vector<8x128xf32>
    %80 = tpu.matmul %77, %79, %cst_46 {dimension_numbers = #tpu.dot_dimension_numbers<[1], [0], [0], [1], [0, 0, 1, 1], [], []>} : vector<8x32xbf16>, vector<32x128xbf16>, vector<8x128xf32> -> vector<8x128xf32>
    %c0_47 = arith.constant 0 : index
    %c0_48 = arith.constant 0 : index
    %c0_49 = arith.constant 0 : index
    %81 = vector.load %arg14[%c0_47, %c0_48, %c0_49] : memref<1x1x128xf32, #tpu.memory_space<vmem>>, vector<1x1x128xf32>
    %82 = vector.shape_cast %81 : vector<1x1x128xf32> to vector<1x128xf32>
    %83 = vector.broadcast %82 : vector<1x128xf32> to vector<8x128xf32>
    %84 = arith.addf %80, %83 : vector<8x128xf32>
    %85 = arith.negf %84 : vector<8x128xf32>
    %86 = math.exp %85 : vector<8x128xf32>
    %cst_50 = arith.constant 1.000000e+00 : f32
    %87 = vector.broadcast %cst_50 : f32 to vector<8x128xf32>
    %88 = arith.addf %87, %86 : vector<8x128xf32>
    %89 = arith.divf %87, %88 : vector<8x128xf32>
    %90 = vector.extract_strided_slice %89 {offsets = [0, 0], sizes = [8, 1], strides = [1, 1]} : vector<8x128xf32> to vector<8x1xf32>
    %cst_51 = arith.constant 1.000000e-07 : f32
    %cst_52 = arith.constant 0.99999988 : f32
    %91 = vector.broadcast %cst_51 : f32 to vector<8x1xf32>
    %92 = arith.maximumf %91, %90 : vector<8x1xf32>
    %93 = vector.broadcast %cst_52 : f32 to vector<8x1xf32>
    %94 = arith.minimumf %93, %92 : vector<8x1xf32>
    %95 = math.log %94 : vector<8x1xf32>
    %cst_53 = arith.constant 0.000000e+00 : f32
    %96 = vector.broadcast %cst_53 : f32 to vector<8x1xf32>
    %97 = arith.subf %96, %95 : vector<8x1xf32>
    %98 = vector.broadcast %2 : f32 to vector<8x1xf32>
    %99 = arith.mulf %98, %97 : vector<8x1xf32>
    %cst_54 = arith.constant 1.000000e+00 : f32
    %100 = arith.subf %cst_54, %2 : f32
    %cst_55 = arith.constant 1.000000e+00 : f32
    %101 = vector.broadcast %cst_55 : f32 to vector<8x1xf32>
    %102 = arith.subf %101, %94 : vector<8x1xf32>
    %103 = math.log %102 : vector<8x1xf32>
    %cst_56 = arith.constant 0.000000e+00 : f32
    %104 = vector.broadcast %cst_56 : f32 to vector<8x1xf32>
    %105 = arith.subf %104, %103 : vector<8x1xf32>
    %106 = vector.broadcast %100 : f32 to vector<8x1xf32>
    %107 = arith.mulf %106, %105 : vector<8x1xf32>
    %108 = arith.addf %99, %107 : vector<8x1xf32>
    %109 = vector.shape_cast %108 : vector<8x1xf32> to vector<1x8x1xf32>
    %cst_57 = arith.constant dense<0.000000e+00> : vector<1xf32>
    %110 = vector.multi_reduction <add>, %109, %cst_57 [1, 2] : vector<1x8x1xf32> to vector<1xf32>
    %111 = vector.shape_cast %110 : vector<1xf32> to vector<1x1x1xf32>
    %112 = vector.extract %111[0, 0, 0] : f32 from vector<1x1x1xf32>
    %cst_58 = arith.constant 8.000000e+00 : f32
    %113 = arith.divf %112, %cst_58 : f32
    %114 = vector.broadcast %54 : f32 to vector<8x1xf32>
    %115 = arith.subf %90, %114 : vector<8x1xf32>
    %116 = arith.mulf %115, %115 : vector<8x1xf32>
    %117 = vector.shape_cast %116 : vector<8x1xf32> to vector<1x8x1xf32>
    %cst_59 = arith.constant dense<0.000000e+00> : vector<1xf32>
    %118 = vector.multi_reduction <add>, %117, %cst_59 [1, 2] : vector<1x8x1xf32> to vector<1xf32>
    %119 = vector.shape_cast %118 : vector<1xf32> to vector<1x1x1xf32>
    %120 = vector.extract %119[0, 0, 0] : f32 from vector<1x1x1xf32>
    %121 = tpu.iota {dimensions = array<i32: 1>} : vector<1x128xi32>
    %cst_60 = arith.constant 0.000000e+00 : f32
    %122 = vector.broadcast %cst_60 : f32 to vector<1x128xf32>
    %c0_i32_61 = arith.constant 0 : i32
    %123 = vector.broadcast %c0_i32_61 : i32 to vector<1x128xi32>
    %124 = arith.cmpi eq, %121, %123 : vector<1x128xi32>
    %cst_62 = arith.constant 0.000000e+00 : f32
    %125 = vector.shape_cast %47 : vector<1x1xf32> to vector<1x1xf32>
    %126 = vector.broadcast %125 : vector<1x1xf32> to vector<1x128xf32>
    %127 = vector.broadcast %cst_62 : f32 to vector<1x128xf32>
    %128 = arith.select %124, %126, %127 : vector<1x128xi1>, vector<1x128xf32>
    %129 = arith.addf %122, %128 : vector<1x128xf32>
    %c1_i32 = arith.constant 1 : i32
    %130 = vector.broadcast %c1_i32 : i32 to vector<1x128xi32>
    %131 = arith.cmpi eq, %121, %130 : vector<1x128xi32>
    %cst_63 = arith.constant 0.000000e+00 : f32
    %132 = vector.broadcast %113 : f32 to vector<1x128xf32>
    %133 = vector.broadcast %cst_63 : f32 to vector<1x128xf32>
    %134 = arith.select %131, %132, %133 : vector<1x128xi1>, vector<1x128xf32>
    %135 = arith.addf %129, %134 : vector<1x128xf32>
    %c2_i32 = arith.constant 2 : i32
    %136 = vector.broadcast %c2_i32 : i32 to vector<1x128xi32>
    %137 = arith.cmpi eq, %121, %136 : vector<1x128xi32>
    %cst_64 = arith.constant 0.000000e+00 : f32
    %138 = vector.broadcast %120 : f32 to vector<1x128xf32>
    %139 = vector.broadcast %cst_64 : f32 to vector<1x128xf32>
    %140 = arith.select %137, %138, %139 : vector<1x128xi1>, vector<1x128xf32>
    %141 = arith.addf %135, %140 : vector<1x128xf32>
    %c0_65 = arith.constant 0 : index
    %c0_66 = arith.constant 0 : index
    %c0_67 = arith.constant 0 : index
    %142 = vector.load %arg15[%c0_65, %c0_66, %c0_67] : memref<1x1x128xf32, #tpu.memory_space<vmem>>, vector<1x1x128xf32>
    %143 = vector.shape_cast %142 : vector<1x1x128xf32> to vector<1x128xf32>
    %144 = vector.shape_cast %141 : vector<1x128xf32> to vector<1x1x128xf32>
    tpu.vector_store %arg15[%c0_65, %c0_66, %c0_67], %144 {strides = array<i32>} : memref<1x1x128xf32, #tpu.memory_space<vmem>>, vector<1x1x128xf32>,
    return
  }
  func.func @transform_0(%arg0: i32, %arg1: i32, %arg2: memref<3x2xi32, #tpu.memory_space<smem>>) -> (i32, i32, i32) {
    %0 = arith.index_cast %arg0 : i32 to index
    %1 = arith.index_cast %arg1 : i32 to index
    %2 = memref.load %arg2[%0, %1] : memref<3x2xi32, #tpu.memory_space<smem>>
    %c0_i32 = arith.constant 0 : i32
    %c0_i32_0 = arith.constant 0 : i32
    %c0_i32_1 = arith.constant 0 : i32
    return %2, %c0_i32, %c0_i32_0 : i32, i32, i32
  }
  func.func @transform_1(%arg0: i32, %arg1: i32, %arg2: memref<3x2xi32, #tpu.memory_space<smem>>) -> (i32, i32, i32) {
    %0 = arith.index_cast %arg0 : i32 to index
    %1 = arith.index_cast %arg1 : i32 to index
    %2 = memref.load %arg2[%0, %1] : memref<3x2xi32, #tpu.memory_space<smem>>
    %c0_i32 = arith.constant 0 : i32
    %c0_i32_0 = arith.constant 0 : i32
    %c0_i32_1 = arith.constant 0 : i32
    return %2, %c0_i32, %c0_i32_0 : i32, i32, i32
  }
  func.func @transform_2(%arg0: i32, %arg1: i32, %arg2: memref<3x2xi32, #tpu.memory_space<smem>>) -> (i32, i32, i32) {
    %c0_i32 = arith.constant 0 : i32
    %c0_i32_0 = arith.constant 0 : i32
    %c0_i32_1 = arith.constant 0 : i32
    return %arg0, %c0_i32, %c0_i32_0 : i32, i32, i32
  }
  func.func @transform_3(%arg0: i32, %arg1: i32, %arg2: memref<3x2xi32, #tpu.memory_space<smem>>) -> (i32, i32, i32) {
    %c0_i32 = arith.constant 0 : i32
    %c0_i32_0 = arith.constant 0 : i32
    %c0_i32_1 = arith.constant 0 : i32
    return %arg0, %c0_i32, %c0_i32_0 : i32, i32, i32
  }
  func.func @transform_4(%arg0: i32, %arg1: i32, %arg2: memref<3x2xi32, #tpu.memory_space<smem>>) -> (i32, i32, i32) {
    %c0_i32 = arith.constant 0 : i32
    %c0_i32_0 = arith.constant 0 : i32
    %c0_i32_1 = arith.constant 0 : i32
    return %arg0, %c0_i32, %c0_i32_0 : i32, i32, i32
  }
  func.func @transform_5(%arg0: i32, %arg1: i32, %arg2: memref<3x2xi32, #tpu.memory_space<smem>>) -> (i32, i32, i32) {
    %c0_i32 = arith.constant 0 : i32
    %c0_i32_0 = arith.constant 0 : i32
    %c0_i32_1 = arith.constant 0 : i32
    return %arg0, %c0_i32, %c0_i32_0 : i32, i32, i32
  }
  func.func @transform_6(%arg0: i32, %arg1: i32, %arg2: memref<3x2xi32, #tpu.memory_space<smem>>) -> (i32, i32, i32) {
    %c0_i32 = arith.constant 0 : i32
    %c0_i32_0 = arith.constant 0 : i32
    %c0_i32_1 = arith.constant 0 : i32
    return %arg0, %c0_i32, %c0_i32_0 : i32, i32, i32
  }
  func.func @transform_7(%arg0: i32, %arg1: i32, %arg2: memref<3x2xi32, #tpu.memory_space<smem>>) -> (i32, i32, i32) {
    %c0_i32 = arith.constant 0 : i32
    %c0_i32_0 = arith.constant 0 : i32
    %c0_i32_1 = arith.constant 0 : i32
    return %arg0, %c0_i32, %c0_i32_0 : i32, i32, i32
  }
  func.func @transform_8(%arg0: i32, %arg1: i32, %arg2: memref<3x2xi32, #tpu.memory_space<smem>>) -> (i32, i32, i32) {
    %c0_i32 = arith.constant 0 : i32
    %c0_i32_0 = arith.constant 0 : i32
    %c0_i32_1 = arith.constant 0 : i32
    return %arg0, %c0_i32, %c0_i32_0 : i32, i32, i32
  }
  func.func @transform_9(%arg0: i32, %arg1: i32, %arg2: memref<3x2xi32, #tpu.memory_space<smem>>) -> (i32, i32, i32) {
    %c0_i32 = arith.constant 0 : i32
    %c0_i32_0 = arith.constant 0 : i32
    %c0_i32_1 = arith.constant 0 : i32
    return %arg0, %c0_i32, %c0_i32_0 : i32, i32, i32
  }
  func.func @transform_10(%arg0: i32, %arg1: i32, %arg2: memref<3x2xi32, #tpu.memory_space<smem>>) -> (i32, i32, i32) {
    %c0_i32 = arith.constant 0 : i32
    %c0_i32_0 = arith.constant 0 : i32
    %c0_i32_1 = arith.constant 0 : i32
    return %arg0, %c0_i32, %c0_i32_0 : i32, i32, i32
  }
  func.func @transform_11(%arg0: i32, %arg1: i32, %arg2: memref<3x2xi32, #tpu.memory_space<smem>>) -> (i32, i32, i32) {
    %c0_i32 = arith.constant 0 : i32
    %c0_i32_0 = arith.constant 0 : i32
    %c0_i32_1 = arith.constant 0 : i32
    return %arg0, %c0_i32, %c0_i32_0 : i32, i32, i32
  }
  func.func @transform_12(%arg0: i32, %arg1: i32, %arg2: memref<3x2xi32, #tpu.memory_space<smem>>) -> (i32, i32, i32) {
    %c2_i32 = arith.constant 2 : i32
    %0 = arith.muli %arg0, %c2_i32 : i32
    %1 = arith.addi %0, %arg1 : i32
    %c0_i32 = arith.constant 0 : i32
    %c0_i32_0 = arith.constant 0 : i32
    %c0_i32_1 = arith.constant 0 : i32
    return %1, %c0_i32, %c0_i32_0 : i32, i32, i32
  }
}

</mosaic_0001>

<llo_original>
// kernel: faster_rcnn_forward.4
$region0: #{faster_rcnn_forward.4}
  #allocation0 [shape = 'u32[]', space=smem, size = 0x4, offset = 0x4, fixed_abs, tag = 'smem constant byte address 0x4 - core index']
  #allocation1 [shape = 'u32[144,128]{1,0:T(1,128)}', space=vmem, size = 0x12000, scoped, tag = 'internal scratch']
  %s0 = inlined_call_operand.vmem [shape: f32[192,27], index: 0, kind: input, shape index: {}]
  %s1 = inlined_call_operand.vmem [shape: bf16[27,32], index: 1, kind: input, shape index: {}]
  %s2 = inlined_call_operand.vmem [shape: f32[1,32], index: 2, kind: input, shape index: {}]
  %s3 = inlined_call_operand.vmem [shape: f32[192,32], index: 3, kind: output, shape index: {}]
  %s4 = sld [smem:[#allocation0]]
  $region45: #{faster_rcnn_forward.4} parent=0
    _
  %s6 = ssub.s32 1, %s4
  %s7 = scalar_select 0, %s6, %s4
  loop: start=0, step=1, limit=4
  $region2: #{faster_rcnn_forward.4} parent=0 // loop_pre_header
    _
  $region3: #{faster_rcnn_forward.4} parent=0 // loop_header
    %s9 = sphi 0, %s13
    %p10 = scmp.ge.s32.totalorder %s9, 4
    %s19 = sphi 0, %s21
    %s22 = sphi 0, %s19
    %s23 = sphi 0, %s22
    %s39 = sphi 0, %s23
    %s43 = sphi 0, %s43
    %s45 = sphi 0, %s43
    %s46 = sphi 0, %s45
    %s60 = sphi 0, %s46
    %s64 = sphi 0, %s64
    %s66 = sphi 0, %s64
    %s67 = sphi 0, %s66
    %s81 = sphi 0, %s67
    %s87 = sphi 0, %s89
    %s90 = sphi 0, %s87
    %s91 = sphi 0, %s90
    %s107 = sphi 0, %s91
  $region4: #{faster_rcnn_forward.4} parent=0 // loop_header_branch
    %12 = sbr.rel (%p10) target = $region8
  $region5: #{faster_rcnn_forward.4} parent=0 // loop_body
    %s14 = ssub.s32 %s9, 1
    %s15 = ssub.s32 %s9, 2
    %s16 = sadd.s32 %s9, 1
    %s17 = ssub.s32 %s9, %s16
    %p18 = scmp.eq.s32.totalorder %s17, 0
    %s20 = sadd.s32 %s19, 1
    %s21 = scalar_select %p18, %s19, %s20
    %p24 = pneg %p18
    %p25 = scmp.eq.s32.totalorder %s9, 1
    %p26 = por %p24, %p25
    %p27 = scmp.ne.s32.totalorder %s19, %s22
    %p28 = scmp.eq.s32.totalorder %s9, 0
    %p29 = por %p27, %p28
    %p30 = scmp.ne.s32.totalorder %s19, %s22
    %p31 = scmp.eq.s32.totalorder %s14, 1
    %p32 = por %p30, %p31
    %p33 = scmp.ne.s32.totalorder %s22, %s23
    %p34 = scmp.eq.s32.totalorder %s14, 0
    %p35 = por %p33, %p34
    %p36 = scmp.ne.s32.totalorder %s22, %s23
    %p37 = scmp.eq.s32.totalorder %s15, 1
    %p38 = por %p36, %p37
    %p40 = scmp.ne.s32.totalorder %s23, %s39
    %p41 = scmp.eq.s32.totalorder %s15, 0
    %p42 = por %p40, %p41
    %s44 = sadd.s32 %s43, 1
    %p47 = scmp.eq.s32.totalorder %s9, 1
    %p48 = scmp.ne.s32.totalorder %s43, %s45
    %p49 = scmp.eq.s32.totalorder %s9, 0
    %p50 = por %p48, %p49
    %p51 = scmp.ne.s32.totalorder %s43, %s45
    %p52 = scmp.eq.s32.totalorder %s14, 1
    %p53 = por %p51, %p52
    %p54 = scmp.ne.s32.totalorder %s45, %s46
    %p55 = scmp.eq.s32.totalorder %s14, 0
    %p56 = por %p54, %p55
    %p57 = scmp.ne.s32.totalorder %s45, %s46
    %p58 = scmp.eq.s32.totalorder %s15, 1
    %p59 = por %p57, %p58
    %p61 = scmp.ne.s32.totalorder %s46, %s60
    %p62 = scmp.eq.s32.totalorder %s15, 0
    %p63 = por %p61, %p62
    %s65 = sadd.s32 %s64, 1
    %p68 = scmp.eq.s32.totalorder %s9, 1
    %p69 = scmp.ne.s32.totalorder %s64, %s66
    %p70 = scmp.eq.s32.totalorder %s9, 0
    %p71 = por %p69, %p70
    %p72 = scmp.ne.s32.totalorder %s64, %s66
    %p73 = scmp.eq.s32.totalorder %s14, 1
    %p74 = por %p72, %p73
    %p75 = scmp.ne.s32.totalorder %s66, %s67
    %p76 = scmp.eq.s32.totalorder %s14, 0
    %p77 = por %p75, %p76
    %p78 = scmp.ne.s32.totalorder %s66, %s67
    %p79 = scmp.eq.s32.totalorder %s15, 1
    %p80 = por %p78, %p79
    %p82 = scmp.ne.s32.totalorder %s67, %s81
    %p83 = scmp.eq.s32.totalorder %s15, 0
    %p84 = por %p82, %p83
    %s85 = ssub.s32 %s9, %s16
    %p86 = scmp.eq.s32.totalorder %s85, 0
    %s88 = sadd.s32 %s87, 1
    %s89 = scalar_select %p86, %s87, %s88
    %p92 = pneg %p86
    %p93 = scmp.eq.s32.totalorder %s9, 1
    %p94 = por %p92, %p93
    %p95 = scmp.ne.s32.totalorder %s87, %s90
    %p96 = scmp.eq.s32.totalorder %s9, 0
    %p97 = por %p95, %p96
    %p98 = scmp.ne.s32.totalorder %s87, %s90
    %p99 = scmp.eq.s32.totalorder %s14, 1
    %p100 = por %p98, %p99
    %p101 = scmp.ne.s32.totalorder %s90, %s91
    %p102 = scmp.eq.s32.totalorder %s14, 0
    %p103 = por %p101, %p102
    %p104 = scmp.ne.s32.totalorder %s90, %s91
    %p105 = scmp.eq.s32.totalorder %s15, 1
    %p106 = por %p104, %p105
    %p108 = scmp.ne.s32.totalorder %s91, %s107
    %p109 = scmp.eq.s32.totalorder %s15, 0
    %p110 = por %p108, %p109
    %p111 = scmp.le.s32.totalorder 1, %s9
    %p112 = scmp.lt.s32.totalorder %s9, 3
    %p113 = pnand %p111, %p112
    %p114 = pneg %p113
    // Predicated region
    $region9: #{faster_rcnn_forward.4} parent=5 // pred_check
      _
    $region10: #{faster_rcnn_forward.4} parent=5 // pred_check_branch
      %116 = sbr.rel (%p113) target = $region12
    $region11: #{faster_rcnn_forward.4} parent=5 // pred_region
      %s117 = ssub.s32 %s9, 1
      // Predicated region
      $region13: #{faster_rcnn_forward.4} parent=11 // pred_check
        %p118 = pneg %p56
      $region14: #{faster_rcnn_forward.4} parent=11 // pred_check_branch
        %120 = sbr.rel (%p118) target = $region16
      $region15: #{faster_rcnn_forward.4} parent=11 // pred_region
        _
      $region16: #{faster_rcnn_forward.4} parent=11 // pred_fallthru
        _
      // Predicated region
      $region17: #{faster_rcnn_forward.4} parent=11 // pred_check
        %p121 = pneg %p77
      $region18: #{faster_rcnn_forward.4} parent=11 // pred_check_branch
        %123 = sbr.rel (%p121) target = $region20
      $region19: #{faster_rcnn_forward.4} parent=11 // pred_region
        _
      $region20: #{faster_rcnn_forward.4} parent=11 // pred_fallthru
        _
    $region12: #{faster_rcnn_forward.4} parent=5 // pred_fallthru
      _
    %p124 = scmp.lt.s32.totalorder %s9, 2
    // Predicated region
    $region21: #{faster_rcnn_forward.4} parent=5 // pred_check
      %p125 = pneg %p124
    $region22: #{faster_rcnn_forward.4} parent=5 // pred_check_branch
      %127 = sbr.rel (%p125) target = $region24
    $region23: #{faster_rcnn_forward.4} parent=5 // pred_region
      // Predicated region
      $region25: #{faster_rcnn_forward.4} parent=23 // pred_check
        %p128 = pneg %p29
      $region26: #{faster_rcnn_forward.4} parent=23 // pred_check_branch
        %130 = sbr.rel (%p128) target = $region28
      $region27: #{faster_rcnn_forward.4} parent=23 // pred_region
        %s131 = smul.u32 12, %s9
        %p132 = scmp.lt.s32.totalorder %s131, 23
        %s133 = scalar_select %p132, %s131, 23
        %s134 = smul.addr %s133, 8
        %s135 = scalar_lea.vmem %s0, %s134
        %s136 = smul.u32 12, %s9
      $region28: #{faster_rcnn_forward.4} parent=23 // pred_fallthru
        _
    $region24: #{faster_rcnn_forward.4} parent=5 // pred_fallthru
      _
    %p137 = scmp.le.s32.totalorder 1, %s9
    %p138 = scmp.lt.s32.totalorder %s9, 3
    %p139 = pnand %p137, %p138
    %p140 = pneg %p139
    // Predicated region
    $region29: #{faster_rcnn_forward.4} parent=5 // pred_check
      _
    $region30: #{faster_rcnn_forward.4} parent=5 // pred_check_branch
      %142 = sbr.rel (%p139) target = $region32
    $region31: #{faster_rcnn_forward.4} parent=5 // pred_region
      %s143 = ssub.s32 %s9, 1
      %s144 = smul.u32 12, %s14
      %p145 = scmp.lt.s32.totalorder %s144, 23
      %s146 = scalar_select %p145, %s144, 23
      %s147 = smul.addr %s146, 8
      %s148 = scalar_lea.vmem %s0, %s147
      %p149 = pneg %p35
      %p150 = pneg %p32
      %p151 = pneg %p56
      %p152 = pneg %p53
      %p153 = pneg %p77
      %p154 = pneg %p74
      %p155 = pneg %p103
      %p156 = pneg %p100
      %s157 = smul.u32 12, %s14
      %p158 = scmp.lt.s32.totalorder %s157, 23
      %s159 = scalar_select %p158, %s157, 23
      %s160 = smul.addr %s159, 8
      %s161 = scalar_lea.vmem %s3, %s160
      %s162 = smul.u32 12, %s14
      %p163 = scmp.lt.s32.totalorder %s162, 23
      %s164 = scalar_select %p163, %s162, 23
      %s165 = smul.addr %s164, 8
      %s166 = scalar_lea.vmem %s0, %s165
      %s167 = smul.u32 12, %s14
      %s168 = smul.u32 12, %s14
      %p169 = scmp.lt.s32.totalorder %s168, 23
      %s170 = scalar_select %p169, %s168, 23
      %s171 = smul.addr %s170, 8
      %s172 = scalar_lea.vmem %s3, %s171
      %s173 = smul.u32 12, %s14
      %v175 = vld [vmem:[%s166] sm:$0xff]
      %v176 = vld [vmem:[%s166 + $0x8] sm:$0xff]
      %v177 = vld [vmem:[%s166 + $0x10] sm:$0xff]
      %v178 = vld [vmem:[%s166 + $0x18] sm:$0xff]
      %v179 = vld [vmem:[%s166 + $0x20] sm:$0xff]
      %v180 = vld [vmem:[%s166 + $0x28] sm:$0xff]
      %v181 = vld [vmem:[%s166 + $0x30] sm:$0xff]
      %v182 = vld [vmem:[%s166 + $0x38] sm:$0xff]
      %v183 = vld [vmem:[%s166 + $0x40] sm:$0xff]
      %v184 = vld [vmem:[%s166 + $0x48] sm:$0xff]
      %v185 = vld [vmem:[%s166 + $0x50] sm:$0xff]
      %v186 = vld [vmem:[%s166 + $0x58] sm:$0xff]
      %v187 = vld [vmem:[%s1] sm:$0xf]
      %v188 = vld [vmem:[%s1 + $0x4] sm:$0xf]
      %v189 = vld [vmem:[%s1 + $0x8] sm:$0xf]
      %v190 = vld [vmem:[%s1 + $0xc] sm:$0x3]
      %v191 = vld [vmem:[%s2] sm:$0x1]
      %v192 = vpack.c.bf16 %v176, %v175
      %v193 = vpack.c.bf16 %v178, %v177
      %v194 = vpack.c.bf16 %v180, %v179
      %v195 = vpack.c.bf16 %v182, %v181
      %v196 = vpack.c.bf16 %v184, %v183
      %v197 = vpack.c.bf16 %v186, %v185
      %v199 = vlaneseq
      %v200 = vshrl.u32 %v199, 7
      %v201 = vsub.s32 0, %v200
      %v202 = vrot.slane %v191, %v201
      %v208 = vunpack.c.l.b16 %v187
      %v209 = vunpack.c.l.b16 %v188
      %v210 = vunpack.c.l.b16 %v189
      %v211 = vunpack.c.l.b16 %v190
      %v212 = vpack.c.b16 %v209, %v208
      %v213 = vpack.c.b16 %v211, %v210
      %vm215 = vcmask 220160
      %v217 = vsel %vm215, %v192, 0
      %v220 = vsel %vm215, %v193, 0
      %v223 = vsel %vm215, %v194, 0
      %v226 = vsel %vm215, %v195, 0
      %v229 = vsel %vm215, %v196, 0
      %v232 = vsel %vm215, %v197, 0
      %vm234 = vcmask 1044480
      %vm235 = vcmask 1045504
      %v236 = vsel %vm234, 4294967295, 65535
      %v237 = vsel %vm235, %v236, 0
      %v239 = vand.u32 %v213, %v237
      %241 = vmatprep.subr.bf16.mxu0 0
      %242 = vmatpush1.bf16.msra.mxu0 %v212
      %243 = vmatprep.subr.bf16.mxu0 0
      %244 = vmatpush1.bf16.msra.mxu0 %v239
      %245 = vmatprep.subr.bf16.mxu0 0
      %246 = vmatpush1.bf16.msra.mxu0 0
      %247 = vmatprep.subr.bf16.mxu0 0
      %248 = vmatpush1.bf16.msra.mxu0 0
      %249 = vmatprep.subr.bf16.mxu0 0
      %250 = vmatpush1.bf16.msra.mxu0 0
      %251 = vmatprep.subr.bf16.mxu0 0
      %252 = vmatpush1.bf16.msra.mxu0 0
      %253 = vmatprep.subr.bf16.mxu0 0
      %254 = vmatpush1.bf16.msra.mxu0 0
      %255 = vmatprep.subr.bf16.mxu0 0
      %256 = vmatpush1.bf16.msra.mxu0 0
      %257 = vmatprep.subr.bf16.mxu0 0
      %258 = vmatpush1.bf16.msra.mxu0 0
      %259 = vmatprep.subr.bf16.mxu0 0
      %260 = vmatpush1.bf16.msra.mxu0 0
      %261 = vmatprep.subr.bf16.mxu0 0
      %262 = vmatpush1.bf16.msra.mxu0 0
      %263 = vmatprep.subr.bf16.mxu0 0
      %264 = vmatpush1.bf16.msra.mxu0 0
      %265 = vmatprep.subr.bf16.mxu0 0
      %266 = vmatpush1.bf16.msra.mxu0 0
      %267 = vmatprep.subr.bf16.mxu0 0
      %268 = vmatpush1.bf16.msra.mxu0 0
      %269 = vmatprep.subr.bf16.mxu0 0
      %270 = vmatpush1.bf16.msra.mxu0 0
      %271 = vmatprep.subr.bf16.mxu0 0
      %272 = vmatpush1.bf16.msra.mxu0 0
      %273 = vmatprep.mubr.bf16.mxu0 0
      %274 = vmatmul.mubr.bf16.gmra.mrb[0].mxu0 %v217
      %v275 = vpop.f32.mrb[0].mxu0
      %v276 = vadd.f32 %v202, %v275
      %v277 = vpop.f32.mrb[0].mxu0
      %v278 = vpop.f32.mrb[0].mxu0
      %v279 = vadd.f32 %v202, %v278
      %v280 = vpop.f32.mrb[0].mxu0
      %281 = vmatprep.mubr.bf16.mxu0 0
      %282 = vmatmul.mubr.bf16.gmra.mrb[0].mxu0 %v220
      %v283 = vpop.f32.mrb[0].mxu0
      %v284 = vadd.f32 %v202, %v283
      %v285 = vpop.f32.mrb[0].mxu0
      %v286 = vpop.f32.mrb[0].mxu0
      %v287 = vadd.f32 %v202, %v286
      %v288 = vpop.f32.mrb[0].mxu0
      %289 = vmatprep.mubr.bf16.mxu0 0
      %290 = vmatmul.mubr.bf16.gmra.mrb[0].mxu0 %v223
      %v291 = vpop.f32.mrb[0].mxu0
      %v292 = vadd.f32 %v202, %v291
      %v293 = vpop.f32.mrb[0].mxu0
      %v294 = vpop.f32.mrb[0].mxu0
      %v295 = vadd.f32 %v202, %v294
      %v296 = vpop.f32.mrb[0].mxu0
      %297 = vmatprep.mubr.bf16.mxu0 0
      %298 = vmatmul.mubr.bf16.gmra.mrb[0].mxu0 %v226
      %v299 = vpop.f32.mrb[0].mxu0
      %v300 = vadd.f32 %v202, %v299
      %v301 = vpop.f32.mrb[0].mxu0
      %v302 = vpop.f32.mrb[0].mxu0
      %v303 = vadd.f32 %v202, %v302
      %v304 = vpop.f32.mrb[0].mxu0
      %305 = vmatprep.mubr.bf16.mxu0 0
      %306 = vmatmul.mubr.bf16.gmra.mrb[0].mxu0 %v229
      %v307 = vpop.f32.mrb[0].mxu0
      %v308 = vadd.f32 %v202, %v307
      %v309 = vpop.f32.mrb[0].mxu0
      %v310 = vpop.f32.mrb[0].mxu0
      %v311 = vadd.f32 %v202, %v310
      %v312 = vpop.f32.mrb[0].mxu0
      %313 = vmatprep.mubr.bf16.mxu0 0
      %314 = vmatmul.mubr.bf16.gmra.mrb[0].mxu0 %v232
      %v315 = vpop.f32.mrb[0].mxu0
      %v316 = vadd.f32 %v202, %v315
      %v317 = vpop.f32.mrb[0].mxu0
      %v318 = vpop.f32.mrb[0].mxu0
      %v319 = vadd.f32 %v202, %v318
      %v320 = vpop.f32.mrb[0].mxu0
      %321 = vdwg.mxu0
      %v322 = vmax.f32 %v276, 0.0
      %v323 = vmax.f32 %v279, 0.0
      %v324 = vmax.f32 %v284, 0.0
      %v325 = vmax.f32 %v287, 0.0
      %v326 = vmax.f32 %v292, 0.0
      %v327 = vmax.f32 %v295, 0.0
      %v328 = vmax.f32 %v300, 0.0
      %v329 = vmax.f32 %v303, 0.0
      %v330 = vmax.f32 %v308, 0.0
      %v331 = vmax.f32 %v311, 0.0
      %v332 = vmax.f32 %v316, 0.0
      %v333 = vmax.f32 %v319, 0.0
      %vm334 = vcmask 261120
      %335 = vst.msk [vmem:[%s172] sm:$0xff] %vm334, %v322
      %336 = vst.msk [vmem:[%s172 + $0x8] sm:$0xff] %vm334, %v323
      %337 = vst.msk [vmem:[%s172 + $0x10] sm:$0xff] %vm334, %v324
      %338 = vst.msk [vmem:[%s172 + $0x18] sm:$0xff] %vm334, %v325
      %339 = vst.msk [vmem:[%s172 + $0x20] sm:$0xff] %vm334, %v326
      %340 = vst.msk [vmem:[%s172 + $0x28] sm:$0xff] %vm334, %v327
      %341 = vst.msk [vmem:[%s172 + $0x30] sm:$0xff] %vm334, %v328
      %342 = vst.msk [vmem:[%s172 + $0x38] sm:$0xff] %vm334, %v329
      %343 = vst.msk [vmem:[%s172 + $0x40] sm:$0xff] %vm334, %v330
      %344 = vst.msk [vmem:[%s172 + $0x48] sm:$0xff] %vm334, %v331
      %345 = vst.msk [vmem:[%s172 + $0x50] sm:$0xff] %vm334, %v332
      %346 = vst.msk [vmem:[%s172 + $0x58] sm:$0xff] %vm334, %v333
      %s347 = smul.u32 12, %s14
      %p348 = scmp.lt.s32.totalorder %s347, 23
      %s349 = scalar_select %p348, %s347, 23
      %s350 = smul.addr %s349, 8
      %s351 = scalar_lea.vmem %s3, %s350
      // Predicated region
      $region33: #{faster_rcnn_forward.4} parent=31 // pred_check
        %p352 = pneg %p100
      $region34: #{faster_rcnn_forward.4} parent=31 // pred_check_branch
        %354 = sbr.rel (%p352) target = $region36
      $region35: #{faster_rcnn_forward.4} parent=31 // pred_region
        %s355 = smul.u32 12, %s14
      $region36: #{faster_rcnn_forward.4} parent=31 // pred_fallthru
        _
    $region32: #{faster_rcnn_forward.4} parent=5 // pred_fallthru
      _
    %p356 = scmp.le.s32.totalorder 2, %s9
    // Predicated region
    $region37: #{faster_rcnn_forward.4} parent=5 // pred_check
      %p357 = pneg %p356
    $region38: #{faster_rcnn_forward.4} parent=5 // pred_check_branch
      %359 = sbr.rel (%p357) target = $region40
    $region39: #{faster_rcnn_forward.4} parent=5 // pred_region
      %s360 = ssub.s32 %s9, 2
      // Predicated region
      $region41: #{faster_rcnn_forward.4} parent=39 // pred_check
        %p361 = pneg %p106
      $region42: #{faster_rcnn_forward.4} parent=39 // pred_check_branch
        %363 = sbr.rel (%p361) target = $region44
      $region43: #{faster_rcnn_forward.4} parent=39 // pred_region
        %s364 = smul.u32 12, %s15
        %p365 = scmp.lt.s32.totalorder %s364, 23
        %s366 = scalar_select %p365, %s364, 23
        %s367 = smul.addr %s366, 8
        %s368 = scalar_lea.vmem %s3, %s367
      $region44: #{faster_rcnn_forward.4} parent=39 // pred_fallthru
        _
    $region40: #{faster_rcnn_forward.4} parent=5 // pred_fallthru
      _
  $region6: #{faster_rcnn_forward.4} parent=0 // loop_footer
    %s13 = sadd.s32 1, %s9
  $region7: #{faster_rcnn_forward.4} parent=0 // loop_footer_branch
    %8 = sbr.rel target = $region3
  $region8: #{faster_rcnn_forward.4} parent=0 // loop_exit
    _

// kernel: faster_rcnn_forward.5
$region0: #{faster_rcnn_forward.5}
  #allocation0 [shape = 'u32[]', space=smem, size = 0x4, offset = 0x4, fixed_abs, tag = 'smem constant byte address 0x4 - core index']
  #allocation1 [shape = 'u32[144,128]{1,0:T(1,128)}', space=vmem, size = 0x12000, scoped, tag = 'internal scratch']
  %s0 = inlined_call_operand.vmem [shape: f32[192,288], index: 0, kind: input, shape index: {}]
  %s1 = inlined_call_operand.vmem [shape: bf16[288,32], index: 1, kind: input, shape index: {}]
  %s2 = inlined_call_operand.vmem [shape: f32[1,32], index: 2, kind: input, shape index: {}]
  %s3 = inlined_call_operand.vmem [shape: bf16[32,128], index: 3, kind: input, shape index: {}]
  %s4 = inlined_call_operand.vmem [shape: f32[1,128], index: 4, kind: input, shape index: {}]
  %s5 = inlined_call_operand.vmem [shape: f32[192,3], index: 5, kind: output, shape index: {}]
  %s6 = sld [smem:[#allocation0]]
  $region53: #{faster_rcnn_forward.5} parent=0
    _
  %s8 = ssub.s32 1, %s6
  %s9 = scalar_select 0, %s8, %s6
  loop: start=0, step=1, limit=4
  $region2: #{faster_rcnn_forward.5} parent=0 // loop_pre_header
    _
  $region3: #{faster_rcnn_forward.5} parent=0 // loop_header
    %s11 = sphi 0, %s15
    %p12 = scmp.ge.s32.totalorder %s11, 4
    %s21 = sphi 0, %s23
    %s24 = sphi 0, %s21
    %s25 = sphi 0, %s24
    %s41 = sphi 0, %s25
    %s45 = sphi 0, %s45
    %s47 = sphi 0, %s45
    %s48 = sphi 0, %s47
    %s62 = sphi 0, %s48
    %s66 = sphi 0, %s66
    %s68 = sphi 0, %s66
    %s69 = sphi 0, %s68
    %s83 = sphi 0, %s69
    %s87 = sphi 0, %s87
    %s89 = sphi 0, %s87
    %s90 = sphi 0, %s89
    %s104 = sphi 0, %s90
    %s108 = sphi 0, %s108
    %s110 = sphi 0, %s108
    %s111 = sphi 0, %s110
    %s125 = sphi 0, %s111
    %s131 = sphi 0, %s133
    %s134 = sphi 0, %s131
    %s135 = sphi 0, %s134
    %s151 = sphi 0, %s135
  $region4: #{faster_rcnn_forward.5} parent=0 // loop_header_branch
    %14 = sbr.rel (%p12) target = $region8
  $region5: #{faster_rcnn_forward.5} parent=0 // loop_body
    %s16 = ssub.s32 %s11, 1
    %s17 = ssub.s32 %s11, 2
    %s18 = sadd.s32 %s11, 1
    %s19 = ssub.s32 %s11, %s18
    %p20 = scmp.eq.s32.totalorder %s19, 0
    %s22 = sadd.s32 %s21, 1
    %s23 = scalar_select %p20, %s21, %s22
    %p26 = pneg %p20
    %p27 = scmp.eq.s32.totalorder %s11, 1
    %p28 = por %p26, %p27
    %p29 = scmp.ne.s32.totalorder %s21, %s24
    %p30 = scmp.eq.s32.totalorder %s11, 0
    %p31 = por %p29, %p30
    %p32 = scmp.ne.s32.totalorder %s21, %s24
    %p33 = scmp.eq.s32.totalorder %s16, 1
    %p34 = por %p32, %p33
    %p35 = scmp.ne.s32.totalorder %s24, %s25
    %p36 = scmp.eq.s32.totalorder %s16, 0
    %p37 = por %p35, %p36
    %p38 = scmp.ne.s32.totalorder %s24, %s25
    %p39 = scmp.eq.s32.totalorder %s17, 1
    %p40 = por %p38, %p39
    %p42 = scmp.ne.s32.totalorder %s25, %s41
    %p43 = scmp.eq.s32.totalorder %s17, 0
    %p44 = por %p42, %p43
    %s46 = sadd.s32 %s45, 1
    %p49 = scmp.eq.s32.totalorder %s11, 1
    %p50 = scmp.ne.s32.totalorder %s45, %s47
    %p51 = scmp.eq.s32.totalorder %s11, 0
    %p52 = por %p50, %p51
    %p53 = scmp.ne.s32.totalorder %s45, %s47
    %p54 = scmp.eq.s32.totalorder %s16, 1
    %p55 = por %p53, %p54
    %p56 = scmp.ne.s32.totalorder %s47, %s48
    %p57 = scmp.eq.s32.totalorder %s16, 0
    %p58 = por %p56, %p57
    %p59 = scmp.ne.s32.totalorder %s47, %s48
    %p60 = scmp.eq.s32.totalorder %s17, 1
    %p61 = por %p59, %p60
    %p63 = scmp.ne.s32.totalorder %s48, %s62
    %p64 = scmp.eq.s32.totalorder %s17, 0
    %p65 = por %p63, %p64
    %s67 = sadd.s32 %s66, 1
    %p70 = scmp.eq.s32.totalorder %s11, 1
    %p71 = scmp.ne.s32.totalorder %s66, %s68
    %p72 = scmp.eq.s32.totalorder %s11, 0
    %p73 = por %p71, %p72
    %p74 = scmp.ne.s32.totalorder %s66, %s68
    %p75 = scmp.eq.s32.totalorder %s16, 1
    %p76 = por %p74, %p75
    %p77 = scmp.ne.s32.totalorder %s68, %s69
    %p78 = scmp.eq.s32.totalorder %s16, 0
    %p79 = por %p77, %p78
    %p80 = scmp.ne.s32.totalorder %s68, %s69
    %p81 = scmp.eq.s32.totalorder %s17, 1
    %p82 = por %p80, %p81
    %p84 = scmp.ne.s32.totalorder %s69, %s83
    %p85 = scmp.eq.s32.totalorder %s17, 0
    %p86 = por %p84, %p85
    %s88 = sadd.s32 %s87, 1
    %p91 = scmp.eq.s32.totalorder %s11, 1
    %p92 = scmp.ne.s32.totalorder %s87, %s89
    %p93 = scmp.eq.s32.totalorder %s11, 0
    %p94 = por %p92, %p93
    %p95 = scmp.ne.s32.totalorder %s87, %s89
    %p96 = scmp.eq.s32.totalorder %s16, 1
    %p97 = por %p95, %p96
    %p98 = scmp.ne.s32.totalorder %s89, %s90
    %p99 = scmp.eq.s32.totalorder %s16, 0
    %p100 = por %p98, %p99
    %p101 = scmp.ne.s32.totalorder %s89, %s90
    %p102 = scmp.eq.s32.totalorder %s17, 1
    %p103 = por %p101, %p102
    %p105 = scmp.ne.s32.totalorder %s90, %s104
    %p106 = scmp.eq.s32.totalorder %s17, 0
    %p107 = por %p105, %p106
    %s109 = sadd.s32 %s108, 1
    %p112 = scmp.eq.s32.totalorder %s11, 1
    %p113 = scmp.ne.s32.totalorder %s108, %s110
    %p114 = scmp.eq.s32.totalorder %s11, 0
    %p115 = por %p113, %p114
    %p116 = scmp.ne.s32.totalorder %s108, %s110
    %p117 = scmp.eq.s32.totalorder %s16, 1
    %p118 = por %p116, %p117
    %p119 = scmp.ne.s32.totalorder %s110, %s111
    %p120 = scmp.eq.s32.totalorder %s16, 0
    %p121 = por %p119, %p120
    %p122 = scmp.ne.s32.totalorder %s110, %s111
    %p123 = scmp.eq.s32.totalorder %s17, 1
    %p124 = por %p122, %p123
    %p126 = scmp.ne.s32.totalorder %s111, %s125
    %p127 = scmp.eq.s32.totalorder %s17, 0
    %p128 = por %p126, %p127
    %s129 = ssub.s32 %s11, %s18
    %p130 = scmp.eq.s32.totalorder %s129, 0
    %s132 = sadd.s32 %s131, 1
    %s133 = scalar_select %p130, %s131, %s132
    %p136 = pneg %p130
    %p137 = scmp.eq.s32.totalorder %s11, 1
    %p138 = por %p136, %p137
    %p139 = scmp.ne.s32.totalorder %s131, %s134
    %p140 = scmp.eq.s32.totalorder %s11, 0
    %p141 = por %p139, %p140
    %p142 = scmp.ne.s32.totalorder %s131, %s134
    %p143 = scmp.eq.s32.totalorder %s16, 1
    %p144 = por %p142, %p143
    %p145 = scmp.ne.s32.totalorder %s134, %s135
    %p146 = scmp.eq.s32.totalorder %s16, 0
    %p147 = por %p145, %p146
    %p148 = scmp.ne.s32.totalorder %s134, %s135
    %p149 = scmp.eq.s32.totalorder %s17, 1
    %p150 = por %p148, %p149
    %p152 = scmp.ne.s32.totalorder %s135, %s151
    %p153 = scmp.eq.s32.totalorder %s17, 0
    %p154 = por %p152, %p153
    %p155 = scmp.le.s32.totalorder 1, %s11
    %p156 = scmp.lt.s32.totalorder %s11, 3
    %p157 = pnand %p155, %p156
    %p158 = pneg %p157
    // Predicated region
    $region9: #{faster_rcnn_forward.5} parent=5 // pred_check
      _
    $region10: #{faster_rcnn_forward.5} parent=5 // pred_check_branch
      %160 = sbr.rel (%p157) target = $region12
    $region11: #{faster_rcnn_forward.5} parent=5 // pred_region
      %s161 = ssub.s32 %s11, 1
      // Predicated region
      $region13: #{faster_rcnn_forward.5} parent=11 // pred_check
        %p162 = pneg %p58
      $region14: #{faster_rcnn_forward.5} parent=11 // pred_check_branch
        %164 = sbr.rel (%p162) target = $region16
      $region15: #{faster_rcnn_forward.5} parent=11 // pred_region
        _
      $region16: #{faster_rcnn_forward.5} parent=11 // pred_fallthru
        _
      // Predicated region
      $region17: #{faster_rcnn_forward.5} parent=11 // pred_check
        %p165 = pneg %p79
      $region18: #{faster_rcnn_forward.5} parent=11 // pred_check_branch
        %167 = sbr.rel (%p165) target = $region20
      $region19: #{faster_rcnn_forward.5} parent=11 // pred_region
        _
      $region20: #{faster_rcnn_forward.5} parent=11 // pred_fallthru
        _
      // Predicated region
      $region21: #{faster_rcnn_forward.5} parent=11 // pred_check
        %p168 = pneg %p100
      $region22: #{faster_rcnn_forward.5} parent=11 // pred_check_branch
        %170 = sbr.rel (%p168) target = $region24
      $region23: #{faster_rcnn_forward.5} parent=11 // pred_region
        _
      $region24: #{faster_rcnn_forward.5} parent=11 // pred_fallthru
        _
      // Predicated region
      $region25: #{faster_rcnn_forward.5} parent=11 // pred_check
        %p171 = pneg %p121
      $region26: #{faster_rcnn_forward.5} parent=11 // pred_check_branch
        %173 = sbr.rel (%p171) target = $region28
      $region27: #{faster_rcnn_forward.5} parent=11 // pred_region
        _
      $region28: #{faster_rcnn_forward.5} parent=11 // pred_fallthru
        _
    $region12: #{faster_rcnn_forward.5} parent=5 // pred_fallthru
      _
    %p174 = scmp.lt.s32.totalorder %s11, 2
    // Predicated region
    $region29: #{faster_rcnn_forward.5} parent=5 // pred_check
      %p175 = pneg %p174
    $region30: #{faster_rcnn_forward.5} parent=5 // pred_check_branch
      %177 = sbr.rel (%p175) target = $region32
    $region31: #{faster_rcnn_forward.5} parent=5 // pred_region
      // Predicated region
      $region33: #{faster_rcnn_forward.5} parent=31 // pred_check
        %p178 = pneg %p31
      $region34: #{faster_rcnn_forward.5} parent=31 // pred_check_branch
        %180 = sbr.rel (%p178) target = $region36
      $region35: #{faster_rcnn_forward.5} parent=31 // pred_region
        %s181 = smul.u32 12, %s11
        %p182 = scmp.lt.s32.totalorder %s181, 23
        %s183 = scalar_select %p182, %s181, 23
        %s184 = smul.addr %s183, 3
        %s185 = smul.addr %s184, 8
        %s186 = scalar_lea.vmem %s0, %s185
        %s187 = smul.u32 12, %s11
      $region36: #{faster_rcnn_forward.5} parent=31 // pred_fallthru
        _
    $region32: #{faster_rcnn_forward.5} parent=5 // pred_fallthru
      _
    %p188 = scmp.le.s32.totalorder 1, %s11
    %p189 = scmp.lt.s32.totalorder %s11, 3
    %p190 = pnand %p188, %p189
    %p191 = pneg %p190
    // Predicated region
    $region37: #{faster_rcnn_forward.5} parent=5 // pred_check
      _
    $region38: #{faster_rcnn_forward.5} parent=5 // pred_check_branch
      %193 = sbr.rel (%p190) target = $region40
    $region39: #{faster_rcnn_forward.5} parent=5 // pred_region
      %s194 = ssub.s32 %s11, 1
      %s195 = smul.u32 12, %s16
      %p196 = scmp.lt.s32.totalorder %s195, 23
      %s197 = scalar_select %p196, %s195, 23
      %s198 = smul.addr %s197, 3
      %s199 = smul.addr %s198, 8
      %s200 = scalar_lea.vmem %s0, %s199
      %p201 = pneg %p37
      %p202 = pneg %p34
      %p203 = pneg %p58
      %p204 = pneg %p55
      %p205 = pneg %p79
      %p206 = pneg %p76
      %p207 = pneg %p100
      %p208 = pneg %p97
      %p209 = pneg %p121
      %p210 = pneg %p118
      %p211 = pneg %p147
      %p212 = pneg %p144
      %s213 = smul.u32 12, %s16
      %p214 = scmp.lt.s32.totalorder %s213, 23
      %s215 = scalar_select %p214, %s213, 23
      %s216 = smul.addr %s215, 8
      %s217 = scalar_lea.vmem %s5, %s216
      %s218 = smul.u32 12, %s16
      %p219 = scmp.lt.s32.totalorder %s218, 23
      %s220 = scalar_select %p219, %s218, 23
      %s221 = smul.addr %s220, 3
      %s222 = smul.addr %s221, 8
      %s223 = scalar_lea.vmem %s0, %s222
      %s224 = smul.u32 12, %s16
      %s225 = smul.u32 12, %s16
      %p226 = scmp.lt.s32.totalorder %s225, 23
      %s227 = scalar_select %p226, %s225, 23
      %s228 = smul.addr %s227, 8
      %s229 = scalar_lea.vmem %s5, %s228
      %s230 = smul.u32 12, %s16
      %v232 = vld [vmem:[%s223] sm:$0xff]
      %v233 = vld [vmem:[%s223 + $0x8] sm:$0xff]
      %v234 = vld [vmem:[%s223 + $0x10] sm:$0xff]
      %v235 = vld [vmem:[%s223 + $0x18] sm:$0xff]
      %v236 = vld [vmem:[%s223 + $0x20] sm:$0xff]
      %v237 = vld [vmem:[%s223 + $0x28] sm:$0xff]
      %v238 = vld [vmem:[%s223 + $0x30] sm:$0xff]
      %v239 = vld [vmem:[%s223 + $0x38] sm:$0xff]
      %v240 = vld [vmem:[%s223 + $0x40] sm:$0xff]
      %v241 = vld [vmem:[%s223 + $0x48] sm:$0xff]
      %v242 = vld [vmem:[%s223 + $0x50] sm:$0xff]
      %v243 = vld [vmem:[%s223 + $0x58] sm:$0xff]
      %v244 = vld [vmem:[%s223 + $0x60] sm:$0xff]
      %v245 = vld [vmem:[%s223 + $0x68] sm:$0xff]
      %v246 = vld [vmem:[%s223 + $0x70] sm:$0xff]
      %v247 = vld [vmem:[%s223 + $0x78] sm:$0xff]
      %v248 = vld [vmem:[%s223 + $0x80] sm:$0xff]
      %v249 = vld [vmem:[%s223 + $0x88] sm:$0xff]
      %v250 = vld [vmem:[%s223 + $0x90] sm:$0xff]
      %v251 = vld [vmem:[%s223 + $0x98] sm:$0xff]
      %v252 = vld [vmem:[%s223 + $0xa0] sm:$0xff]
      %v253 = vld [vmem:[%s223 + $0xa8] sm:$0xff]
      %v254 = vld [vmem:[%s223 + $0xb0] sm:$0xff]
      %v255 = vld [vmem:[%s223 + $0xb8] sm:$0xff]
      %v256 = vld [vmem:[%s223 + $0xc0] sm:$0xff]
      %v257 = vld [vmem:[%s223 + $0xc8] sm:$0xff]
      %v258 = vld [vmem:[%s223 + $0xd0] sm:$0xff]
      %v259 = vld [vmem:[%s223 + $0xd8] sm:$0xff]
      %v260 = vld [vmem:[%s223 + $0xe0] sm:$0xff]
      %v261 = vld [vmem:[%s223 + $0xe8] sm:$0xff]
      %v262 = vld [vmem:[%s223 + $0xf0] sm:$0xff]
      %v263 = vld [vmem:[%s223 + $0xf8] sm:$0xff]
      %v264 = vld [vmem:[%s223 + $0x100] sm:$0xff]
      %v265 = vld [vmem:[%s223 + $0x108] sm:$0xff]
      %v266 = vld [vmem:[%s223 + $0x110] sm:$0xff]
      %v267 = vld [vmem:[%s223 + $0x118] sm:$0xff]
      %v268 = vld [vmem:[%s1] sm:$0xf]
      %v269 = vld [vmem:[%s1 + $0x4] sm:$0xf]
      %v270 = vld [vmem:[%s1 + $0x8] sm:$0xf]
      %v271 = vld [vmem:[%s1 + $0xc] sm:$0xf]
      %v272 = vld [vmem:[%s1 + $0x10] sm:$0xf]
      %v273 = vld [vmem:[%s1 + $0x14] sm:$0xf]
      %v274 = vld [vmem:[%s1 + $0x18] sm:$0xf]
      %v275 = vld [vmem:[%s1 + $0x1c] sm:$0xf]
      %v276 = vld [vmem:[%s1 + $0x20] sm:$0xf]
      %v277 = vld [vmem:[%s1 + $0x24] sm:$0xf]
      %v278 = vld [vmem:[%s1 + $0x28] sm:$0xf]
      %v279 = vld [vmem:[%s1 + $0x2c] sm:$0xf]
      %v280 = vld [vmem:[%s1 + $0x30] sm:$0xf]
      %v281 = vld [vmem:[%s1 + $0x34] sm:$0xf]
      %v282 = vld [vmem:[%s1 + $0x38] sm:$0xf]
      %v283 = vld [vmem:[%s1 + $0x3c] sm:$0xf]
      %v284 = vld [vmem:[%s1 + $0x40] sm:$0xf]
      %v285 = vld [vmem:[%s1 + $0x44] sm:$0xf]
      %v286 = vld [vmem:[%s1 + $0x48] sm:$0xf]
      %v287 = vld [vmem:[%s1 + $0x4c] sm:$0xf]
      %v288 = vld [vmem:[%s1 + $0x50] sm:$0xf]
      %v289 = vld [vmem:[%s1 + $0x54] sm:$0xf]
      %v290 = vld [vmem:[%s1 + $0x58] sm:$0xf]
      %v291 = vld [vmem:[%s1 + $0x5c] sm:$0xf]
      %v292 = vld [vmem:[%s1 + $0x60] sm:$0xf]
      %v293 = vld [vmem:[%s1 + $0x64] sm:$0xf]
      %v294 = vld [vmem:[%s1 + $0x68] sm:$0xf]
      %v295 = vld [vmem:[%s1 + $0x6c] sm:$0xf]
      %v296 = vld [vmem:[%s1 + $0x70] sm:$0xf]
      %v297 = vld [vmem:[%s1 + $0x74] sm:$0xf]
      %v298 = vld [vmem:[%s1 + $0x78] sm:$0xf]
      %v299 = vld [vmem:[%s1 + $0x7c] sm:$0xf]
      %v300 = vld [vmem:[%s1 + $0x80] sm:$0xf]
      %v301 = vld [vmem:[%s1 + $0x84] sm:$0xf]
      %v302 = vld [vmem:[%s1 + $0x88] sm:$0xf]
      %v303 = vld [vmem:[%s1 + $0x8c] sm:$0xf]
      %v304 = vld [vmem:[%s2] sm:$0x1]
      %v305 = vpack.c.bf16 %v235, %v232
      %v306 = vpack.c.bf16 %v236, %v233
      %v307 = vpack.c.bf16 %v237, %v234
      %v308 = vpack.c.bf16 %v241, %v238
      %v309 = vpack.c.bf16 %v242, %v239
      %v310 = vpack.c.bf16 %v243, %v240
      %v311 = vpack.c.bf16 %v247, %v244
      %v312 = vpack.c.bf16 %v248, %v245
      %v313 = vpack.c.bf16 %v249, %v246
      %v314 = vpack.c.bf16 %v253, %v250
      %v315 = vpack.c.bf16 %v254, %v251
      %v316 = vpack.c.bf16 %v255, %v252
      %v317 = vpack.c.bf16 %v259, %v256
      %v318 = vpack.c.bf16 %v260, %v257
      %v319 = vpack.c.bf16 %v261, %v258
      %v320 = vpack.c.bf16 %v265, %v262
      %v321 = vpack.c.bf16 %v266, %v263
      %v322 = vpack.c.bf16 %v267, %v264
      %v324 = vlaneseq
      %v325 = vshrl.u32 %v324, 7
      %v326 = vsub.s32 0, %v325
      %v327 = vrot.slane %v304, %v326
      %v365 = vunpack.c.l.b16 %v268
      %v366 = vunpack.c.l.b16 %v269
      %v367 = vunpack.c.l.b16 %v270
      %v368 = vunpack.c.l.b16 %v271
      %v369 = vunpack.c.l.b16 %v272
      %v370 = vunpack.c.l.b16 %v273
      %v371 = vunpack.c.l.b16 %v274
      %v372 = vunpack.c.l.b16 %v275
      %v373 = vunpack.c.l.b16 %v276
      %v374 = vunpack.c.l.b16 %v277
      %v375 = vunpack.c.l.b16 %v278
      %v376 = vunpack.c.l.b16 %v279
      %v377 = vunpack.c.l.b16 %v280
      %v378 = vunpack.c.l.b16 %v281
      %v379 = vunpack.c.l.b16 %v282
      %v380 = vunpack.c.l.b16 %v283
      %v381 = vunpack.c.l.b16 %v284
      %v382 = vunpack.c.l.b16 %v285
      %v383 = vunpack.c.l.b16 %v286
      %v384 = vunpack.c.l.b16 %v287
      %v385 = vunpack.c.l.b16 %v288
      %v386 = vunpack.c.l.b16 %v289
      %v387 = vunpack.c.l.b16 %v290
      %v388 = vunpack.c.l.b16 %v291
      %v389 = vunpack.c.l.b16 %v292
      %v390 = vunpack.c.l.b16 %v293
      %v391 = vunpack.c.l.b16 %v294
      %v392 = vunpack.c.l.b16 %v295
      %v393 = vunpack.c.l.b16 %v296
      %v394 = vunpack.c.l.b16 %v297
      %v395 = vunpack.c.l.b16 %v298
      %v396 = vunpack.c.l.b16 %v299
      %v397 = vunpack.c.l.b16 %v300
      %v398 = vunpack.c.l.b16 %v301
      %v399 = vunpack.c.l.b16 %v302
      %v400 = vunpack.c.l.b16 %v303
      %v401 = vpack.c.b16 %v366, %v365
      %v402 = vpack.c.b16 %v368, %v367
      %v403 = vpack.c.b16 %v370, %v369
      %v404 = vpack.c.b16 %v372, %v371
      %v405 = vpack.c.b16 %v374, %v373
      %v406 = vpack.c.b16 %v376, %v375
      %v407 = vpack.c.b16 %v378, %v377
      %v408 = vpack.c.b16 %v380, %v379
      %v409 = vpack.c.b16 %v382, %v381
      %v410 = vpack.c.b16 %v384, %v383
      %v411 = vpack.c.b16 %v386, %v385
      %v412 = vpack.c.b16 %v388, %v387
      %v413 = vpack.c.b16 %v390, %v389
      %v414 = vpack.c.b16 %v392, %v391
      %v415 = vpack.c.b16 %v394, %v393
      %v416 = vpack.c.b16 %v396, %v395
      %v417 = vpack.c.b16 %v398, %v397
      %v418 = vpack.c.b16 %v400, %v399
      %vm437 = vcmask 261120
      %v439 = vsel %vm437, %v307, 0
      %v442 = vsel %vm437, %v310, 0
      %v445 = vsel %vm437, %v313, 0
      %v448 = vsel %vm437, %v316, 0
      %v451 = vsel %vm437, %v319, 0
      %v454 = vsel %vm437, %v322, 0
      %456 = vmatprep.subr.bf16.mxu0 0
      %457 = vmatpush1.bf16.msra.mxu0 %v401
      %458 = vmatprep.subr.bf16.mxu0 0
      %459 = vmatpush1.bf16.msra.mxu0 %v402
      %460 = vmatprep.subr.bf16.mxu0 0
      %461 = vmatpush1.bf16.msra.mxu0 %v403
      %462 = vmatprep.subr.bf16.mxu0 0
      %463 = vmatpush1.bf16.msra.mxu0 %v404
      %464 = vmatprep.subr.bf16.mxu0 0
      %465 = vmatpush1.bf16.msra.mxu0 %v405
      %466 = vmatprep.subr.bf16.mxu0 0
      %467 = vmatpush1.bf16.msra.mxu0 %v406
      %468 = vmatprep.subr.bf16.mxu0 0
      %469 = vmatpush1.bf16.msra.mxu0 %v407
      %470 = vmatprep.subr.bf16.mxu0 0
      %471 = vmatpush1.bf16.msra.mxu0 %v408
      %472 = vmatprep.subr.bf16.mxu0 0
      %473 = vmatpush1.bf16.msra.mxu0 %v409
      %474 = vmatprep.subr.bf16.mxu0 0
      %475 = vmatpush1.bf16.msra.mxu0 %v410
      %476 = vmatprep.subr.bf16.mxu0 0
      %477 = vmatpush1.bf16.msra.mxu0 %v411
      %478 = vmatprep.subr.bf16.mxu0 0
      %479 = vmatpush1.bf16.msra.mxu0 %v412
      %480 = vmatprep.subr.bf16.mxu0 0
      %481 = vmatpush1.bf16.msra.mxu0 %v413
      %482 = vmatprep.subr.bf16.mxu0 0
      %483 = vmatpush1.bf16.msra.mxu0 %v414
      %484 = vmatprep.subr.bf16.mxu0 0
      %485 = vmatpush1.bf16.msra.mxu0 %v415
      %486 = vmatprep.subr.bf16.mxu0 0
      %487 = vmatpush1.bf16.msra.mxu0 %v416
      %488 = vmatprep.mubr.bf16.mxu0 %v306
      %489 = vmatmul.mubr.bf16.gmra.mrb[0].mxu0 %v305
      %v490 = vpop.f32.mrb[0].mxu0
      %v491 = vadd.f32 %v327, %v490
      %v492 = vpop.f32.mrb[0].mxu0
      %v493 = vpop.f32.mrb[0].mxu0
      %v494 = vadd.f32 %v327, %v493
      %v495 = vpop.f32.mrb[0].mxu0
      %496 = vmatprep.mubr.bf16.mxu0 %v309
      %497 = vmatmul.mubr.bf16.gmra.mrb[0].mxu0 %v308
      %v498 = vpop.f32.mrb[0].mxu0
      %v499 = vadd.f32 %v327, %v498
      %v500 = vpop.f32.mrb[0].mxu0
      %v501 = vpop.f32.mrb[0].mxu0
      %v502 = vadd.f32 %v327, %v501
      %v503 = vpop.f32.mrb[0].mxu0
      %504 = vmatprep.mubr.bf16.mxu0 %v312
      %505 = vmatmul.mubr.bf16.gmra.mrb[0].mxu0 %v311
      %v506 = vpop.f32.mrb[0].mxu0
      %v507 = vadd.f32 %v327, %v506
      %v508 = vpop.f32.mrb[0].mxu0
      %v509 = vpop.f32.mrb[0].mxu0
      %v510 = vadd.f32 %v327, %v509
      %v511 = vpop.f32.mrb[0].mxu0
      %512 = vmatprep.mubr.bf16.mxu0 %v315
      %513 = vmatmul.mubr.bf16.gmra.mrb[0].mxu0 %v314
      %v514 = vpop.f32.mrb[0].mxu0
      %v515 = vadd.f32 %v327, %v514
      %v516 = vpop.f32.mrb[0].mxu0
      %v517 = vpop.f32.mrb[0].mxu0
      %v518 = vadd.f32 %v327, %v517
      %v519 = vpop.f32.mrb[0].mxu0
      %520 = vmatprep.mubr.bf16.mxu0 %v318
      %521 = vmatmul.mubr.bf16.gmra.mrb[0].mxu0 %v317
      %v522 = vpop.f32.mrb[0].mxu0
      %v523 = vadd.f32 %v327, %v522
      %v524 = vpop.f32.mrb[0].mxu0
      %v525 = vpop.f32.mrb[0].mxu0
      %v526 = vadd.f32 %v327, %v525
      %v527 = vpop.f32.mrb[0].mxu0
      %528 = vmatprep.mubr.bf16.mxu0 %v321
      %529 = vmatmul.mubr.bf16.gmra.mrb[0].mxu0 %v320
      %v530 = vpop.f32.mrb[0].mxu0
      %v531 = vadd.f32 %v327, %v530
      %v532 = vpop.f32.mrb[0].mxu0
      %v533 = vpop.f32.mrb[0].mxu0
      %v534 = vadd.f32 %v327, %v533
      %v535 = vpop.f32.mrb[0].mxu0
      %536 = vdwg.mxu0
      %537 = vmatprep.subr.bf16.mxu0 0
      %538 = vmatpush1.bf16.msra.mxu0 %v417
      %539 = vmatprep.subr.bf16.mxu0 0
      %540 = vmatpush1.bf16.msra.mxu0 %v418
      %541 = vmatprep.subr.bf16.mxu0 0
      %542 = vmatpush1.bf16.msra.mxu0 0
      %543 = vmatprep.subr.bf16.mxu0 0
      %544 = vmatpush1.bf16.msra.mxu0 0
      %545 = vmatprep.subr.bf16.mxu0 0
      %546 = vmatpush1.bf16.msra.mxu0 0
      %547 = vmatprep.subr.bf16.mxu0 0
      %548 = vmatpush1.bf16.msra.mxu0 0
      %549 = vmatprep.subr.bf16.mxu0 0
      %550 = vmatpush1.bf16.msra.mxu0 0
      %551 = vmatprep.subr.bf16.mxu0 0
      %552 = vmatpush1.bf16.msra.mxu0 0
      %553 = vmatprep.subr.bf16.mxu0 0
      %554 = vmatpush1.bf16.msra.mxu0 0
      %555 = vmatprep.subr.bf16.mxu0 0
      %556 = vmatpush1.bf16.msra.mxu0 0
      %557 = vmatprep.subr.bf16.mxu0 0
      %558 = vmatpush1.bf16.msra.mxu0 0
      %559 = vmatprep.subr.bf16.mxu0 0
      %560 = vmatpush1.bf16.msra.mxu0 0
      %561 = vmatprep.subr.bf16.mxu0 0
      %562 = vmatpush1.bf16.msra.mxu0 0
      %563 = vmatprep.subr.bf16.mxu0 0
      %564 = vmatpush1.bf16.msra.mxu0 0
      %565 = vmatprep.subr.bf16.mxu0 0
      %566 = vmatpush1.bf16.msra.mxu0 0
      %567 = vmatprep.subr.bf16.mxu0 0
      %568 = vmatpush1.bf16.msra.mxu0 0
      %569 = vmatprep.mubr.bf16.mxu0 0
      %570 = vmatmul.mubr.bf16.gmra.mrb[0].mxu0 %v439
      %v571 = vpop.f32.mrb[0].mxu0
      %v572 = vadd.f32 %v491, %v571
      %v573 = vpop.f32.mrb[0].mxu0
      %v574 = vpop.f32.mrb[0].mxu0
      %v575 = vadd.f32 %v494, %v574
      %v576 = vpop.f32.mrb[0].mxu0
      %577 = vmatprep.mubr.bf16.mxu0 0
      %578 = vmatmul.mubr.bf16.gmra.mrb[0].mxu0 %v442
      %v579 = vpop.f32.mrb[0].mxu0
      %v580 = vadd.f32 %v499, %v579
      %v581 = vpop.f32.mrb[0].mxu0
      %v582 = vpop.f32.mrb[0].mxu0
      %v583 = vadd.f32 %v502, %v582
      %v584 = vpop.f32.mrb[0].mxu0
      %585 = vmatprep.mubr.bf16.mxu0 0
      %586 = vmatmul.mubr.bf16.gmra.mrb[0].mxu0 %v445
      %v587 = vpop.f32.mrb[0].mxu0
      %v588 = vadd.f32 %v507, %v587
      %v589 = vpop.f32.mrb[0].mxu0
      %v590 = vpop.f32.mrb[0].mxu0
      %v591 = vadd.f32 %v510, %v590
      %v592 = vpop.f32.mrb[0].mxu0
      %593 = vmatprep.mubr.bf16.mxu0 0
      %594 = vmatmul.mubr.bf16.gmra.mrb[0].mxu0 %v448
      %v595 = vpop.f32.mrb[0].mxu0
      %v596 = vadd.f32 %v515, %v595
      %v597 = vpop.f32.mrb[0].mxu0
      %v598 = vpop.f32.mrb[0].mxu0
      %v599 = vadd.f32 %v518, %v598
      %v600 = vpop.f32.mrb[0].mxu0
      %601 = vmatprep.mubr.bf16.mxu0 0
      %602 = vmatmul.mubr.bf16.gmra.mrb[0].mxu0 %v451
      %v603 = vpop.f32.mrb[0].mxu0
      %v604 = vadd.f32 %v523, %v603
      %v605 = vpop.f32.mrb[0].mxu0
      %v606 = vpop.f32.mrb[0].mxu0
      %v607 = vadd.f32 %v526, %v606
      %v608 = vpop.f32.mrb[0].mxu0
      %609 = vmatprep.mubr.bf16.mxu0 0
      %610 = vmatmul.mubr.bf16.gmra.mrb[0].mxu0 %v454
      %v611 = vpop.f32.mrb[0].mxu0
      %v612 = vadd.f32 %v531, %v611
      %v613 = vpop.f32.mrb[0].mxu0
      %v614 = vpop.f32.mrb[0].mxu0
      %v615 = vadd.f32 %v534, %v614
      %v616 = vpop.f32.mrb[0].mxu0
      %617 = vdwg.mxu0
      %v618 = vmax.f32 %v572, 0.0
      %v619 = vmax.f32 %v575, 0.0
      %v620 = vmax.f32 %v580, 0.0
      %v621 = vmax.f32 %v583, 0.0
      %v622 = vmax.f32 %v588, 0.0
      %v623 = vmax.f32 %v591, 0.0
      %v624 = vmax.f32 %v596, 0.0
      %v625 = vmax.f32 %v599, 0.0
      %v626 = vmax.f32 %v604, 0.0
      %v627 = vmax.f32 %v607, 0.0
      %v628 = vmax.f32 %v612, 0.0
      %v629 = vmax.f32 %v615, 0.0
      %v630 = vld [vmem:[%s3] sm:$0xf]
      %v631 = vld [vmem:[%s3 + $0x4] sm:$0xf]
      %v632 = vld [vmem:[%s3 + $0x8] sm:$0xf]
      %v633 = vld [vmem:[%s3 + $0xc] sm:$0xf]
      %v634 = vld [vmem:[%s4] sm:$0x1]
      %v635 = vpack.c.bf16 %v619, %v618
      %v636 = vpack.c.bf16 %v621, %v620
      %v637 = vpack.c.bf16 %v623, %v622
      %v638 = vpack.c.bf16 %v625, %v624
      %v639 = vpack.c.bf16 %v627, %v626
      %v640 = vpack.c.bf16 %v629, %v628
      %v642 = vlaneseq
      %v643 = vshrl.u32 %v642, 7
      %v644 = vsub.s32 0, %v643
      %v645 = vrot.slane %v634, %v644
      %v651 = vunpack.c.l.b16 %v630
      %v652 = vunpack.c.l.b16 %v631
      %v653 = vunpack.c.l.b16 %v632
      %v654 = vunpack.c.l.b16 %v633
      %v655 = vpack.c.b16 %v652, %v651
      %v656 = vpack.c.b16 %v654, %v653
      %v660 = vsel %vm437, %v635, 0
      %v663 = vsel %vm437, %v636, 0
      %v666 = vsel %vm437, %v637, 0
      %v669 = vsel %vm437, %v638, 0
      %v672 = vsel %vm437, %v639, 0
      %v675 = vsel %vm437, %v640, 0
      %677 = vmatprep.subr.bf16.mxu0 0
      %678 = vmatpush1.bf16.msra.mxu0 %v655
      %679 = vmatprep.subr.bf16.mxu0 0
      %680 = vmatpush1.bf16.msra.mxu0 %v656
      %681 = vmatprep.subr.bf16.mxu0 0
      %682 = vmatpush1.bf16.msra.mxu0 0
      %683 = vmatprep.subr.bf16.mxu0 0
      %684 = vmatpush1.bf16.msra.mxu0 0
      %685 = vmatprep.subr.bf16.mxu0 0
      %686 = vmatpush1.bf16.msra.mxu0 0
      %687 = vmatprep.subr.bf16.mxu0 0
      %688 = vmatpush1.bf16.msra.mxu0 0
      %689 = vmatprep.subr.bf16.mxu0 0
      %690 = vmatpush1.bf16.msra.mxu0 0
      %691 = vmatprep.subr.bf16.mxu0 0
      %692 = vmatpush1.bf16.msra.mxu0 0
      %693 = vmatprep.subr.bf16.mxu0 0
      %694 = vmatpush1.bf16.msra.mxu0 0
      %695 = vmatprep.subr.bf16.mxu0 0
      %696 = vmatpush1.bf16.msra.mxu0 0
      %697 = vmatprep.subr.bf16.mxu0 0
      %698 = vmatpush1.bf16.msra.mxu0 0
      %699 = vmatprep.subr.bf16.mxu0 0
      %700 = vmatpush1.bf16.msra.mxu0 0
      %701 = vmatprep.subr.bf16.mxu0 0
      %702 = vmatpush1.bf16.msra.mxu0 0
      %703 = vmatprep.subr.bf16.mxu0 0
      %704 = vmatpush1.bf16.msra.mxu0 0
      %705 = vmatprep.subr.bf16.mxu0 0
      %706 = vmatpush1.bf16.msra.mxu0 0
      %707 = vmatprep.subr.bf16.mxu0 0
      %708 = vmatpush1.bf16.msra.mxu0 0
      %709 = vmatprep.mubr.bf16.mxu0 0
      %710 = vmatmul.mubr.bf16.gmra.mrb[0].mxu0 %v660
      %v711 = vpop.f32.mrb[0].mxu0
      %v712 = vadd.f32 %v645, %v711
      %v713 = vpop.f32.mrb[0].mxu0
      %v714 = vpop.f32.mrb[0].mxu0
      %v715 = vadd.f32 %v645, %v714
      %v716 = vpop.f32.mrb[0].mxu0
      %717 = vmatprep.mubr.bf16.mxu0 0
      %718 = vmatmul.mubr.bf16.gmra.mrb[0].mxu0 %v663
      %v719 = vpop.f32.mrb[0].mxu0
      %v720 = vadd.f32 %v645, %v719
      %v721 = vpop.f32.mrb[0].mxu0
      %v722 = vpop.f32.mrb[0].mxu0
      %v723 = vadd.f32 %v645, %v722
      %v724 = vpop.f32.mrb[0].mxu0
      %725 = vmatprep.mubr.bf16.mxu0 0
      %726 = vmatmul.mubr.bf16.gmra.mrb[0].mxu0 %v666
      %v727 = vpop.f32.mrb[0].mxu0
      %v728 = vadd.f32 %v645, %v727
      %v729 = vpop.f32.mrb[0].mxu0
      %v730 = vpop.f32.mrb[0].mxu0
      %v731 = vadd.f32 %v645, %v730
      %v732 = vpop.f32.mrb[0].mxu0
      %733 = vmatprep.mubr.bf16.mxu0 0
      %734 = vmatmul.mubr.bf16.gmra.mrb[0].mxu0 %v669
      %v735 = vpop.f32.mrb[0].mxu0
      %v736 = vadd.f32 %v645, %v735
      %v737 = vpop.f32.mrb[0].mxu0
      %v738 = vpop.f32.mrb[0].mxu0
      %v739 = vadd.f32 %v645, %v738
      %v740 = vpop.f32.mrb[0].mxu0
      %741 = vmatprep.mubr.bf16.mxu0 0
      %742 = vmatmul.mubr.bf16.gmra.mrb[0].mxu0 %v672
      %v743 = vpop.f32.mrb[0].mxu0
      %v744 = vadd.f32 %v645, %v743
      %v745 = vpop.f32.mrb[0].mxu0
      %v746 = vpop.f32.mrb[0].mxu0
      %v747 = vadd.f32 %v645, %v746
      %v748 = vpop.f32.mrb[0].mxu0
      %749 = vmatprep.mubr.bf16.mxu0 0
      %750 = vmatmul.mubr.bf16.gmra.mrb[0].mxu0 %v675
      %v751 = vpop.f32.mrb[0].mxu0
      %v752 = vadd.f32 %v645, %v751
      %v753 = vpop.f32.mrb[0].mxu0
      %v754 = vpop.f32.mrb[0].mxu0
      %v755 = vadd.f32 %v645, %v754
      %v756 = vpop.f32.mrb[0].mxu0
      %757 = vdwg.mxu0
      %v758 = vxor.u32 %v712, 2147483648
      %v759 = vxor.u32 %v715, 2147483648
      %v760 = vxor.u32 %v720, 2147483648
      %v761 = vxor.u32 %v723, 2147483648
      %v762 = vxor.u32 %v728, 2147483648
      %v763 = vxor.u32 %v731, 2147483648
      %v764 = vxor.u32 %v736, 2147483648
      %v765 = vxor.u32 %v739, 2147483648
      %v766 = vxor.u32 %v744, 2147483648
      %v767 = vxor.u32 %v747, 2147483648
      %v768 = vxor.u32 %v752, 2147483648
      %v769 = vxor.u32 %v755, 2147483648
      %v770 = vmul.f32 %v758, 1.442695
      %v771 = vpow.pop %v770
      %v772 = vmul.f32 %v759, 1.442695
      %v773 = vpow.pop %v772
      %v774 = vmul.f32 %v760, 1.442695
      %v775 = vpow.pop %v774
      %v776 = vmul.f32 %v761, 1.442695
      %v777 = vpow.pop %v776
      %v778 = vmul.f32 %v762, 1.442695
      %v779 = vpow.pop %v778
      %v780 = vmul.f32 %v763, 1.442695
      %v781 = vpow.pop %v780
      %v782 = vmul.f32 %v764, 1.442695
      %v783 = vpow.pop %v782
      %v784 = vmul.f32 %v765, 1.442695
      %v785 = vpow.pop %v784
      %v786 = vmul.f32 %v766, 1.442695
      %v787 = vpow.pop %v786
      %v788 = vmul.f32 %v767, 1.442695
      %v789 = vpow.pop %v788
      %v790 = vmul.f32 %v768, 1.442695
      %v791 = vpow.pop %v790
      %v792 = vmul.f32 %v769, 1.442695
      %v793 = vpow.pop %v792
      %v794 = vadd.f32 %v771, 1.0
      %v795 = vadd.f32 %v773, 1.0
      %v796 = vadd.f32 %v775, 1.0
      %v797 = vadd.f32 %v777, 1.0
      %v798 = vadd.f32 %v779, 1.0
      %v799 = vadd.f32 %v781, 1.0
      %v800 = vadd.f32 %v783, 1.0
      %v801 = vadd.f32 %v785, 1.0
      %v802 = vadd.f32 %v787, 1.0
      %v803 = vadd.f32 %v789, 1.0
      %v804 = vadd.f32 %v791, 1.0
      %v805 = vadd.f32 %v793, 1.0
      %v806 = vrcp.pop %v794
      %v807 = vmul.f32 1.0, %v806
      %v808 = vrcp.pop %v795
      %v809 = vmul.f32 1.0, %v808
      %v810 = vrcp.pop %v796
      %v811 = vmul.f32 1.0, %v810
      %v812 = vrcp.pop %v797
      %v813 = vmul.f32 1.0, %v812
      %v814 = vrcp.pop %v798
      %v815 = vmul.f32 1.0, %v814
      %v816 = vrcp.pop %v799
      %v817 = vmul.f32 1.0, %v816
      %v818 = vrcp.pop %v800
      %v819 = vmul.f32 1.0, %v818
      %v820 = vrcp.pop %v801
      %v821 = vmul.f32 1.0, %v820
      %v822 = vrcp.pop %v802
      %v823 = vmul.f32 1.0, %v822
      %v824 = vrcp.pop %v803
      %v825 = vmul.f32 1.0, %v824
      %v826 = vrcp.pop %v804
      %v827 = vmul.f32 1.0, %v826
      %v828 = vrcp.pop %v805
      %v829 = vmul.f32 1.0, %v828
      %vm830 = vcmask 23552
      %831 = vst.msk [vmem:[%s229] sm:$0xff] %vm830, %v807
      %832 = vst.msk [vmem:[%s229 + $0x8] sm:$0xff] %vm830, %v809
      %833 = vst.msk [vmem:[%s229 + $0x10] sm:$0xff] %vm830, %v811
      %834 = vst.msk [vmem:[%s229 + $0x18] sm:$0xff] %vm830, %v813
      %835 = vst.msk [vmem:[%s229 + $0x20] sm:$0xff] %vm830, %v815
      %836 = vst.msk [vmem:[%s229 + $0x28] sm:$0xff] %vm830, %v817
      %837 = vst.msk [vmem:[%s229 + $0x30] sm:$0xff] %vm830, %v819
      %838 = vst.msk [vmem:[%s229 + $0x38] sm:$0xff] %vm830, %v821
      %839 = vst.msk [vmem:[%s229 + $0x40] sm:$0xff] %vm830, %v823
      %840 = vst.msk [vmem:[%s229 + $0x48] sm:$0xff] %vm830, %v825
      %841 = vst.msk [vmem:[%s229 + $0x50] sm:$0xff] %vm830, %v827
      %842 = vst.msk [vmem:[%s229 + $0x58] sm:$0xff] %vm830, %v829
      %s843 = smul.u32 12, %s16
      %p844 = scmp.lt.s32.totalorder %s843, 23
      %s845 = scalar_select %p844, %s843, 23
      %s846 = smul.addr %s845, 8
      %s847 = scalar_lea.vmem %s5, %s846
      // Predicated region
      $region41: #{faster_rcnn_forward.5} parent=39 // pred_check
        %p848 = pneg %p144
      $region42: #{faster_rcnn_forward.5} parent=39 // pred_check_branch
        %850 = sbr.rel (%p848) target = $region44
      $region43: #{faster_rcnn_forward.5} parent=39 // pred_region
        %s851 = smul.u32 12, %s16
      $region44: #{faster_rcnn_forward.5} parent=39 // pred_fallthru
        _
    $region40: #{faster_rcnn_forward.5} parent=5 // pred_fallthru
      _
    %p852 = scmp.le.s32.totalorder 2, %s11
    // Predicated region
    $region45: #{faster_rcnn_forward.5} parent=5 // pred_check
      %p853 = pneg %p852
    $region46: #{faster_rcnn_forward.5} parent=5 // pred_check_branch
      %855 = sbr.rel (%p853) target = $region48
    $region47: #{faster_rcnn_forward.5} parent=5 // pred_region
      %s856 = ssub.s32 %s11, 2
      // Predicated region
      $region49: #{faster_rcnn_forward.5} parent=47 // pred_check
        %p857 = pneg %p150
      $region50: #{faster_rcnn_forward.5} parent=47 // pred_check_branch
        %859 = sbr.rel (%p857) target = $region52
      $region51: #{faster_rcnn_forward.5} parent=47 // pred_region
        %s860 = smul.u32 12, %s17
        %p861 = scmp.lt.s32.totalorder %s860, 23
        %s862 = scalar_select %p861, %s860, 23
        %s863 = smul.addr %s862, 8
        %s864 = scalar_lea.vmem %s5, %s863
      $region52: #{faster_rcnn_forward.5} parent=47 // pred_fallthru
        _
    $region48: #{faster_rcnn_forward.5} parent=5 // pred_fallthru
      _
  $region6: #{faster_rcnn_forward.5} parent=0 // loop_footer
    %s15 = sadd.s32 1, %s11
  $region7: #{faster_rcnn_forward.5} parent=0 // loop_footer_branch
    %10 = sbr.rel target = $region3
  $region8: #{faster_rcnn_forward.5} parent=0 // loop_exit
    _

// kernel: tile.18
$region0: #{tile.18}
  #allocation0 [shape = 's32[1]{0}', space=sflag, size = 0x4, scoped, tag = 'scoped memory for tile.18']
  %s0 = inlined_call_operand.vmem [shape: s32[8], index: 0, kind: input, shape index: {}]
  %s1 = inlined_call_operand.vmem [shape: s32[3,8], index: 1, kind: output, shape index: {}]
  // Predicated region
  $region2: #{tile.18} parent=0 // pred_check
    _
  $region3: #{tile.18} parent=0 // pred_check_branch
    %3 = sbr.rel (0) target = $region5
  $region4: #{tile.18} parent=0 // pred_region
    _
  $region5: #{tile.18} parent=0 // pred_fallthru
    _
  %v4 = vld [vmem:[%s0] ss:$0 sm:$0xff]
  %5 = vst [vmem:[%s1] sm:$0xf] %v4

// kernel: faster_rcnn_forward.6
$region0: #{faster_rcnn_forward.6}
  #allocation0 [shape = 'u32[]', space=smem, size = 0x4, offset = 0x4, fixed_abs, tag = 'smem constant byte address 0x4 - core index']
  #allocation1 [shape = 'u32[144,128]{1,0:T(1,128)}', space=vmem, size = 0x12000, scoped, tag = 'internal scratch']
  %s0 = inlined_call_operand.vmem [shape: f32[24,512], index: 0, kind: input, shape index: {}]
  %s1 = inlined_call_operand.vmem [shape: bf16[512,64], index: 1, kind: input, shape index: {}]
  %s2 = inlined_call_operand.vmem [shape: f32[1,64], index: 2, kind: input, shape index: {}]
  %s3 = inlined_call_operand.vmem [shape: bf16[64,64], index: 3, kind: input, shape index: {}]
  %s4 = inlined_call_operand.vmem [shape: f32[1,64], index: 4, kind: input, shape index: {}]
  %s5 = inlined_call_operand.vmem [shape: bf16[64,128], index: 5, kind: input, shape index: {}]
  %s6 = inlined_call_operand.vmem [shape: f32[1,128], index: 6, kind: input, shape index: {}]
  %s7 = inlined_call_operand.vmem [shape: f32[24,128], index: 7, kind: input, shape index: {}]
  %s8 = inlined_call_operand.vmem [shape: f32[24,64], index: 8, kind: output, shape index: {0}]
  %s9 = inlined_call_operand.vmem [shape: f32[24,4], index: 9, kind: output, shape index: {1}]
  %s10 = inlined_call_operand.vmem [shape: f32[24,4], index: 10, kind: output, shape index: {2}]
  %s11 = inlined_call_operand.vmem [shape: f32[1,128], index: 11, kind: output, shape index: {3}]
  %12 = xla_tuple %s8, %s9, %s10, %s11
  %s13 = sld [smem:[#allocation0]]
  $region66: #{faster_rcnn_forward.6} parent=0
    _
  %s15 = ssub.s32 1, %s13
  %s16 = scalar_select 0, %s15, %s13
  // Predicated region
  $region2: #{faster_rcnn_forward.6} parent=0 // pred_check
    _
  $region3: #{faster_rcnn_forward.6} parent=0 // pred_check_branch
    %18 = sbr.rel (0) target = $region5
  $region4: #{faster_rcnn_forward.6} parent=0 // pred_region
    _
  $region5: #{faster_rcnn_forward.6} parent=0 // pred_fallthru
    _
  // Predicated region
  $region6: #{faster_rcnn_forward.6} parent=0 // pred_check
    _
  $region7: #{faster_rcnn_forward.6} parent=0 // pred_check_branch
    %20 = sbr.rel (0) target = $region9
  $region8: #{faster_rcnn_forward.6} parent=0 // pred_region
    _
  $region9: #{faster_rcnn_forward.6} parent=0 // pred_fallthru
    _
  // Predicated region
  $region10: #{faster_rcnn_forward.6} parent=0 // pred_check
    _
  $region11: #{faster_rcnn_forward.6} parent=0 // pred_check_branch
    %22 = sbr.rel (0) target = $region13
  $region12: #{faster_rcnn_forward.6} parent=0 // pred_region
    _
  $region13: #{faster_rcnn_forward.6} parent=0 // pred_fallthru
    _
  // Predicated region
  $region14: #{faster_rcnn_forward.6} parent=0 // pred_check
    _
  $region15: #{faster_rcnn_forward.6} parent=0 // pred_check_branch
    %24 = sbr.rel (0) target = $region17
  $region16: #{faster_rcnn_forward.6} parent=0 // pred_region
    _
  $region17: #{faster_rcnn_forward.6} parent=0 // pred_fallthru
    _
  // Predicated region
  $region18: #{faster_rcnn_forward.6} parent=0 // pred_check
    _
  $region19: #{faster_rcnn_forward.6} parent=0 // pred_check_branch
    %26 = sbr.rel (0) target = $region21
  $region20: #{faster_rcnn_forward.6} parent=0 // pred_region
    _
  $region21: #{faster_rcnn_forward.6} parent=0 // pred_fallthru
    _
  // Predicated region
  $region22: #{faster_rcnn_forward.6} parent=0 // pred_check
    _
  $region23: #{faster_rcnn_forward.6} parent=0 // pred_check_branch
    %28 = sbr.rel (0) target = $region25
  $region24: #{faster_rcnn_forward.6} parent=0 // pred_region
    _
  $region25: #{faster_rcnn_forward.6} parent=0 // pred_fallthru
    _
  // Predicated region
  $region26: #{faster_rcnn_forward.6} parent=0 // pred_check
    _
  $region27: #{faster_rcnn_forward.6} parent=0 // pred_check_branch
    %30 = sbr.rel (0) target = $region29
  $region28: #{faster_rcnn_forward.6} parent=0 // pred_region
    _
  $region29: #{faster_rcnn_forward.6} parent=0 // pred_fallthru
    _
  // Predicated region
  $region30: #{faster_rcnn_forward.6} parent=0 // pred_check
    _
  $region31: #{faster_rcnn_forward.6} parent=0 // pred_check_branch
    %32 = sbr.rel (0) target = $region33
  $region32: #{faster_rcnn_forward.6} parent=0 // pred_region
    _
  $region33: #{faster_rcnn_forward.6} parent=0 // pred_fallthru
    _
  %v34 = vld [vmem:[%s0] sm:$0xff]
  %v35 = vld [vmem:[%s0 + $0x8] sm:$0xff]
  %v36 = vld [vmem:[%s0 + $0x10] sm:$0xff]
  %v37 = vld [vmem:[%s0 + $0x18] sm:$0xff]
  %v38 = vld [vmem:[%s0 + $0x20] sm:$0xff]
  %v39 = vld [vmem:[%s0 + $0x28] sm:$0xff]
  %v40 = vld [vmem:[%s0 + $0x30] sm:$0xff]
  %v41 = vld [vmem:[%s0 + $0x38] sm:$0xff]
  %v42 = vld [vmem:[%s0 + $0x40] sm:$0xff]
  %v43 = vld [vmem:[%s0 + $0x48] sm:$0xff]
  %v44 = vld [vmem:[%s0 + $0x50] sm:$0xff]
  %v45 = vld [vmem:[%s0 + $0x58] sm:$0xff]
  %v46 = vpack.c.bf16 %v38, %v34
  %v47 = vpack.c.bf16 %v39, %v35
  %v48 = vpack.c.bf16 %v40, %v36
  %v49 = vpack.c.bf16 %v41, %v37
  %v50 = vpack.c.bf16 %v42, %v42
  %v51 = vpack.c.bf16 %v43, %v43
  %v52 = vpack.c.bf16 %v44, %v44
  %v53 = vpack.c.bf16 %v45, %v45
  %v54 = vld [vmem:[%s1] sm:$0xf]
  %v55 = vld [vmem:[%s1 + $0x4] sm:$0xf]
  %v56 = vld [vmem:[%s1 + $0x8] sm:$0xf]
  %v57 = vld [vmem:[%s1 + $0xc] sm:$0xf]
  %v58 = vld [vmem:[%s1 + $0x10] sm:$0xf]
  %v59 = vld [vmem:[%s1 + $0x14] sm:$0xf]
  %v60 = vld [vmem:[%s1 + $0x18] sm:$0xf]
  %v61 = vld [vmem:[%s1 + $0x1c] sm:$0xf]
  %v62 = vld [vmem:[%s1 + $0x20] sm:$0xf]
  %v63 = vld [vmem:[%s1 + $0x24] sm:$0xf]
  %v64 = vld [vmem:[%s1 + $0x28] sm:$0xf]
  %v65 = vld [vmem:[%s1 + $0x2c] sm:$0xf]
  %v66 = vld [vmem:[%s1 + $0x30] sm:$0xf]
  %v67 = vld [vmem:[%s1 + $0x34] sm:$0xf]
  %v68 = vld [vmem:[%s1 + $0x38] sm:$0xf]
  %v69 = vld [vmem:[%s1 + $0x3c] sm:$0xf]
  %v70 = vld [vmem:[%s1 + $0x40] sm:$0xf]
  %v71 = vld [vmem:[%s1 + $0x44] sm:$0xf]
  %v72 = vld [vmem:[%s1 + $0x48] sm:$0xf]
  %v73 = vld [vmem:[%s1 + $0x4c] sm:$0xf]
  %v74 = vld [vmem:[%s1 + $0x50] sm:$0xf]
  %v75 = vld [vmem:[%s1 + $0x54] sm:$0xf]
  %v76 = vld [vmem:[%s1 + $0x58] sm:$0xf]
  %v77 = vld [vmem:[%s1 + $0x5c] sm:$0xf]
  %v78 = vld [vmem:[%s1 + $0x60] sm:$0xf]
  %v79 = vld [vmem:[%s1 + $0x64] sm:$0xf]
  %v80 = vld [vmem:[%s1 + $0x68] sm:$0xf]
  %v81 = vld [vmem:[%s1 + $0x6c] sm:$0xf]
  %v82 = vld [vmem:[%s1 + $0x70] sm:$0xf]
  %v83 = vld [vmem:[%s1 + $0x74] sm:$0xf]
  %v84 = vld [vmem:[%s1 + $0x78] sm:$0xf]
  %v85 = vld [vmem:[%s1 + $0x7c] sm:$0xf]
  %v86 = vld [vmem:[%s1 + $0x80] sm:$0xf]
  %v87 = vld [vmem:[%s1 + $0x84] sm:$0xf]
  %v88 = vld [vmem:[%s1 + $0x88] sm:$0xf]
  %v89 = vld [vmem:[%s1 + $0x8c] sm:$0xf]
  %v90 = vld [vmem:[%s1 + $0x90] sm:$0xf]
  %v91 = vld [vmem:[%s1 + $0x94] sm:$0xf]
  %v92 = vld [vmem:[%s1 + $0x98] sm:$0xf]
  %v93 = vld [vmem:[%s1 + $0x9c] sm:$0xf]
  %v94 = vld [vmem:[%s1 + $0xa0] sm:$0xf]
  %v95 = vld [vmem:[%s1 + $0xa4] sm:$0xf]
  %v96 = vld [vmem:[%s1 + $0xa8] sm:$0xf]
  %v97 = vld [vmem:[%s1 + $0xac] sm:$0xf]
  %v98 = vld [vmem:[%s1 + $0xb0] sm:$0xf]
  %v99 = vld [vmem:[%s1 + $0xb4] sm:$0xf]
  %v100 = vld [vmem:[%s1 + $0xb8] sm:$0xf]
  %v101 = vld [vmem:[%s1 + $0xbc] sm:$0xf]
  %v102 = vld [vmem:[%s1 + $0xc0] sm:$0xf]
  %v103 = vld [vmem:[%s1 + $0xc4] sm:$0xf]
  %v104 = vld [vmem:[%s1 + $0xc8] sm:$0xf]
  %v105 = vld [vmem:[%s1 + $0xcc] sm:$0xf]
  %v106 = vld [vmem:[%s1 + $0xd0] sm:$0xf]
  %v107 = vld [vmem:[%s1 + $0xd4] sm:$0xf]
  %v108 = vld [vmem:[%s1 + $0xd8] sm:$0xf]
  %v109 = vld [vmem:[%s1 + $0xdc] sm:$0xf]
  %v110 = vld [vmem:[%s1 + $0xe0] sm:$0xf]
  %v111 = vld [vmem:[%s1 + $0xe4] sm:$0xf]
  %v112 = vld [vmem:[%s1 + $0xe8] sm:$0xf]
  %v113 = vld [vmem:[%s1 + $0xec] sm:$0xf]
  %v114 = vld [vmem:[%s1 + $0xf0] sm:$0xf]
  %v115 = vld [vmem:[%s1 + $0xf4] sm:$0xf]
  %v116 = vld [vmem:[%s1 + $0xf8] sm:$0xf]
  %v117 = vld [vmem:[%s1 + $0xfc] sm:$0xf]
  %v118 = vld [vmem:[%s2] sm:$0x1]
  %v120 = vlaneseq
  %v121 = vshrl.u32 %v120, 7
  %v122 = vsub.s32 0, %v121
  %v123 = vrot.slane %v118, %v122
  %v189 = vunpack.c.l.b16 %v54
  %v190 = vunpack.c.l.b16 %v55
  %v191 = vunpack.c.l.b16 %v56
  %v192 = vunpack.c.l.b16 %v57
  %v193 = vunpack.c.l.b16 %v58
  %v194 = vunpack.c.l.b16 %v59
  %v195 = vunpack.c.l.b16 %v60
  %v196 = vunpack.c.l.b16 %v61
  %v197 = vunpack.c.l.b16 %v62
  %v198 = vunpack.c.l.b16 %v63
  %v199 = vunpack.c.l.b16 %v64
  %v200 = vunpack.c.l.b16 %v65
  %v201 = vunpack.c.l.b16 %v66
  %v202 = vunpack.c.l.b16 %v67
  %v203 = vunpack.c.l.b16 %v68
  %v204 = vunpack.c.l.b16 %v69
  %v205 = vunpack.c.l.b16 %v70
  %v206 = vunpack.c.l.b16 %v71
  %v207 = vunpack.c.l.b16 %v72
  %v208 = vunpack.c.l.b16 %v73
  %v209 = vunpack.c.l.b16 %v74
  %v210 = vunpack.c.l.b16 %v75
  %v211 = vunpack.c.l.b16 %v76
  %v212 = vunpack.c.l.b16 %v77
  %v213 = vunpack.c.l.b16 %v78
  %v214 = vunpack.c.l.b16 %v79
  %v215 = vunpack.c.l.b16 %v80
  %v216 = vunpack.c.l.b16 %v81
  %v217 = vunpack.c.l.b16 %v82
  %v218 = vunpack.c.l.b16 %v83
  %v219 = vunpack.c.l.b16 %v84
  %v220 = vunpack.c.l.b16 %v85
  %v221 = vunpack.c.l.b16 %v86
  %v222 = vunpack.c.l.b16 %v87
  %v223 = vunpack.c.l.b16 %v88
  %v224 = vunpack.c.l.b16 %v89
  %v225 = vunpack.c.l.b16 %v90
  %v226 = vunpack.c.l.b16 %v91
  %v227 = vunpack.c.l.b16 %v92
  %v228 = vunpack.c.l.b16 %v93
  %v229 = vunpack.c.l.b16 %v94
  %v230 = vunpack.c.l.b16 %v95
  %v231 = vunpack.c.l.b16 %v96
  %v232 = vunpack.c.l.b16 %v97
  %v233 = vunpack.c.l.b16 %v98
  %v234 = vunpack.c.l.b16 %v99
  %v235 = vunpack.c.l.b16 %v100
  %v236 = vunpack.c.l.b16 %v101
  %v237 = vunpack.c.l.b16 %v102
  %v238 = vunpack.c.l.b16 %v103
  %v239 = vunpack.c.l.b16 %v104
  %v240 = vunpack.c.l.b16 %v105
  %v241 = vunpack.c.l.b16 %v106
  %v242 = vunpack.c.l.b16 %v107
  %v243 = vunpack.c.l.b16 %v108
  %v244 = vunpack.c.l.b16 %v109
  %v245 = vunpack.c.l.b16 %v110
  %v246 = vunpack.c.l.b16 %v111
  %v247 = vunpack.c.l.b16 %v112
  %v248 = vunpack.c.l.b16 %v113
  %v249 = vunpack.c.l.b16 %v114
  %v250 = vunpack.c.l.b16 %v115
  %v251 = vunpack.c.l.b16 %v116
  %v252 = vunpack.c.l.b16 %v117
  %v253 = vpack.c.b16 %v190, %v189
  %v254 = vpack.c.b16 %v192, %v191
  %v255 = vpack.c.b16 %v194, %v193
  %v256 = vpack.c.b16 %v196, %v195
  %v257 = vpack.c.b16 %v198, %v197
  %v258 = vpack.c.b16 %v200, %v199
  %v259 = vpack.c.b16 %v202, %v201
  %v260 = vpack.c.b16 %v204, %v203
  %v261 = vpack.c.b16 %v206, %v205
  %v262 = vpack.c.b16 %v208, %v207
  %v263 = vpack.c.b16 %v210, %v209
  %v264 = vpack.c.b16 %v212, %v211
  %v265 = vpack.c.b16 %v214, %v213
  %v266 = vpack.c.b16 %v216, %v215
  %v267 = vpack.c.b16 %v218, %v217
  %v268 = vpack.c.b16 %v220, %v219
  %v269 = vpack.c.b16 %v222, %v221
  %v270 = vpack.c.b16 %v224, %v223
  %v271 = vpack.c.b16 %v226, %v225
  %v272 = vpack.c.b16 %v228, %v227
  %v273 = vpack.c.b16 %v230, %v229
  %v274 = vpack.c.b16 %v232, %v231
  %v275 = vpack.c.b16 %v234, %v233
  %v276 = vpack.c.b16 %v236, %v235
  %v277 = vpack.c.b16 %v238, %v237
  %v278 = vpack.c.b16 %v240, %v239
  %v279 = vpack.c.b16 %v242, %v241
  %v280 = vpack.c.b16 %v244, %v243
  %v281 = vpack.c.b16 %v246, %v245
  %v282 = vpack.c.b16 %v248, %v247
  %v283 = vpack.c.b16 %v250, %v249
  %v284 = vpack.c.b16 %v252, %v251
  %317 = vmatprep.subr.bf16.mxu0 0
  %318 = vmatpush1.bf16.msra.mxu0 %v253
  %319 = vmatprep.subr.bf16.mxu0 0
  %320 = vmatpush1.bf16.msra.mxu0 %v254
  %321 = vmatprep.subr.bf16.mxu0 0
  %322 = vmatpush1.bf16.msra.mxu0 %v255
  %323 = vmatprep.subr.bf16.mxu0 0
  %324 = vmatpush1.bf16.msra.mxu0 %v256
  %325 = vmatprep.subr.bf16.mxu0 0
  %326 = vmatpush1.bf16.msra.mxu0 %v257
  %327 = vmatprep.subr.bf16.mxu0 0
  %328 = vmatpush1.bf16.msra.mxu0 %v258
  %329 = vmatprep.subr.bf16.mxu0 0
  %330 = vmatpush1.bf16.msra.mxu0 %v259
  %331 = vmatprep.subr.bf16.mxu0 0
  %332 = vmatpush1.bf16.msra.mxu0 %v260
  %333 = vmatprep.subr.bf16.mxu0 0
  %334 = vmatpush1.bf16.msra.mxu0 %v261
  %335 = vmatprep.subr.bf16.mxu0 0
  %336 = vmatpush1.bf16.msra.mxu0 %v262
  %337 = vmatprep.subr.bf16.mxu0 0
  %338 = vmatpush1.bf16.msra.mxu0 %v263
  %339 = vmatprep.subr.bf16.mxu0 0
  %340 = vmatpush1.bf16.msra.mxu0 %v264
  %341 = vmatprep.subr.bf16.mxu0 0
  %342 = vmatpush1.bf16.msra.mxu0 %v265
  %343 = vmatprep.subr.bf16.mxu0 0
  %344 = vmatpush1.bf16.msra.mxu0 %v266
  %345 = vmatprep.subr.bf16.mxu0 0
  %346 = vmatpush1.bf16.msra.mxu0 %v267
  %347 = vmatprep.subr.bf16.mxu0 0
  %348 = vmatpush1.bf16.msra.mxu0 %v268
  %349 = vmatprep.mubr.bf16.mxu0 %v47
  %350 = vmatmul.mubr.bf16.gmra.mrb[0].mxu0 %v46
  %v351 = vpop.f32.mrb[0].mxu0
  %v352 = vadd.f32 %v123, %v351
  %v353 = vpop.f32.mrb[0].mxu0
  %v354 = vpop.f32.mrb[0].mxu0
  %v355 = vadd.f32 %v123, %v354
  %v356 = vpop.f32.mrb[0].mxu0
  %357 = vmatprep.mubr.bf16.mxu0 %v51
  %358 = vmatmul.mubr.bf16.gmra.mrb[0].mxu0 %v50
  %v359 = vpop.f32.mrb[0].mxu0
  %v360 = vadd.f32 %v123, %v359
  %v361 = vpop.f32.mrb[0].mxu0
  %v362 = vpop.f32.mrb[0].mxu0
  %v363 = vpop.f32.mrb[0].mxu0
  %364 = vdwg.mxu0
  %365 = vmatprep.subr.bf16.mxu0 0
  %366 = vmatpush1.bf16.msra.mxu0 %v269
  %367 = vmatprep.subr.bf16.mxu0 0
  %368 = vmatpush1.bf16.msra.mxu0 %v270
  %369 = vmatprep.subr.bf16.mxu0 0
  %370 = vmatpush1.bf16.msra.mxu0 %v271
  %371 = vmatprep.subr.bf16.mxu0 0
  %372 = vmatpush1.bf16.msra.mxu0 %v272
  %373 = vmatprep.subr.bf16.mxu0 0
  %374 = vmatpush1.bf16.msra.mxu0 %v273
  %375 = vmatprep.subr.bf16.mxu0 0
  %376 = vmatpush1.bf16.msra.mxu0 %v274
  %377 = vmatprep.subr.bf16.mxu0 0
  %378 = vmatpush1.bf16.msra.mxu0 %v275
  %379 = vmatprep.subr.bf16.mxu0 0
  %380 = vmatpush1.bf16.msra.mxu0 %v276
  %381 = vmatprep.subr.bf16.mxu0 0
  %382 = vmatpush1.bf16.msra.mxu0 %v277
  %383 = vmatprep.subr.bf16.mxu0 0
  %384 = vmatpush1.bf16.msra.mxu0 %v278
  %385 = vmatprep.subr.bf16.mxu0 0
  %386 = vmatpush1.bf16.msra.mxu0 %v279
  %387 = vmatprep.subr.bf16.mxu0 0
  %388 = vmatpush1.bf16.msra.mxu0 %v280
  %389 = vmatprep.subr.bf16.mxu0 0
  %390 = vmatpush1.bf16.msra.mxu0 %v281
  %391 = vmatprep.subr.bf16.mxu0 0
  %392 = vmatpush1.bf16.msra.mxu0 %v282
  %393 = vmatprep.subr.bf16.mxu0 0
  %394 = vmatpush1.bf16.msra.mxu0 %v283
  %395 = vmatprep.subr.bf16.mxu0 0
  %396 = vmatpush1.bf16.msra.mxu0 %v284
  %397 = vmatprep.mubr.bf16.mxu0 %v49
  %398 = vmatmul.mubr.bf16.gmra.mrb[0].mxu0 %v48
  %v399 = vpop.f32.mrb[0].mxu0
  %v400 = vadd.f32 %v352, %v399
  %v401 = vpop.f32.mrb[0].mxu0
  %v402 = vpop.f32.mrb[0].mxu0
  %v403 = vadd.f32 %v355, %v402
  %v404 = vpop.f32.mrb[0].mxu0
  %405 = vmatprep.mubr.bf16.mxu0 %v53
  %406 = vmatmul.mubr.bf16.gmra.mrb[0].mxu0 %v52
  %v407 = vpop.f32.mrb[0].mxu0
  %v408 = vadd.f32 %v360, %v407
  %v409 = vpop.f32.mrb[0].mxu0
  %v410 = vpop.f32.mrb[0].mxu0
  %v411 = vpop.f32.mrb[0].mxu0
  %412 = vdwg.mxu0
  %v413 = vmax.f32 %v400, 0.0
  %v414 = vmax.f32 %v403, 0.0
  %v415 = vmax.f32 %v408, 0.0
  %v416 = vpack.c.bf16 %v414, %v413
  %v417 = vpack.c.bf16 %v415, %v415
  %v418 = vld [vmem:[%s3] sm:$0xf]
  %v419 = vld [vmem:[%s3 + $0x4] sm:$0xf]
  %v420 = vld [vmem:[%s3 + $0x8] sm:$0xf]
  %v421 = vld [vmem:[%s3 + $0xc] sm:$0xf]
  %v422 = vld [vmem:[%s3 + $0x10] sm:$0xf]
  %v423 = vld [vmem:[%s3 + $0x14] sm:$0xf]
  %v424 = vld [vmem:[%s3 + $0x18] sm:$0xf]
  %v425 = vld [vmem:[%s3 + $0x1c] sm:$0xf]
  %v426 = vld [vmem:[%s4] sm:$0x1]
  %v428 = vlaneseq
  %v429 = vshrl.u32 %v428, 7
  %v430 = vsub.s32 0, %v429
  %v431 = vrot.slane %v426, %v430
  %v441 = vunpack.c.l.b16 %v418
  %v442 = vunpack.c.l.b16 %v419
  %v443 = vunpack.c.l.b16 %v420
  %v444 = vunpack.c.l.b16 %v421
  %v445 = vunpack.c.l.b16 %v422
  %v446 = vunpack.c.l.b16 %v423
  %v447 = vunpack.c.l.b16 %v424
  %v448 = vunpack.c.l.b16 %v425
  %v449 = vpack.c.b16 %v442, %v441
  %v450 = vpack.c.b16 %v444, %v443
  %v451 = vpack.c.b16 %v446, %v445
  %v452 = vpack.c.b16 %v448, %v447
  %vm457 = vcmask 523264
  %v459 = vsel %vm457, %v416, 0
  %v462 = vsel %vm457, %v417, 0
  %464 = vmatprep.subr.bf16.mxu0 0
  %465 = vmatpush1.bf16.msra.mxu0 %v449
  %466 = vmatprep.subr.bf16.mxu0 0
  %467 = vmatpush1.bf16.msra.mxu0 %v450
  %468 = vmatprep.subr.bf16.mxu0 0
  %469 = vmatpush1.bf16.msra.mxu0 %v451
  %470 = vmatprep.subr.bf16.mxu0 0
  %471 = vmatpush1.bf16.msra.mxu0 %v452
  %472 = vmatprep.subr.bf16.mxu0 0
  %473 = vmatpush1.bf16.msra.mxu0 0
  %474 = vmatprep.subr.bf16.mxu0 0
  %475 = vmatpush1.bf16.msra.mxu0 0
  %476 = vmatprep.subr.bf16.mxu0 0
  %477 = vmatpush1.bf16.msra.mxu0 0
  %478 = vmatprep.subr.bf16.mxu0 0
  %479 = vmatpush1.bf16.msra.mxu0 0
  %480 = vmatprep.subr.bf16.mxu0 0
  %481 = vmatpush1.bf16.msra.mxu0 0
  %482 = vmatprep.subr.bf16.mxu0 0
  %483 = vmatpush1.bf16.msra.mxu0 0
  %484 = vmatprep.subr.bf16.mxu0 0
  %485 = vmatpush1.bf16.msra.mxu0 0
  %486 = vmatprep.subr.bf16.mxu0 0
  %487 = vmatpush1.bf16.msra.mxu0 0
  %488 = vmatprep.subr.bf16.mxu0 0
  %489 = vmatpush1.bf16.msra.mxu0 0
  %490 = vmatprep.subr.bf16.mxu0 0
  %491 = vmatpush1.bf16.msra.mxu0 0
  %492 = vmatprep.subr.bf16.mxu0 0
  %493 = vmatpush1.bf16.msra.mxu0 0
  %494 = vmatprep.subr.bf16.mxu0 0
  %495 = vmatpush1.bf16.msra.mxu0 0
  %496 = vmatprep.mubr.bf16.mxu0 0
  %497 = vmatmul.mubr.bf16.gmra.mrb[0].mxu0 %v459
  %v498 = vpop.f32.mrb[0].mxu0
  %v499 = vadd.f32 %v431, %v498
  %v500 = vpop.f32.mrb[0].mxu0
  %v501 = vpop.f32.mrb[0].mxu0
  %v502 = vadd.f32 %v431, %v501
  %v503 = vpop.f32.mrb[0].mxu0
  %504 = vmatprep.mubr.bf16.mxu0 0
  %505 = vmatmul.mubr.bf16.gmra.mrb[0].mxu0 %v462
  %v506 = vpop.f32.mrb[0].mxu0
  %v507 = vadd.f32 %v431, %v506
  %v508 = vpop.f32.mrb[0].mxu0
  %v509 = vpop.f32.mrb[0].mxu0
  %v510 = vpop.f32.mrb[0].mxu0
  %511 = vdwg.mxu0
  %v512 = vmax.f32 %v499, 0.0
  %v513 = vmax.f32 %v502, 0.0
  %v514 = vmax.f32 %v507, 0.0
  %515 = vst.msk [vmem:[%s8] sm:$0xff] %vm457, %v512
  %516 = vst.msk [vmem:[%s8 + $0x8] sm:$0xff] %vm457, %v513
  %517 = vst.msk [vmem:[%s8 + $0x10] sm:$0xff] %vm457, %v514
  %v518 = vpack.c.bf16 %v513, %v512
  %v519 = vpack.c.bf16 %v514, %v514
  %v520 = vld [vmem:[%s5] sm:$0xf]
  %v521 = vld [vmem:[%s5 + $0x4] sm:$0xf]
  %v522 = vld [vmem:[%s5 + $0x8] sm:$0xf]
  %v523 = vld [vmem:[%s5 + $0xc] sm:$0xf]
  %v524 = vld [vmem:[%s5 + $0x10] sm:$0xf]
  %v525 = vld [vmem:[%s5 + $0x14] sm:$0xf]
  %v526 = vld [vmem:[%s5 + $0x18] sm:$0xf]
  %v527 = vld [vmem:[%s5 + $0x1c] sm:$0xf]
  %v528 = vld [vmem:[%s6] sm:$0x1]
  %v530 = vlaneseq
  %v531 = vshrl.u32 %v530, 7
  %v532 = vsub.s32 0, %v531
  %v533 = vrot.slane %v528, %v532
  %v543 = vunpack.c.l.b16 %v520
  %v544 = vunpack.c.l.b16 %v521
  %v545 = vunpack.c.l.b16 %v522
  %v546 = vunpack.c.l.b16 %v523
  %v547 = vunpack.c.l.b16 %v524
  %v548 = vunpack.c.l.b16 %v525
  %v549 = vunpack.c.l.b16 %v526
  %v550 = vunpack.c.l.b16 %v527
  %v551 = vpack.c.b16 %v544, %v543
  %v552 = vpack.c.b16 %v546, %v545
  %v553 = vpack.c.b16 %v548, %v547
  %v554 = vpack.c.b16 %v550, %v549
  %v560 = vsel %vm457, %v518, 0
  %v563 = vsel %vm457, %v519, 0
  %565 = vmatprep.subr.bf16.mxu0 0
  %566 = vmatpush1.bf16.msra.mxu0 %v551
  %567 = vmatprep.subr.bf16.mxu0 0
  %568 = vmatpush1.bf16.msra.mxu0 %v552
  %569 = vmatprep.subr.bf16.mxu0 0
  %570 = vmatpush1.bf16.msra.mxu0 %v553
  %571 = vmatprep.subr.bf16.mxu0 0
  %572 = vmatpush1.bf16.msra.mxu0 %v554
  %573 = vmatprep.subr.bf16.mxu0 0
  %574 = vmatpush1.bf16.msra.mxu0 0
  %575 = vmatprep.subr.bf16.mxu0 0
  %576 = vmatpush1.bf16.msra.mxu0 0
  %577 = vmatprep.subr.bf16.mxu0 0
  %578 = vmatpush1.bf16.msra.mxu0 0
  %579 = vmatprep.subr.bf16.mxu0 0
  %580 = vmatpush1.bf16.msra.mxu0 0
  %581 = vmatprep.subr.bf16.mxu0 0
  %582 = vmatpush1.bf16.msra.mxu0 0
  %583 = vmatprep.subr.bf16.mxu0 0
  %584 = vmatpush1.bf16.msra.mxu0 0
  %585 = vmatprep.subr.bf16.mxu0 0
  %586 = vmatpush1.bf16.msra.mxu0 0
  %587 = vmatprep.subr.bf16.mxu0 0
  %588 = vmatpush1.bf16.msra.mxu0 0
  %589 = vmatprep.subr.bf16.mxu0 0
  %590 = vmatpush1.bf16.msra.mxu0 0
  %591 = vmatprep.subr.bf16.mxu0 0
  %592 = vmatpush1.bf16.msra.mxu0 0
  %593 = vmatprep.subr.bf16.mxu0 0
  %594 = vmatpush1.bf16.msra.mxu0 0
  %595 = vmatprep.subr.bf16.mxu0 0
  %596 = vmatpush1.bf16.msra.mxu0 0
  %597 = vmatprep.mubr.bf16.mxu0 0
  %598 = vmatmul.mubr.bf16.gmra.mrb[0].mxu0 %v560
  %v599 = vpop.f32.mrb[0].mxu0
  %v600 = vadd.f32 %v533, %v599
  %v601 = vpop.f32.mrb[0].mxu0
  %v602 = vpop.f32.mrb[0].mxu0
  %v603 = vadd.f32 %v533, %v602
  %v604 = vpop.f32.mrb[0].mxu0
  %605 = vmatprep.mubr.bf16.mxu0 0
  %606 = vmatmul.mubr.bf16.gmra.mrb[0].mxu0 %v563
  %v607 = vpop.f32.mrb[0].mxu0
  %v608 = vadd.f32 %v533, %v607
  %v609 = vpop.f32.mrb[0].mxu0
  %v610 = vpop.f32.mrb[0].mxu0
  %v611 = vpop.f32.mrb[0].mxu0
  %612 = vdwg.mxu0
  %v613 = vld [vmem:[%s7] sm:$0xff]
  %v614 = vld [vmem:[%s7 + $0x8] sm:$0xff]
  %v615 = vld [vmem:[%s7 + $0x10] sm:$0xff]
  %vm616 = vcmask 31744
  %v617 = vsel %vm616, %v600, -inf
  %618 = vmax.xlane.f32.xlu0 %v617
  %v619 = vpop.xlane.xlu0 %618
  %v620 = vsel %vm616, %v603, -inf
  %621 = vmax.xlane.f32.xlu0 %v620
  %v622 = vpop.xlane.xlu0 %621
  %v623 = vsel %vm616, %v608, -inf
  %624 = vmax.xlane.f32.xlu0 %v623
  %v625 = vpop.xlane.xlu0 %624
  %v626 = vsub.f32 %v600, %v619
  %v627 = vsub.f32 %v603, %v622
  %v628 = vsub.f32 %v608, %v625
  %v629 = vmul.f32 %v626, 1.442695
  %v630 = vpow.pop %v629
  %v631 = vmul.f32 %v627, 1.442695
  %v632 = vpow.pop %v631
  %v633 = vmul.f32 %v628, 1.442695
  %v634 = vpow.pop %v633
  %v635 = vsel %vm616, %v630, 0.0
  %636 = vadd.xlane.f32.xlu0 %v635
  %v637 = vpop.xlane.xlu0 %636
  %v638 = vsel %vm616, %v632, 0.0
  %639 = vadd.xlane.f32.xlu0 %v638
  %v640 = vpop.xlane.xlu0 %639
  %v641 = vsel %vm616, %v634, 0.0
  %642 = vadd.xlane.f32.xlu0 %v641
  %v643 = vpop.xlane.xlu0 %642
  %v644 = vrcp.pop %v637
  %v645 = vmul.f32 %v630, %v644
  %v646 = vrcp.pop %v640
  %v647 = vmul.f32 %v632, %v646
  %v648 = vrcp.pop %v643
  %v649 = vmul.f32 %v634, %v648
  %650 = vst.msk [vmem:[%s9] sm:$0xff] %vm616, %v645
  %651 = vst.msk [vmem:[%s9 + $0x8] sm:$0xff] %vm616, %v647
  %652 = vst.msk [vmem:[%s9 + $0x10] sm:$0xff] %vm616, %v649
  %v653 = vlog2.pop %v637
  %v654 = vmul.f32 %v653, 0.6931472
  %v655 = vlog2.pop %v640
  %v656 = vmul.f32 %v655, 0.6931472
  %v657 = vlog2.pop %v643
  %v658 = vmul.f32 %v657, 0.6931472
  %v659 = vsub.f32 %v626, %v654
  %v660 = vsub.f32 %v627, %v656
  %v661 = vsub.f32 %v628, %v658
  %v662 = vsub.f32 0.0, %v659
  %v663 = vsub.f32 0.0, %v660
  %v664 = vsub.f32 0.0, %v661
  %v665 = vmul.f32 %v613, %v662
  %v666 = vmul.f32 %v614, %v663
  %v667 = vmul.f32 %v615, %v664
  %v668 = vsel %vm616, %v665, 0.0
  %v669 = vsel %vm616, %v666, 0.0
  %v670 = vadd.f32 %v668, %v669
  %v671 = vsel %vm616, %v667, 0.0
  %v672 = vadd.f32 %v670, %v671
  %673 = vadd.xlane.f32.xlu0 %v672
  %v674 = vpop.xlane.xlu0 %673
  %v675 = vrot.slane %v674, 4
  %v676 = vadd.f32 %v674, %v675
  %v677 = vrot.slane %v676, 2
  %v678 = vadd.f32 %v676, %v677
  %v679 = vrot.slane %v678, 1
  %v680 = vadd.f32 %v678, %v679
  %s681 = vtos %v680
  %v682 = vrcp.pop 8.0
  %s683 = vtos %v682
  %s684 = smul.f32 %s681, %s683
  %688 = vrot.lane.b32.xlu0 %v613, 100
  %v689 = vpop.permute.xlu0 %688
  %690 = vrot.lane.b32.xlu0 %v614, 100
  %v691 = vpop.permute.xlu0 %690
  %692 = vrot.lane.b32.xlu0 %v615, 100
  %v693 = vpop.permute.xlu0 %692
  %v697 = vmul.f32 %v600, %v689
  %v698 = vmul.f32 %v603, %v691
  %v699 = vmul.f32 %v608, %v693
  %703 = vrot.lane.b32.xlu0 %v697, 124
  %v704 = vpop.permute.xlu0 %703
  %705 = vrot.lane.b32.xlu0 %v698, 124
  %v706 = vpop.permute.xlu0 %705
  %707 = vrot.lane.b32.xlu0 %v699, 124
  %v708 = vpop.permute.xlu0 %707
  %v712 = vadd.f32 %v697, %v704
  %v713 = vadd.f32 %v698, %v706
  %v714 = vadd.f32 %v699, %v708
  %715 = vrot.lane.b32.xlu0 %v697, 120
  %v716 = vpop.permute.xlu0 %715
  %717 = vrot.lane.b32.xlu0 %v698, 120
  %v718 = vpop.permute.xlu0 %717
  %719 = vrot.lane.b32.xlu0 %v699, 120
  %v720 = vpop.permute.xlu0 %719
  %v724 = vadd.f32 %v712, %v716
  %v725 = vadd.f32 %v713, %v718
  %v726 = vadd.f32 %v714, %v720
  %727 = vrot.lane.b32.xlu0 %v697, 116
  %v728 = vpop.permute.xlu0 %727
  %729 = vrot.lane.b32.xlu0 %v698, 116
  %v730 = vpop.permute.xlu0 %729
  %731 = vrot.lane.b32.xlu0 %v699, 116
  %v732 = vpop.permute.xlu0 %731
  %v736 = vadd.f32 %v724, %v728
  %v737 = vadd.f32 %v725, %v730
  %v738 = vadd.f32 %v726, %v732
  %742 = vrot.lane.b32.xlu0 %v736, 124
  %v743 = vpop.permute.xlu0 %742
  %744 = vrot.lane.b32.xlu0 %v737, 124
  %v745 = vpop.permute.xlu0 %744
  %746 = vrot.lane.b32.xlu0 %v738, 124
  %v747 = vpop.permute.xlu0 %746
  %751 = vst.msk [vmem:[%s10] sm:$0xff] %vm616, %v743
  %752 = vst.msk [vmem:[%s10 + $0x8] sm:$0xff] %vm616, %v745
  %753 = vst.msk [vmem:[%s10 + $0x10] sm:$0xff] %vm616, %v747
  %754 = vrot.lane.b32.xlu0 %v613, 124
  %v755 = vpop.permute.xlu0 %754
  %756 = vrot.lane.b32.xlu0 %v614, 124
  %v757 = vpop.permute.xlu0 %756
  %758 = vrot.lane.b32.xlu0 %v615, 124
  %v759 = vpop.permute.xlu0 %758
  %v763 = vsub.f32 %v736, %v755
  %v764 = vsub.f32 %v737, %v757
  %v765 = vsub.f32 %v738, %v759
  %769 = vrot.lane.b32.xlu0 %v763, 12
  %v770 = vpop.permute.xlu0 %769
  %771 = vrot.lane.b32.xlu0 %v764, 12
  %v772 = vpop.permute.xlu0 %771
  %773 = vrot.lane.b32.xlu0 %v765, 12
  %v774 = vpop.permute.xlu0 %773
  %v778 = vmul.f32 %v613, %v770
  %v779 = vmul.f32 %v614, %v772
  %v780 = vmul.f32 %v615, %v774
  %v781 = vand.u32 2147483647, %v778
  %v782 = vand.u32 2147483647, %v779
  %v783 = vand.u32 2147483647, %v780
  %vm784 = vcmp.lt.f32.partialorder %v781, 1.0
  %vm785 = vcmp.lt.f32.partialorder %v782, 1.0
  %vm786 = vcmp.lt.f32.partialorder %v783, 1.0
  %v787 = vsel %vm784, 1, 0
  %v788 = vsel %vm785, 1, 0
  %v789 = vsel %vm786, 1, 0
  %v790 = vcvt.s32.f32 %v787
  %v791 = vcvt.s32.f32 %v788
  %v792 = vcvt.s32.f32 %v789
  %v793 = vmul.f32 %v790, 0.5
  %v794 = vmul.f32 %v791, 0.5
  %v795 = vmul.f32 %v792, 0.5
  %v796 = vmul.f32 %v793, %v778
  %v797 = vmul.f32 %v794, %v779
  %v798 = vmul.f32 %v795, %v780
  %v799 = vmul.f32 %v796, %v778
  %v800 = vmul.f32 %v797, %v779
  %v801 = vmul.f32 %v798, %v780
  %v802 = vsub.f32 1.0, %v790
  %v803 = vsub.f32 1.0, %v791
  %v804 = vsub.f32 1.0, %v792
  %v805 = vsub.f32 %v781, 0.5
  %v806 = vsub.f32 %v782, 0.5
  %v807 = vsub.f32 %v783, 0.5
  %v808 = vmul.f32 %v802, %v805
  %v809 = vmul.f32 %v803, %v806
  %v810 = vmul.f32 %v804, %v807
  %v811 = vadd.f32 %v799, %v808
  %v812 = vadd.f32 %v800, %v809
  %v813 = vadd.f32 %v801, %v810
  %817 = vrot.lane.b32.xlu0 %v811, 8
  %v818 = vpop.permute.xlu0 %817
  %819 = vrot.lane.b32.xlu0 %v812, 8
  %v820 = vpop.permute.xlu0 %819
  %821 = vrot.lane.b32.xlu0 %v813, 8
  %v822 = vpop.permute.xlu0 %821
  %v826 = vmul.f32 %v613, %v818
  %v827 = vmul.f32 %v614, %v820
  %v828 = vmul.f32 %v615, %v822
  %832 = vrot.lane.b32.xlu0 %v826, 104
  %v833 = vpop.permute.xlu0 %832
  %834 = vrot.lane.b32.xlu0 %v827, 104
  %v835 = vpop.permute.xlu0 %834
  %836 = vrot.lane.b32.xlu0 %v828, 104
  %v837 = vpop.permute.xlu0 %836
  %v841 = vsel %vm616, %v833, 0.0
  %v842 = vsel %vm616, %v835, 0.0
  %v843 = vadd.f32 %v841, %v842
  %v844 = vsel %vm616, %v837, 0.0
  %v845 = vadd.f32 %v843, %v844
  %846 = vadd.xlane.f32.xlu0 %v845
  %v847 = vpop.xlane.xlu0 %846
  %v848 = vrot.slane %v847, 4
  %v849 = vadd.f32 %v847, %v848
  %v850 = vrot.slane %v849, 2
  %v851 = vadd.f32 %v849, %v850
  %v852 = vrot.slane %v851, 1
  %v853 = vadd.f32 %v851, %v852
  %s854 = vtos %v853
  %v855 = vrcp.pop 8.0
  %s856 = vtos %v855
  %s857 = smul.f32 %s854, %s856
  %v858 = vlaneseq
  %v859 = vand.u32 %v858, 127
  %vm860 = vcmp.eq.s32.totalorder %v859, 0
  %v861 = vstv %s684
  %v862 = vsel %vm860, %v861, 0.0
  %v863 = vadd.f32 %v862, 0.0
  %vm864 = vcmp.eq.s32.totalorder %v859, 1
  %v865 = vstv %s857
  %v866 = vsel %vm864, %v865, 0.0
  %v867 = vadd.f32 %v863, %v866
  %868 = vst [vmem:[%s11] sm:$0x1] %v867
  // Predicated region
  $region34: #{faster_rcnn_forward.6} parent=0 // pred_check
    _
  $region35: #{faster_rcnn_forward.6} parent=0 // pred_check_branch
    %870 = sbr.rel (0) target = $region37
  $region36: #{faster_rcnn_forward.6} parent=0 // pred_region
    _
  $region37: #{faster_rcnn_forward.6} parent=0 // pred_fallthru
    _
  // Predicated region
  $region38: #{faster_rcnn_forward.6} parent=0 // pred_check
    _
  $region39: #{faster_rcnn_forward.6} parent=0 // pred_check_branch
    %872 = sbr.rel (0) target = $region41
  $region40: #{faster_rcnn_forward.6} parent=0 // pred_region
    _
  $region41: #{faster_rcnn_forward.6} parent=0 // pred_fallthru
    _
  // Predicated region
  $region42: #{faster_rcnn_forward.6} parent=0 // pred_check
    _
  $region43: #{faster_rcnn_forward.6} parent=0 // pred_check_branch
    %874 = sbr.rel (0) target = $region45
  $region44: #{faster_rcnn_forward.6} parent=0 // pred_region
    _
  $region45: #{faster_rcnn_forward.6} parent=0 // pred_fallthru
    _
  // Predicated region
  $region46: #{faster_rcnn_forward.6} parent=0 // pred_check
    _
  $region47: #{faster_rcnn_forward.6} parent=0 // pred_check_branch
    %876 = sbr.rel (0) target = $region49
  $region48: #{faster_rcnn_forward.6} parent=0 // pred_region
    _
  $region49: #{faster_rcnn_forward.6} parent=0 // pred_fallthru
    _
  // Predicated region
  $region50: #{faster_rcnn_forward.6} parent=0 // pred_check
    _
  $region51: #{faster_rcnn_forward.6} parent=0 // pred_check_branch
    %878 = sbr.rel (0) target = $region53
  $region52: #{faster_rcnn_forward.6} parent=0 // pred_region
    _
  $region53: #{faster_rcnn_forward.6} parent=0 // pred_fallthru
    _
  // Predicated region
  $region54: #{faster_rcnn_forward.6} parent=0 // pred_check
    _
  $region55: #{faster_rcnn_forward.6} parent=0 // pred_check_branch
    %880 = sbr.rel (0) target = $region57
  $region56: #{faster_rcnn_forward.6} parent=0 // pred_region
    _
  $region57: #{faster_rcnn_forward.6} parent=0 // pred_fallthru
    _
  // Predicated region
  $region58: #{faster_rcnn_forward.6} parent=0 // pred_check
    _
  $region59: #{faster_rcnn_forward.6} parent=0 // pred_check_branch
    %882 = sbr.rel (0) target = $region61
  $region60: #{faster_rcnn_forward.6} parent=0 // pred_region
    _
  $region61: #{faster_rcnn_forward.6} parent=0 // pred_fallthru
    _
  // Predicated region
  $region62: #{faster_rcnn_forward.6} parent=0 // pred_check
    _
  $region63: #{faster_rcnn_forward.6} parent=0 // pred_check_branch
    %884 = sbr.rel (0) target = $region65
  $region64: #{faster_rcnn_forward.6} parent=0 // pred_region
    _
  $region65: #{faster_rcnn_forward.6} parent=0 // pred_fallthru
    _

// kernel: faster_rcnn_forward.7
$region0: #{faster_rcnn_forward.7}
  #allocation0 [shape = 'u32[]', space=smem, size = 0x4, offset = 0x4, fixed_abs, tag = 'smem constant byte address 0x4 - core index']
  #allocation1 [shape = 'u32[144,128]{1,0:T(1,128)}', space=vmem, size = 0x12000, scoped, tag = 'internal scratch']
  #allocation2 [shape = 's32[1]{0}', space=sflag, size = 0x4, scoped, tag = 'scoped memory for faster_rcnn_forward.7']
  #allocation3 [shape = 'u8[2048]{0}', space=smem, size = 0x800, scoped, tag = 'prefetched SMEM operand 0']
  %s0 = inlined_call_operand.vmem [shape: s32[3,2], index: 0, kind: input, shape index: {}]
  %s1 = inlined_call_operand.vmem [shape: f32[3,64,32], index: 1, kind: input, shape index: {}]
  %s2 = inlined_call_operand.vmem [shape: f32[3,8,64], index: 2, kind: input, shape index: {}]
  %s3 = inlined_call_operand.vmem [shape: bf16[3,32,32], index: 3, kind: input, shape index: {}]
  %s4 = inlined_call_operand.vmem [shape: f32[3,1,32], index: 4, kind: input, shape index: {}]
  %s5 = inlined_call_operand.vmem [shape: bf16[3,32,128], index: 5, kind: input, shape index: {}]
  %s6 = inlined_call_operand.vmem [shape: f32[3,1,128], index: 6, kind: input, shape index: {}]
  %s7 = inlined_call_operand.vmem [shape: bf16[3,64,32], index: 7, kind: input, shape index: {}]
  %s8 = inlined_call_operand.vmem [shape: f32[3,1,32], index: 8, kind: input, shape index: {}]
  %s9 = inlined_call_operand.vmem [shape: bf16[3,32,32], index: 9, kind: input, shape index: {}]
  %s10 = inlined_call_operand.vmem [shape: f32[3,1,32], index: 10, kind: input, shape index: {}]
  %s11 = inlined_call_operand.vmem [shape: bf16[3,32,128], index: 11, kind: input, shape index: {}]
  %s12 = inlined_call_operand.vmem [shape: f32[3,1,128], index: 12, kind: input, shape index: {}]
  %s13 = inlined_call_operand.vmem [shape: f32[6,1,128], index: 13, kind: output, shape index: {}]
  %s14 = sld [smem:[#allocation0]]
  $region81: #{faster_rcnn_forward.7} parent=0
    _
  %s16 = ssub.s32 1, %s14
  %s17 = scalar_select 0, %s16, %s14
  %s18 = sshll.u32 %s0, 4
  %s19 = int_to_ptr.vmem [resolvable:$true] %s18
  %21 = dma.vmem_to_smem %s19, 64, [#allocation3], [#allocation2]
  %22 = dma.done [#allocation2], 64
  %23 = sfence
  loop: start=0, step=1, limit=8
  $region2: #{faster_rcnn_forward.7} parent=0 // loop_pre_header
    _
  $region3: #{faster_rcnn_forward.7} parent=0 // loop_header
    %s25 = sphi 0, %s29
    %p26 = scmp.ge.s32.totalorder %s25, 8
    %s32 = sphi 0, %s44
    %s33 = sphi 0, %s40
    %s34 = sphi 0, %s32
    %s35 = sphi 0, %s33
    %s36 = sphi 0, %s34
    %s37 = sphi 0, %s35
    %s63 = sphi 0, %s65
    %s66 = sphi 0, %s63
    %s67 = sphi 0, %s66
    %s83 = sphi 0, %s67
    %s105 = sphi 0, %s107
    %s108 = sphi 0, %s105
    %s109 = sphi 0, %s108
    %s125 = sphi 0, %s109
    %s131 = sphi 0, %s133
    %s134 = sphi 0, %s131
    %s135 = sphi 0, %s134
    %s151 = sphi 0, %s135
    %s157 = sphi 0, %s159
    %s160 = sphi 0, %s157
    %s161 = sphi 0, %s160
    %s177 = sphi 0, %s161
    %s183 = sphi 0, %s185
    %s186 = sphi 0, %s183
    %s187 = sphi 0, %s186
    %s203 = sphi 0, %s187
    %s209 = sphi 0, %s211
    %s212 = sphi 0, %s209
    %s213 = sphi 0, %s212
    %s229 = sphi 0, %s213
    %s235 = sphi 0, %s237
    %s238 = sphi 0, %s235
    %s239 = sphi 0, %s238
    %s255 = sphi 0, %s239
    %s261 = sphi 0, %s263
    %s264 = sphi 0, %s261
    %s265 = sphi 0, %s264
    %s281 = sphi 0, %s265
    %s287 = sphi 0, %s289
    %s290 = sphi 0, %s287
    %s291 = sphi 0, %s290
    %s307 = sphi 0, %s291
    %s313 = sphi 0, %s315
    %s316 = sphi 0, %s313
    %s317 = sphi 0, %s316
    %s333 = sphi 0, %s317
    %s339 = sphi 0, %s341
    %s342 = sphi 0, %s339
    %s343 = sphi 0, %s342
    %s359 = sphi 0, %s343
    %s365 = sphi 0, %s367
    %s368 = sphi 0, %s365
    %s369 = sphi 0, %s368
    %s385 = sphi 0, %s369
    %s395 = sphi 0, %s397
    %s398 = sphi 0, %s395
    %s399 = sphi 0, %s398
    %s415 = sphi 0, %s399
  $region4: #{faster_rcnn_forward.7} parent=0 // loop_header_branch
    %28 = sbr.rel (%p26) target = $region8
  $region5: #{faster_rcnn_forward.7} parent=0 // loop_body
    %s30 = ssub.s32 %s25, 1
    %s31 = ssub.s32 %s25, 2
    %s38 = sadd.s32 1, %s33
    %p39 = scmp.ge.s32.totalorder %s38, 2
    %s40 = scalar_select %p39, 0, %s38
    %s41 = sadd.s32 1, %s32
    %s42 = scalar_select %p39, %s41, %s32
    %p43 = scmp.ge.s32.totalorder %s42, 3
    %s44 = scalar_select %p43, 0, %s42
    %s45 = sshra.s32 %s33, 7
    %s46 = sand.u32 %s33, 127
    %s47 = sadd.s32 %s45, %s32
    %s48 = smul.u32 %s47, 128
    %s49 = sshra.s32 %s33, 7
    %s50 = sand.u32 %s33, 127
    %s51 = sadd.s32 %s48, %s50
    %s52 = sld [smem:[#allocation3 + %s51]]
    %s53 = sshra.s32 %s40, 7
    %s54 = sand.u32 %s40, 127
    %s55 = sadd.s32 %s53, %s44
    %s56 = smul.u32 %s55, 128
    %s57 = sshra.s32 %s40, 7
    %s58 = sand.u32 %s40, 127
    %s59 = sadd.s32 %s56, %s58
    %s60 = sld [smem:[#allocation3 + %s59]]
    %s61 = ssub.s32 %s52, %s60
    %p62 = scmp.eq.s32.totalorder %s61, 0
    %s64 = sadd.s32 %s63, 1
    %s65 = scalar_select %p62, %s63, %s64
    %p68 = pneg %p62
    %p69 = scmp.eq.s32.totalorder %s25, 5
    %p70 = por %p68, %p69
    %p71 = scmp.ne.s32.totalorder %s63, %s66
    %p72 = scmp.eq.s32.totalorder %s25, 0
    %p73 = por %p71, %p72
    %p74 = scmp.ne.s32.totalorder %s63, %s66
    %p75 = scmp.eq.s32.totalorder %s30, 5
    %p76 = por %p74, %p75
    %p77 = scmp.ne.s32.totalorder %s66, %s67
    %p78 = scmp.eq.s32.totalorder %s30, 0
    %p79 = por %p77, %p78
    %p80 = scmp.ne.s32.totalorder %s66, %s67
    %p81 = scmp.eq.s32.totalorder %s31, 5
    %p82 = por %p80, %p81
    %p84 = scmp.ne.s32.totalorder %s67, %s83
    %p85 = scmp.eq.s32.totalorder %s31, 0
    %p86 = por %p84, %p85
    %s87 = sshra.s32 %s33, 7
    %s88 = sand.u32 %s33, 127
    %s89 = sadd.s32 %s87, %s32
    %s90 = smul.u32 %s89, 128
    %s91 = sshra.s32 %s33, 7
    %s92 = sand.u32 %s33, 127
    %s93 = sadd.s32 %s90, %s92
    %s94 = sld [smem:[#allocation3 + %s93]]
    %s95 = sshra.s32 %s40, 7
    %s96 = sand.u32 %s40, 127
    %s97 = sadd.s32 %s95, %s44
    %s98 = smul.u32 %s97, 128
    %s99 = sshra.s32 %s40, 7
    %s100 = sand.u32 %s40, 127
    %s101 = sadd.s32 %s98, %s100
    %s102 = sld [smem:[#allocation3 + %s101]]
    %s103 = ssub.s32 %s94, %s102
    %p104 = scmp.eq.s32.totalorder %s103, 0
    %s106 = sadd.s32 %s105, 1
    %s107 = scalar_select %p104, %s105, %s106
    %p110 = pneg %p104
    %p111 = scmp.eq.s32.totalorder %s25, 5
    %p112 = por %p110, %p111
    %p113 = scmp.ne.s32.totalorder %s105, %s108
    %p114 = scmp.eq.s32.totalorder %s25, 0
    %p115 = por %p113, %p114
    %p116 = scmp.ne.s32.totalorder %s105, %s108
    %p117 = scmp.eq.s32.totalorder %s30, 5
    %p118 = por %p116, %p117
    %p119 = scmp.ne.s32.totalorder %s108, %s109
    %p120 = scmp.eq.s32.totalorder %s30, 0
    %p121 = por %p119, %p120
    %p122 = scmp.ne.s32.totalorder %s108, %s109
    %p123 = scmp.eq.s32.totalorder %s31, 5
    %p124 = por %p122, %p123
    %p126 = scmp.ne.s32.totalorder %s109, %s125
    %p127 = scmp.eq.s32.totalorder %s31, 0
    %p128 = por %p126, %p127
    %s129 = ssub.s32 %s32, %s44
    %p130 = scmp.eq.s32.totalorder %s129, 0
    %s132 = sadd.s32 %s131, 1
    %s133 = scalar_select %p130, %s131, %s132
    %p136 = pneg %p130
    %p137 = scmp.eq.s32.totalorder %s25, 5
    %p138 = por %p136, %p137
    %p139 = scmp.ne.s32.totalorder %s131, %s134
    %p140 = scmp.eq.s32.totalorder %s25, 0
    %p141 = por %p139, %p140
    %p142 = scmp.ne.s32.totalorder %s131, %s134
    %p143 = scmp.eq.s32.totalorder %s30, 5
    %p144 = por %p142, %p143
    %p145 = scmp.ne.s32.totalorder %s134, %s135
    %p146 = scmp.eq.s32.totalorder %s30, 0
    %p147 = por %p145, %p146
    %p148 = scmp.ne.s32.totalorder %s134, %s135
    %p149 = scmp.eq.s32.totalorder %s31, 5
    %p150 = por %p148, %p149
    %p152 = scmp.ne.s32.totalorder %s135, %s151
    %p153 = scmp.eq.s32.totalorder %s31, 0
    %p154 = por %p152, %p153
    %s155 = ssub.s32 %s32, %s44
    %p156 = scmp.eq.s32.totalorder %s155, 0
    %s158 = sadd.s32 %s157, 1
    %s159 = scalar_select %p156, %s157, %s158
    %p162 = pneg %p156
    %p163 = scmp.eq.s32.totalorder %s25, 5
    %p164 = por %p162, %p163
    %p165 = scmp.ne.s32.totalorder %s157, %s160
    %p166 = scmp.eq.s32.totalorder %s25, 0
    %p167 = por %p165, %p166
    %p168 = scmp.ne.s32.totalorder %s157, %s160
    %p169 = scmp.eq.s32.totalorder %s30, 5
    %p170 = por %p168, %p169
    %p171 = scmp.ne.s32.totalorder %s160, %s161
    %p172 = scmp.eq.s32.totalorder %s30, 0
    %p173 = por %p171, %p172
    %p174 = scmp.ne.s32.totalorder %s160, %s161
    %p175 = scmp.eq.s32.totalorder %s31, 5
    %p176 = por %p174, %p175
    %p178 = scmp.ne.s32.totalorder %s161, %s177
    %p179 = scmp.eq.s32.totalorder %s31, 0
    %p180 = por %p178, %p179
    %s181 = ssub.s32 %s32, %s44
    %p182 = scmp.eq.s32.totalorder %s181, 0
    %s184 = sadd.s32 %s183, 1
    %s185 = scalar_select %p182, %s183, %s184
    %p188 = pneg %p182
    %p189 = scmp.eq.s32.totalorder %s25, 5
    %p190 = por %p188, %p189
    %p191 = scmp.ne.s32.totalorder %s183, %s186
    %p192 = scmp.eq.s32.totalorder %s25, 0
    %p193 = por %p191, %p192
    %p194 = scmp.ne.s32.totalorder %s183, %s186
    %p195 = scmp.eq.s32.totalorder %s30, 5
    %p196 = por %p194, %p195
    %p197 = scmp.ne.s32.totalorder %s186, %s187
    %p198 = scmp.eq.s32.totalorder %s30, 0
    %p199 = por %p197, %p198
    %p200 = scmp.ne.s32.totalorder %s186, %s187
    %p201 = scmp.eq.s32.totalorder %s31, 5
    %p202 = por %p200, %p201
    %p204 = scmp.ne.s32.totalorder %s187, %s203
    %p205 = scmp.eq.s32.totalorder %s31, 0
    %p206 = por %p204, %p205
    %s207 = ssub.s32 %s32, %s44
    %p208 = scmp.eq.s32.totalorder %s207, 0
    %s210 = sadd.s32 %s209, 1
    %s211 = scalar_select %p208, %s209, %s210
    %p214 = pneg %p208
    %p215 = scmp.eq.s32.totalorder %s25, 5
    %p216 = por %p214, %p215
    %p217 = scmp.ne.s32.totalorder %s209, %s212
    %p218 = scmp.eq.s32.totalorder %s25, 0
    %p219 = por %p217, %p218
    %p220 = scmp.ne.s32.totalorder %s209, %s212
    %p221 = scmp.eq.s32.totalorder %s30, 5
    %p222 = por %p220, %p221
    %p223 = scmp.ne.s32.totalorder %s212, %s213
    %p224 = scmp.eq.s32.totalorder %s30, 0
    %p225 = por %p223, %p224
    %p226 = scmp.ne.s32.totalorder %s212, %s213
    %p227 = scmp.eq.s32.totalorder %s31, 5
    %p228 = por %p226, %p227
    %p230 = scmp.ne.s32.totalorder %s213, %s229
    %p231 = scmp.eq.s32.totalorder %s31, 0
    %p232 = por %p230, %p231
    %s233 = ssub.s32 %s32, %s44
    %p234 = scmp.eq.s32.totalorder %s233, 0
    %s236 = sadd.s32 %s235, 1
    %s237 = scalar_select %p234, %s235, %s236
    %p240 = pneg %p234
    %p241 = scmp.eq.s32.totalorder %s25, 5
    %p242 = por %p240, %p241
    %p243 = scmp.ne.s32.totalorder %s235, %s238
    %p244 = scmp.eq.s32.totalorder %s25, 0
    %p245 = por %p243, %p244
    %p246 = scmp.ne.s32.totalorder %s235, %s238
    %p247 = scmp.eq.s32.totalorder %s30, 5
    %p248 = por %p246, %p247
    %p249 = scmp.ne.s32.totalorder %s238, %s239
    %p250 = scmp.eq.s32.totalorder %s30, 0
    %p251 = por %p249, %p250
    %p252 = scmp.ne.s32.totalorder %s238, %s239
    %p253 = scmp.eq.s32.totalorder %s31, 5
    %p254 = por %p252, %p253
    %p256 = scmp.ne.s32.totalorder %s239, %s255
    %p257 = scmp.eq.s32.totalorder %s31, 0
    %p258 = por %p256, %p257
    %s259 = ssub.s32 %s32, %s44
    %p260 = scmp.eq.s32.totalorder %s259, 0
    %s262 = sadd.s32 %s261, 1
    %s263 = scalar_select %p260, %s261, %s262
    %p266 = pneg %p260
    %p267 = scmp.eq.s32.totalorder %s25, 5
    %p268 = por %p266, %p267
    %p269 = scmp.ne.s32.totalorder %s261, %s264
    %p270 = scmp.eq.s32.totalorder %s25, 0
    %p271 = por %p269, %p270
    %p272 = scmp.ne.s32.totalorder %s261, %s264
    %p273 = scmp.eq.s32.totalorder %s30, 5
    %p274 = por %p272, %p273
    %p275 = scmp.ne.s32.totalorder %s264, %s265
    %p276 = scmp.eq.s32.totalorder %s30, 0
    %p277 = por %p275, %p276
    %p278 = scmp.ne.s32.totalorder %s264, %s265
    %p279 = scmp.eq.s32.totalorder %s31, 5
    %p280 = por %p278, %p279
    %p282 = scmp.ne.s32.totalorder %s265, %s281
    %p283 = scmp.eq.s32.totalorder %s31, 0
    %p284 = por %p282, %p283
    %s285 = ssub.s32 %s32, %s44
    %p286 = scmp.eq.s32.totalorder %s285, 0
    %s288 = sadd.s32 %s287, 1
    %s289 = scalar_select %p286, %s287, %s288
    %p292 = pneg %p286
    %p293 = scmp.eq.s32.totalorder %s25, 5
    %p294 = por %p292, %p293
    %p295 = scmp.ne.s32.totalorder %s287, %s290
    %p296 = scmp.eq.s32.totalorder %s25, 0
    %p297 = por %p295, %p296
    %p298 = scmp.ne.s32.totalorder %s287, %s290
    %p299 = scmp.eq.s32.totalorder %s30, 5
    %p300 = por %p298, %p299
    %p301 = scmp.ne.s32.totalorder %s290, %s291
    %p302 = scmp.eq.s32.totalorder %s30, 0
    %p303 = por %p301, %p302
    %p304 = scmp.ne.s32.totalorder %s290, %s291
    %p305 = scmp.eq.s32.totalorder %s31, 5
    %p306 = por %p304, %p305
    %p308 = scmp.ne.s32.totalorder %s291, %s307
    %p309 = scmp.eq.s32.totalorder %s31, 0
    %p310 = por %p308, %p309
    %s311 = ssub.s32 %s32, %s44
    %p312 = scmp.eq.s32.totalorder %s311, 0
    %s314 = sadd.s32 %s313, 1
    %s315 = scalar_select %p312, %s313, %s314
    %p318 = pneg %p312
    %p319 = scmp.eq.s32.totalorder %s25, 5
    %p320 = por %p318, %p319
    %p321 = scmp.ne.s32.totalorder %s313, %s316
    %p322 = scmp.eq.s32.totalorder %s25, 0
    %p323 = por %p321, %p322
    %p324 = scmp.ne.s32.totalorder %s313, %s316
    %p325 = scmp.eq.s32.totalorder %s30, 5
    %p326 = por %p324, %p325
    %p327 = scmp.ne.s32.totalorder %s316, %s317
    %p328 = scmp.eq.s32.totalorder %s30, 0
    %p329 = por %p327, %p328
    %p330 = scmp.ne.s32.totalorder %s316, %s317
    %p331 = scmp.eq.s32.totalorder %s31, 5
    %p332 = por %p330, %p331
    %p334 = scmp.ne.s32.totalorder %s317, %s333
    %p335 = scmp.eq.s32.totalorder %s31, 0
    %p336 = por %p334, %p335
    %s337 = ssub.s32 %s32, %s44
    %p338 = scmp.eq.s32.totalorder %s337, 0
    %s340 = sadd.s32 %s339, 1
    %s341 = scalar_select %p338, %s339, %s340
    %p344 = pneg %p338
    %p345 = scmp.eq.s32.totalorder %s25, 5
    %p346 = por %p344, %p345
    %p347 = scmp.ne.s32.totalorder %s339, %s342
    %p348 = scmp.eq.s32.totalorder %s25, 0
    %p349 = por %p347, %p348
    %p350 = scmp.ne.s32.totalorder %s339, %s342
    %p351 = scmp.eq.s32.totalorder %s30, 5
    %p352 = por %p350, %p351
    %p353 = scmp.ne.s32.totalorder %s342, %s343
    %p354 = scmp.eq.s32.totalorder %s30, 0
    %p355 = por %p353, %p354
    %p356 = scmp.ne.s32.totalorder %s342, %s343
    %p357 = scmp.eq.s32.totalorder %s31, 5
    %p358 = por %p356, %p357
    %p360 = scmp.ne.s32.totalorder %s343, %s359
    %p361 = scmp.eq.s32.totalorder %s31, 0
    %p362 = por %p360, %p361
    %s363 = ssub.s32 %s32, %s44
    %p364 = scmp.eq.s32.totalorder %s363, 0
    %s366 = sadd.s32 %s365, 1
    %s367 = scalar_select %p364, %s365, %s366
    %p370 = pneg %p364
    %p371 = scmp.eq.s32.totalorder %s25, 5
    %p372 = por %p370, %p371
    %p373 = scmp.ne.s32.totalorder %s365, %s368
    %p374 = scmp.eq.s32.totalorder %s25, 0
    %p375 = por %p373, %p374
    %p376 = scmp.ne.s32.totalorder %s365, %s368
    %p377 = scmp.eq.s32.totalorder %s30, 5
    %p378 = por %p376, %p377
    %p379 = scmp.ne.s32.totalorder %s368, %s369
    %p380 = scmp.eq.s32.totalorder %s30, 0
    %p381 = por %p379, %p380
    %p382 = scmp.ne.s32.totalorder %s368, %s369
    %p383 = scmp.eq.s32.totalorder %s31, 5
    %p384 = por %p382, %p383
    %p386 = scmp.ne.s32.totalorder %s369, %s385
    %p387 = scmp.eq.s32.totalorder %s31, 0
    %p388 = por %p386, %p387
    %s389 = smul.u32 %s32, 2
    %s390 = sadd.s32 %s389, %s33
    %s391 = smul.u32 %s44, 2
    %s392 = sadd.s32 %s391, %s40
    %s393 = ssub.s32 %s390, %s392
    %p394 = scmp.eq.s32.totalorder %s393, 0
    %s396 = sadd.s32 %s395, 1
    %s397 = scalar_select %p394, %s395, %s396
    %p400 = pneg %p394
    %p401 = scmp.eq.s32.totalorder %s25, 5
    %p402 = por %p400, %p401
    %p403 = scmp.ne.s32.totalorder %s395, %s398
    %p404 = scmp.eq.s32.totalorder %s25, 0
    %p405 = por %p403, %p404
    %p406 = scmp.ne.s32.totalorder %s395, %s398
    %p407 = scmp.eq.s32.totalorder %s30, 5
    %p408 = por %p406, %p407
    %p409 = scmp.ne.s32.totalorder %s398, %s399
    %p410 = scmp.eq.s32.totalorder %s30, 0
    %p411 = por %p409, %p410
    %p412 = scmp.ne.s32.totalorder %s398, %s399
    %p413 = scmp.eq.s32.totalorder %s31, 5
    %p414 = por %p412, %p413
    %p416 = scmp.ne.s32.totalorder %s399, %s415
    %p417 = scmp.eq.s32.totalorder %s31, 0
    %p418 = por %p416, %p417
    %p419 = scmp.le.s32.totalorder 1, %s25
    %p420 = scmp.lt.s32.totalorder %s25, 7
    %p421 = pnand %p419, %p420
    %p422 = pneg %p421
    // Predicated region
    $region9: #{faster_rcnn_forward.7} parent=5 // pred_check
      _
    $region10: #{faster_rcnn_forward.7} parent=5 // pred_check_branch
      %424 = sbr.rel (%p421) target = $region12
    $region11: #{faster_rcnn_forward.7} parent=5 // pred_region
      %s425 = ssub.s32 %s25, 1
    $region12: #{faster_rcnn_forward.7} parent=5 // pred_fallthru
      _
    %p426 = scmp.lt.s32.totalorder %s25, 6
    // Predicated region
    $region13: #{faster_rcnn_forward.7} parent=5 // pred_check
      %p427 = pneg %p426
    $region14: #{faster_rcnn_forward.7} parent=5 // pred_check_branch
      %429 = sbr.rel (%p427) target = $region16
    $region15: #{faster_rcnn_forward.7} parent=5 // pred_region
      // Predicated region
      $region17: #{faster_rcnn_forward.7} parent=15 // pred_check
        %p430 = pneg %p73
      $region18: #{faster_rcnn_forward.7} parent=15 // pred_check_branch
        %432 = sbr.rel (%p430) target = $region20
      $region19: #{faster_rcnn_forward.7} parent=15 // pred_region
        %s433 = sshra.s32 %s33, 7
        %s434 = sand.u32 %s33, 127
        %s435 = sadd.s32 %s433, %s32
        %s436 = smul.u32 %s435, 128
        %s437 = sshra.s32 %s33, 7
        %s438 = sand.u32 %s33, 127
        %s439 = sadd.s32 %s436, %s438
        %s440 = sld [smem:[#allocation3 + %s439]]
        %p441 = scmp.lt.s32.totalorder %s440, 2
        %s442 = scalar_select %p441, %s440, 2
        %s443 = smul.addr %s442, 8
        %s444 = smul.addr %s443, 8
        %s445 = scalar_lea.vmem %s1, %s444
        %s446 = sshra.s32 %s33, 7
        %s447 = sand.u32 %s33, 127
        %s448 = sadd.s32 %s446, %s32
        %s449 = smul.u32 %s448, 128
        %s450 = sshra.s32 %s33, 7
        %s451 = sand.u32 %s33, 127
        %s452 = sadd.s32 %s449, %s451
        %s453 = sld [smem:[#allocation3 + %s452]]
      $region20: #{faster_rcnn_forward.7} parent=15 // pred_fallthru
        _
      // Predicated region
      $region21: #{faster_rcnn_forward.7} parent=15 // pred_check
        %p454 = pneg %p115
      $region22: #{faster_rcnn_forward.7} parent=15 // pred_check_branch
        %456 = sbr.rel (%p454) target = $region24
      $region23: #{faster_rcnn_forward.7} parent=15 // pred_region
        %s457 = sshra.s32 %s33, 7
        %s458 = sand.u32 %s33, 127
        %s459 = sadd.s32 %s457, %s32
        %s460 = smul.u32 %s459, 128
        %s461 = sshra.s32 %s33, 7
        %s462 = sand.u32 %s33, 127
        %s463 = sadd.s32 %s460, %s462
        %s464 = sld [smem:[#allocation3 + %s463]]
        %p465 = scmp.lt.s32.totalorder %s464, 2
        %s466 = scalar_select %p465, %s464, 2
        %s467 = smul.addr %s466, 8
        %s468 = scalar_lea.vmem %s2, %s467
        %s469 = sshra.s32 %s33, 7
        %s470 = sand.u32 %s33, 127
        %s471 = sadd.s32 %s469, %s32
        %s472 = smul.u32 %s471, 128
        %s473 = sshra.s32 %s33, 7
        %s474 = sand.u32 %s33, 127
        %s475 = sadd.s32 %s472, %s474
        %s476 = sld [smem:[#allocation3 + %s475]]
      $region24: #{faster_rcnn_forward.7} parent=15 // pred_fallthru
        _
      // Predicated region
      $region25: #{faster_rcnn_forward.7} parent=15 // pred_check
        %p477 = pneg %p141
      $region26: #{faster_rcnn_forward.7} parent=15 // pred_check_branch
        %479 = sbr.rel (%p477) target = $region28
      $region27: #{faster_rcnn_forward.7} parent=15 // pred_region
        %p480 = scmp.lt.s32.totalorder %s32, 2
        %s481 = scalar_select %p480, %s32, 2
        %s482 = smul.addr %s481, 4
        %s483 = smul.addr %s482, 4
        %s484 = scalar_lea.vmem %s3, %s483
      $region28: #{faster_rcnn_forward.7} parent=15 // pred_fallthru
        _
      // Predicated region
      $region29: #{faster_rcnn_forward.7} parent=15 // pred_check
        %p485 = pneg %p167
      $region30: #{faster_rcnn_forward.7} parent=15 // pred_check_branch
        %487 = sbr.rel (%p485) target = $region32
      $region31: #{faster_rcnn_forward.7} parent=15 // pred_region
        %p488 = scmp.lt.s32.totalorder %s32, 2
        %s489 = scalar_select %p488, %s32, 2
        %s490 = scalar_lea.vmem %s4, %s489
      $region32: #{faster_rcnn_forward.7} parent=15 // pred_fallthru
        _
      // Predicated region
      $region33: #{faster_rcnn_forward.7} parent=15 // pred_check
        %p491 = pneg %p193
      $region34: #{faster_rcnn_forward.7} parent=15 // pred_check_branch
        %493 = sbr.rel (%p491) target = $region36
      $region35: #{faster_rcnn_forward.7} parent=15 // pred_region
        %p494 = scmp.lt.s32.totalorder %s32, 2
        %s495 = scalar_select %p494, %s32, 2
        %s496 = smul.addr %s495, 4
        %s497 = smul.addr %s496, 4
        %s498 = scalar_lea.vmem %s5, %s497
      $region36: #{faster_rcnn_forward.7} parent=15 // pred_fallthru
        _
      // Predicated region
      $region37: #{faster_rcnn_forward.7} parent=15 // pred_check
        %p499 = pneg %p219
      $region38: #{faster_rcnn_forward.7} parent=15 // pred_check_branch
        %501 = sbr.rel (%p499) target = $region40
      $region39: #{faster_rcnn_forward.7} parent=15 // pred_region
        %p502 = scmp.lt.s32.totalorder %s32, 2
        %s503 = scalar_select %p502, %s32, 2
        %s504 = scalar_lea.vmem %s6, %s503
      $region40: #{faster_rcnn_forward.7} parent=15 // pred_fallthru
        _
      // Predicated region
      $region41: #{faster_rcnn_forward.7} parent=15 // pred_check
        %p505 = pneg %p245
      $region42: #{faster_rcnn_forward.7} parent=15 // pred_check_branch
        %507 = sbr.rel (%p505) target = $region44
      $region43: #{faster_rcnn_forward.7} parent=15 // pred_region
        %p508 = scmp.lt.s32.totalorder %s32, 2
        %s509 = scalar_select %p508, %s32, 2
        %s510 = smul.addr %s509, 8
        %s511 = smul.addr %s510, 4
        %s512 = scalar_lea.vmem %s7, %s511
      $region44: #{faster_rcnn_forward.7} parent=15 // pred_fallthru
        _
      // Predicated region
      $region45: #{faster_rcnn_forward.7} parent=15 // pred_check
        %p513 = pneg %p271
      $region46: #{faster_rcnn_forward.7} parent=15 // pred_check_branch
        %515 = sbr.rel (%p513) target = $region48
      $region47: #{faster_rcnn_forward.7} parent=15 // pred_region
        %p516 = scmp.lt.s32.totalorder %s32, 2
        %s517 = scalar_select %p516, %s32, 2
        %s518 = scalar_lea.vmem %s8, %s517
      $region48: #{faster_rcnn_forward.7} parent=15 // pred_fallthru
        _
      // Predicated region
      $region49: #{faster_rcnn_forward.7} parent=15 // pred_check
        %p519 = pneg %p297
      $region50: #{faster_rcnn_forward.7} parent=15 // pred_check_branch
        %521 = sbr.rel (%p519) target = $region52
      $region51: #{faster_rcnn_forward.7} parent=15 // pred_region
        %p522 = scmp.lt.s32.totalorder %s32, 2
        %s523 = scalar_select %p522, %s32, 2
        %s524 = smul.addr %s523, 4
        %s525 = smul.addr %s524, 4
        %s526 = scalar_lea.vmem %s9, %s525
      $region52: #{faster_rcnn_forward.7} parent=15 // pred_fallthru
        _
      // Predicated region
      $region53: #{faster_rcnn_forward.7} parent=15 // pred_check
        %p527 = pneg %p323
      $region54: #{faster_rcnn_forward.7} parent=15 // pred_check_branch
        %529 = sbr.rel (%p527) target = $region56
      $region55: #{faster_rcnn_forward.7} parent=15 // pred_region
        %p530 = scmp.lt.s32.totalorder %s32, 2
        %s531 = scalar_select %p530, %s32, 2
        %s532 = scalar_lea.vmem %s10, %s531
      $region56: #{faster_rcnn_forward.7} parent=15 // pred_fallthru
        _
      // Predicated region
      $region57: #{faster_rcnn_forward.7} parent=15 // pred_check
        %p533 = pneg %p349
      $region58: #{faster_rcnn_forward.7} parent=15 // pred_check_branch
        %535 = sbr.rel (%p533) target = $region60
      $region59: #{faster_rcnn_forward.7} parent=15 // pred_region
        %p536 = scmp.lt.s32.totalorder %s32, 2
        %s537 = scalar_select %p536, %s32, 2
        %s538 = smul.addr %s537, 4
        %s539 = smul.addr %s538, 4
        %s540 = scalar_lea.vmem %s11, %s539
      $region60: #{faster_rcnn_forward.7} parent=15 // pred_fallthru
        _
      // Predicated region
      $region61: #{faster_rcnn_forward.7} parent=15 // pred_check
        %p541 = pneg %p375
      $region62: #{faster_rcnn_forward.7} parent=15 // pred_check_branch
        %543 = sbr.rel (%p541) target = $region64
      $region63: #{faster_rcnn_forward.7} parent=15 // pred_region
        %p544 = scmp.lt.s32.totalorder %s32, 2
        %s545 = scalar_select %p544, %s32, 2
        %s546 = scalar_lea.vmem %s12, %s545
      $region64: #{faster_rcnn_forward.7} parent=15 // pred_fallthru
        _
    $region16: #{faster_rcnn_forward.7} parent=5 // pred_fallthru
      _
    %p547 = scmp.le.s32.totalorder 1, %s25
    %p548 = scmp.lt.s32.totalorder %s25, 7
    %p549 = pnand %p547, %p548
    %p550 = pneg %p549
    // Predicated region
    $region65: #{faster_rcnn_forward.7} parent=5 // pred_check
      _
    $region66: #{faster_rcnn_forward.7} parent=5 // pred_check_branch
      %552 = sbr.rel (%p549) target = $region68
    $region67: #{faster_rcnn_forward.7} parent=5 // pred_region
      %s553 = ssub.s32 %s25, 1
      %s554 = sshra.s32 %s35, 7
      %s555 = sand.u32 %s35, 127
      %s556 = sadd.s32 %s554, %s34
      %s557 = smul.u32 %s556, 128
      %s558 = sshra.s32 %s35, 7
      %s559 = sand.u32 %s35, 127
      %s560 = sadd.s32 %s557, %s559
      %s561 = sld [smem:[#allocation3 + %s560]]
      %p562 = scmp.lt.s32.totalorder %s561, 2
      %s563 = scalar_select %p562, %s561, 2
      %s564 = smul.addr %s563, 8
      %s565 = smul.addr %s564, 8
      %s566 = scalar_lea.vmem %s1, %s565
      %p567 = pneg %p79
      %p568 = pneg %p76
      %s569 = sshra.s32 %s35, 7
      %s570 = sand.u32 %s35, 127
      %s571 = sadd.s32 %s569, %s34
      %s572 = smul.u32 %s571, 128
      %s573 = sshra.s32 %s35, 7
      %s574 = sand.u32 %s35, 127
      %s575 = sadd.s32 %s572, %s574
      %s576 = sld [smem:[#allocation3 + %s575]]
      %p577 = scmp.lt.s32.totalorder %s576, 2
      %s578 = scalar_select %p577, %s576, 2
      %s579 = smul.addr %s578, 8
      %s580 = scalar_lea.vmem %s2, %s579
      %p581 = pneg %p121
      %p582 = pneg %p118
      %p583 = scmp.lt.s32.totalorder %s34, 2
      %s584 = scalar_select %p583, %s34, 2
      %s585 = smul.addr %s584, 4
      %s586 = smul.addr %s585, 4
      %s587 = scalar_lea.vmem %s3, %s586
      %p588 = pneg %p147
      %p589 = pneg %p144
      %p590 = scmp.lt.s32.totalorder %s34, 2
      %s591 = scalar_select %p590, %s34, 2
      %s592 = scalar_lea.vmem %s4, %s591
      %p593 = pneg %p173
      %p594 = pneg %p170
      %p595 = scmp.lt.s32.totalorder %s34, 2
      %s596 = scalar_select %p595, %s34, 2
      %s597 = smul.addr %s596, 4
      %s598 = smul.addr %s597, 4
      %s599 = scalar_lea.vmem %s5, %s598
      %p600 = pneg %p199
      %p601 = pneg %p196
      %p602 = scmp.lt.s32.totalorder %s34, 2
      %s603 = scalar_select %p602, %s34, 2
      %s604 = scalar_lea.vmem %s6, %s603
      %p605 = pneg %p225
      %p606 = pneg %p222
      %p607 = scmp.lt.s32.totalorder %s34, 2
      %s608 = scalar_select %p607, %s34, 2
      %s609 = smul.addr %s608, 8
      %s610 = smul.addr %s609, 4
      %s611 = scalar_lea.vmem %s7, %s610
      %p612 = pneg %p251
      %p613 = pneg %p248
      %p614 = scmp.lt.s32.totalorder %s34, 2
      %s615 = scalar_select %p614, %s34, 2
      %s616 = scalar_lea.vmem %s8, %s615
      %p617 = pneg %p277
      %p618 = pneg %p274
      %p619 = scmp.lt.s32.totalorder %s34, 2
      %s620 = scalar_select %p619, %s34, 2
      %s621 = smul.addr %s620, 4
      %s622 = smul.addr %s621, 4
      %s623 = scalar_lea.vmem %s9, %s622
      %p624 = pneg %p303
      %p625 = pneg %p300
      %p626 = scmp.lt.s32.totalorder %s34, 2
      %s627 = scalar_select %p626, %s34, 2
      %s628 = scalar_lea.vmem %s10, %s627
      %p629 = pneg %p329
      %p630 = pneg %p326
      %p631 = scmp.lt.s32.totalorder %s34, 2
      %s632 = scalar_select %p631, %s34, 2
      %s633 = smul.addr %s632, 4
      %s634 = smul.addr %s633, 4
      %s635 = scalar_lea.vmem %s11, %s634
      %p636 = pneg %p355
      %p637 = pneg %p352
      %p638 = scmp.lt.s32.totalorder %s34, 2
      %s639 = scalar_select %p638, %s34, 2
      %s640 = scalar_lea.vmem %s12, %s639
      %p641 = pneg %p381
      %p642 = pneg %p378
      %p643 = pneg %p411
      %p644 = pneg %p408
      %s645 = smul.u32 %s34, 2
      %s646 = sadd.s32 %s645, %s35
      %p647 = scmp.lt.s32.totalorder %s646, 5
      %s648 = scalar_select %p647, %s646, 5
      %s649 = scalar_lea.vmem %s13, %s648
      %s650 = sshra.s32 %s35, 7
      %s651 = sand.u32 %s35, 127
      %s652 = sadd.s32 %s650, %s34
      %s653 = smul.u32 %s652, 128
      %s654 = sshra.s32 %s35, 7
      %s655 = sand.u32 %s35, 127
      %s656 = sadd.s32 %s653, %s655
      %s657 = sld [smem:[#allocation3 + %s656]]
      %p658 = scmp.lt.s32.totalorder %s657, 2
      %s659 = scalar_select %p658, %s657, 2
      %s660 = smul.addr %s659, 8
      %s661 = smul.addr %s660, 8
      %s662 = scalar_lea.vmem %s1, %s661
      %s663 = sshra.s32 %s35, 7
      %s664 = sand.u32 %s35, 127
      %s665 = sadd.s32 %s663, %s34
      %s666 = smul.u32 %s665, 128
      %s667 = sshra.s32 %s35, 7
      %s668 = sand.u32 %s35, 127
      %s669 = sadd.s32 %s666, %s668
      %s670 = sld [smem:[#allocation3 + %s669]]
      %s671 = sshra.s32 %s35, 7
      %s672 = sand.u32 %s35, 127
      %s673 = sadd.s32 %s671, %s34
      %s674 = smul.u32 %s673, 128
      %s675 = sshra.s32 %s35, 7
      %s676 = sand.u32 %s35, 127
      %s677 = sadd.s32 %s674, %s676
      %s678 = sld [smem:[#allocation3 + %s677]]
      %p679 = scmp.lt.s32.totalorder %s678, 2
      %s680 = scalar_select %p679, %s678, 2
      %s681 = smul.addr %s680, 8
      %s682 = scalar_lea.vmem %s2, %s681
      %s683 = sshra.s32 %s35, 7
      %s684 = sand.u32 %s35, 127
      %s685 = sadd.s32 %s683, %s34
      %s686 = smul.u32 %s685, 128
      %s687 = sshra.s32 %s35, 7
      %s688 = sand.u32 %s35, 127
      %s689 = sadd.s32 %s686, %s688
      %s690 = sld [smem:[#allocation3 + %s689]]
      %p691 = scmp.lt.s32.totalorder %s34, 2
      %s692 = scalar_select %p691, %s34, 2
      %s693 = smul.addr %s692, 4
      %s694 = smul.addr %s693, 4
      %s695 = scalar_lea.vmem %s3, %s694
      %p696 = scmp.lt.s32.totalorder %s34, 2
      %s697 = scalar_select %p696, %s34, 2
      %s698 = scalar_lea.vmem %s4, %s697
      %p699 = scmp.lt.s32.totalorder %s34, 2
      %s700 = scalar_select %p699, %s34, 2
      %s701 = smul.addr %s700, 4
      %s702 = smul.addr %s701, 4
      %s703 = scalar_lea.vmem %s5, %s702
      %p704 = scmp.lt.s32.totalorder %s34, 2
      %s705 = scalar_select %p704, %s34, 2
      %s706 = scalar_lea.vmem %s6, %s705
      %p707 = scmp.lt.s32.totalorder %s34, 2
      %s708 = scalar_select %p707, %s34, 2
      %s709 = smul.addr %s708, 8
      %s710 = smul.addr %s709, 4
      %s711 = scalar_lea.vmem %s7, %s710
      %p712 = scmp.lt.s32.totalorder %s34, 2
      %s713 = scalar_select %p712, %s34, 2
      %s714 = scalar_lea.vmem %s8, %s713
      %p715 = scmp.lt.s32.totalorder %s34, 2
      %s716 = scalar_select %p715, %s34, 2
      %s717 = smul.addr %s716, 4
      %s718 = smul.addr %s717, 4
      %s719 = scalar_lea.vmem %s9, %s718
      %p720 = scmp.lt.s32.totalorder %s34, 2
      %s721 = scalar_select %p720, %s34, 2
      %s722 = scalar_lea.vmem %s10, %s721
      %p723 = scmp.lt.s32.totalorder %s34, 2
      %s724 = scalar_select %p723, %s34, 2
      %s725 = smul.addr %s724, 4
      %s726 = smul.addr %s725, 4
      %s727 = scalar_lea.vmem %s11, %s726
      %p728 = scmp.lt.s32.totalorder %s34, 2
      %s729 = scalar_select %p728, %s34, 2
      %s730 = scalar_lea.vmem %s12, %s729
      %s731 = smul.u32 %s34, 2
      %s732 = sadd.s32 %s731, %s35
      %p733 = scmp.lt.s32.totalorder %s732, 5
      %s734 = scalar_select %p733, %s732, 5
      %s735 = scalar_lea.vmem %s13, %s734
      %s736 = smul.u32 %s34, 2
      %s737 = sadd.s32 %s736, %s35
      %p739 = scmp.eq.s32.totalorder %s35, 0
      %s740 = scalar_select %p739, 1, 0
      %s741 = scvt.s32.f32 %s740
      %v742 = vld [vmem:[%s662] sm:$0xff]
      %v743 = vld [vmem:[%s662 + $0x8] sm:$0xff]
      %v744 = vld [vmem:[%s662 + $0x10] sm:$0xff]
      %v745 = vld [vmem:[%s662 + $0x18] sm:$0xff]
      %v746 = vld [vmem:[%s662 + $0x20] sm:$0xff]
      %v747 = vld [vmem:[%s662 + $0x28] sm:$0xff]
      %v748 = vld [vmem:[%s662 + $0x30] sm:$0xff]
      %v749 = vld [vmem:[%s662 + $0x38] sm:$0xff]
      %v750 = vpack.c.bf16 %v743, %v742
      %v751 = vpack.c.bf16 %v745, %v744
      %v752 = vpack.c.bf16 %v747, %v746
      %v753 = vpack.c.bf16 %v749, %v748
      %v754 = vld [vmem:[%s695] sm:$0xf]
      %v755 = vld [vmem:[%s695 + $0x4] sm:$0xf]
      %v756 = vld [vmem:[%s695 + $0x8] sm:$0xf]
      %v757 = vld [vmem:[%s695 + $0xc] sm:$0xf]
      %v758 = vld [vmem:[%s698] sm:$0x1]
      %v760 = vlaneseq
      %v761 = vshrl.u32 %v760, 7
      %v762 = vsub.s32 0, %v761
      %v763 = vrot.slane %v758, %v762
      %v769 = vunpack.c.l.b16 %v754
      %v770 = vunpack.c.l.b16 %v755
      %v771 = vunpack.c.l.b16 %v756
      %v772 = vunpack.c.l.b16 %v757
      %v773 = vpack.c.b16 %v770, %v769
      %v774 = vpack.c.b16 %v772, %v771
      %vm777 = vcmask 261120
      %v779 = vsel %vm777, %v750, 0
      %v782 = vsel %vm777, %v751, 0
      %v785 = vsel %vm777, %v752, 0
      %v788 = vsel %vm777, %v753, 0
      %790 = vmatprep.subr.bf16.mxu0 0
      %791 = vmatpush1.bf16.msra.mxu0 %v773
      %792 = vmatprep.subr.bf16.mxu0 0
      %793 = vmatpush1.bf16.msra.mxu0 %v774
      %794 = vmatprep.subr.bf16.mxu0 0
      %795 = vmatpush1.bf16.msra.mxu0 0
      %796 = vmatprep.subr.bf16.mxu0 0
      %797 = vmatpush1.bf16.msra.mxu0 0
      %798 = vmatprep.subr.bf16.mxu0 0
      %799 = vmatpush1.bf16.msra.mxu0 0
      %800 = vmatprep.subr.bf16.mxu0 0
      %801 = vmatpush1.bf16.msra.mxu0 0
      %802 = vmatprep.subr.bf16.mxu0 0
      %803 = vmatpush1.bf16.msra.mxu0 0
      %804 = vmatprep.subr.bf16.mxu0 0
      %805 = vmatpush1.bf16.msra.mxu0 0
      %806 = vmatprep.subr.bf16.mxu0 0
      %807 = vmatpush1.bf16.msra.mxu0 0
      %808 = vmatprep.subr.bf16.mxu0 0
      %809 = vmatpush1.bf16.msra.mxu0 0
      %810 = vmatprep.subr.bf16.mxu0 0
      %811 = vmatpush1.bf16.msra.mxu0 0
      %812 = vmatprep.subr.bf16.mxu0 0
      %813 = vmatpush1.bf16.msra.mxu0 0
      %814 = vmatprep.subr.bf16.mxu0 0
      %815 = vmatpush1.bf16.msra.mxu0 0
      %816 = vmatprep.subr.bf16.mxu0 0
      %817 = vmatpush1.bf16.msra.mxu0 0
      %818 = vmatprep.subr.bf16.mxu0 0
      %819 = vmatpush1.bf16.msra.mxu0 0
      %820 = vmatprep.subr.bf16.mxu0 0
      %821 = vmatpush1.bf16.msra.mxu0 0
      %822 = vmatprep.mubr.bf16.mxu0 0
      %823 = vmatmul.mubr.bf16.gmra.mrb[0].mxu0 %v779
      %v824 = vpop.f32.mrb[0].mxu0
      %v825 = vadd.f32 %v763, %v824
      %v826 = vpop.f32.mrb[0].mxu0
      %v827 = vpop.f32.mrb[0].mxu0
      %v828 = vadd.f32 %v763, %v827
      %v829 = vpop.f32.mrb[0].mxu0
      %830 = vmatprep.mubr.bf16.mxu0 0
      %831 = vmatmul.mubr.bf16.gmra.mrb[0].mxu0 %v782
      %v832 = vpop.f32.mrb[0].mxu0
      %v833 = vadd.f32 %v763, %v832
      %v834 = vpop.f32.mrb[0].mxu0
      %v835 = vpop.f32.mrb[0].mxu0
      %v836 = vadd.f32 %v763, %v835
      %v837 = vpop.f32.mrb[0].mxu0
      %838 = vmatprep.mubr.bf16.mxu0 0
      %839 = vmatmul.mubr.bf16.gmra.mrb[0].mxu0 %v785
      %v840 = vpop.f32.mrb[0].mxu0
      %v841 = vadd.f32 %v763, %v840
      %v842 = vpop.f32.mrb[0].mxu0
      %v843 = vpop.f32.mrb[0].mxu0
      %v844 = vadd.f32 %v763, %v843
      %v845 = vpop.f32.mrb[0].mxu0
      %846 = vmatprep.mubr.bf16.mxu0 0
      %847 = vmatmul.mubr.bf16.gmra.mrb[0].mxu0 %v788
      %v848 = vpop.f32.mrb[0].mxu0
      %v849 = vadd.f32 %v763, %v848
      %v850 = vpop.f32.mrb[0].mxu0
      %v851 = vpop.f32.mrb[0].mxu0
      %v852 = vadd.f32 %v763, %v851
      %v853 = vpop.f32.mrb[0].mxu0
      %854 = vdwg.mxu0
      %v855 = vmax.f32 %v825, 0.0
      %v856 = vmax.f32 %v828, 0.0
      %v857 = vmax.f32 %v833, 0.0
      %v858 = vmax.f32 %v836, 0.0
      %v859 = vmax.f32 %v841, 0.0
      %v860 = vmax.f32 %v844, 0.0
      %v861 = vmax.f32 %v849, 0.0
      %v862 = vmax.f32 %v852, 0.0
      %v863 = vpack.c.bf16 %v856, %v855
      %v864 = vpack.c.bf16 %v858, %v857
      %v865 = vpack.c.bf16 %v860, %v859
      %v866 = vpack.c.bf16 %v862, %v861
      %v867 = vld [vmem:[%s703] sm:$0xf]
      %v868 = vld [vmem:[%s703 + $0x4] sm:$0xf]
      %v869 = vld [vmem:[%s703 + $0x8] sm:$0xf]
      %v870 = vld [vmem:[%s703 + $0xc] sm:$0xf]
      %v871 = vld [vmem:[%s706] sm:$0x1]
      %v873 = vlaneseq
      %v874 = vshrl.u32 %v873, 7
      %v875 = vsub.s32 0, %v874
      %v876 = vrot.slane %v871, %v875
      %v882 = vunpack.c.l.b16 %v867
      %v883 = vunpack.c.l.b16 %v868
      %v884 = vunpack.c.l.b16 %v869
      %v885 = vunpack.c.l.b16 %v870
      %v886 = vpack.c.b16 %v883, %v882
      %v887 = vpack.c.b16 %v885, %v884
      %v891 = vsel %vm777, %v863, 0
      %v894 = vsel %vm777, %v864, 0
      %v897 = vsel %vm777, %v865, 0
      %v900 = vsel %vm777, %v866, 0
      %902 = vmatprep.subr.bf16.mxu0 0
      %903 = vmatpush1.bf16.msra.mxu0 %v886
      %904 = vmatprep.subr.bf16.mxu0 0
      %905 = vmatpush1.bf16.msra.mxu0 %v887
      %906 = vmatprep.subr.bf16.mxu0 0
      %907 = vmatpush1.bf16.msra.mxu0 0
      %908 = vmatprep.subr.bf16.mxu0 0
      %909 = vmatpush1.bf16.msra.mxu0 0
      %910 = vmatprep.subr.bf16.mxu0 0
      %911 = vmatpush1.bf16.msra.mxu0 0
      %912 = vmatprep.subr.bf16.mxu0 0
      %913 = vmatpush1.bf16.msra.mxu0 0
      %914 = vmatprep.subr.bf16.mxu0 0
      %915 = vmatpush1.bf16.msra.mxu0 0
      %916 = vmatprep.subr.bf16.mxu0 0
      %917 = vmatpush1.bf16.msra.mxu0 0
      %918 = vmatprep.subr.bf16.mxu0 0
      %919 = vmatpush1.bf16.msra.mxu0 0
      %920 = vmatprep.subr.bf16.mxu0 0
      %921 = vmatpush1.bf16.msra.mxu0 0
      %922 = vmatprep.subr.bf16.mxu0 0
      %923 = vmatpush1.bf16.msra.mxu0 0
      %924 = vmatprep.subr.bf16.mxu0 0
      %925 = vmatpush1.bf16.msra.mxu0 0
      %926 = vmatprep.subr.bf16.mxu0 0
      %927 = vmatpush1.bf16.msra.mxu0 0
      %928 = vmatprep.subr.bf16.mxu0 0
      %929 = vmatpush1.bf16.msra.mxu0 0
      %930 = vmatprep.subr.bf16.mxu0 0
      %931 = vmatpush1.bf16.msra.mxu0 0
      %932 = vmatprep.subr.bf16.mxu0 0
      %933 = vmatpush1.bf16.msra.mxu0 0
      %934 = vmatprep.mubr.bf16.mxu0 0
      %935 = vmatmul.mubr.bf16.gmra.mrb[0].mxu0 %v891
      %v936 = vpop.f32.mrb[0].mxu0
      %v937 = vadd.f32 %v876, %v936
      %v938 = vpop.f32.mrb[0].mxu0
      %v939 = vpop.f32.mrb[0].mxu0
      %v940 = vadd.f32 %v876, %v939
      %v941 = vpop.f32.mrb[0].mxu0
      %942 = vmatprep.mubr.bf16.mxu0 0
      %943 = vmatmul.mubr.bf16.gmra.mrb[0].mxu0 %v894
      %v944 = vpop.f32.mrb[0].mxu0
      %v945 = vadd.f32 %v876, %v944
      %v946 = vpop.f32.mrb[0].mxu0
      %v947 = vpop.f32.mrb[0].mxu0
      %v948 = vadd.f32 %v876, %v947
      %v949 = vpop.f32.mrb[0].mxu0
      %950 = vmatprep.mubr.bf16.mxu0 0
      %951 = vmatmul.mubr.bf16.gmra.mrb[0].mxu0 %v897
      %v952 = vpop.f32.mrb[0].mxu0
      %v953 = vadd.f32 %v876, %v952
      %v954 = vpop.f32.mrb[0].mxu0
      %v955 = vpop.f32.mrb[0].mxu0
      %v956 = vadd.f32 %v876, %v955
      %v957 = vpop.f32.mrb[0].mxu0
      %958 = vmatprep.mubr.bf16.mxu0 0
      %959 = vmatmul.mubr.bf16.gmra.mrb[0].mxu0 %v900
      %v960 = vpop.f32.mrb[0].mxu0
      %v961 = vadd.f32 %v876, %v960
      %v962 = vpop.f32.mrb[0].mxu0
      %v963 = vpop.f32.mrb[0].mxu0
      %v964 = vadd.f32 %v876, %v963
      %v965 = vpop.f32.mrb[0].mxu0
      %966 = vdwg.mxu0
      %vm967 = vcmask 15360
      %v968 = vsel %vm967, %v937, -inf
      %969 = vmax.xlane.f32.xlu0 %v968
      %v970 = vpop.xlane.xlu0 %969
      %v971 = vsel %vm967, %v940, -inf
      %972 = vmax.xlane.f32.xlu0 %v971
      %v973 = vpop.xlane.xlu0 %972
      %v974 = vsel %vm967, %v945, -inf
      %975 = vmax.xlane.f32.xlu0 %v974
      %v976 = vpop.xlane.xlu0 %975
      %v977 = vsel %vm967, %v948, -inf
      %978 = vmax.xlane.f32.xlu0 %v977
      %v979 = vpop.xlane.xlu0 %978
      %v980 = vsel %vm967, %v953, -inf
      %981 = vmax.xlane.f32.xlu0 %v980
      %v982 = vpop.xlane.xlu0 %981
      %v983 = vsel %vm967, %v956, -inf
      %984 = vmax.xlane.f32.xlu0 %v983
      %v985 = vpop.xlane.xlu0 %984
      %v986 = vsel %vm967, %v961, -inf
      %987 = vmax.xlane.f32.xlu0 %v986
      %v988 = vpop.xlane.xlu0 %987
      %v989 = vsel %vm967, %v964, -inf
      %990 = vmax.xlane.f32.xlu0 %v989
      %v991 = vpop.xlane.xlu0 %990
      %v992 = vsub.f32 %v937, %v970
      %v993 = vsub.f32 %v940, %v973
      %v994 = vsub.f32 %v945, %v976
      %v995 = vsub.f32 %v948, %v979
      %v996 = vsub.f32 %v953, %v982
      %v997 = vsub.f32 %v956, %v985
      %v998 = vsub.f32 %v961, %v988
      %v999 = vsub.f32 %v964, %v991
      %v1000 = vmul.f32 %v992, 1.442695
      %v1001 = vpow.pop %v1000
      %v1002 = vmul.f32 %v993, 1.442695
      %v1003 = vpow.pop %v1002
      %v1004 = vmul.f32 %v994, 1.442695
      %v1005 = vpow.pop %v1004
      %v1006 = vmul.f32 %v995, 1.442695
      %v1007 = vpow.pop %v1006
      %v1008 = vmul.f32 %v996, 1.442695
      %v1009 = vpow.pop %v1008
      %v1010 = vmul.f32 %v997, 1.442695
      %v1011 = vpow.pop %v1010
      %v1012 = vmul.f32 %v998, 1.442695
      %v1013 = vpow.pop %v1012
      %v1014 = vmul.f32 %v999, 1.442695
      %v1015 = vpow.pop %v1014
      %v1016 = vsel %vm967, %v1001, 0.0
      %1017 = vadd.xlane.f32.xlu0 %v1016
      %v1018 = vpop.xlane.xlu0 %1017
      %v1019 = vsel %vm967, %v1003, 0.0
      %1020 = vadd.xlane.f32.xlu0 %v1019
      %v1021 = vpop.xlane.xlu0 %1020
      %v1022 = vsel %vm967, %v1005, 0.0
      %1023 = vadd.xlane.f32.xlu0 %v1022
      %v1024 = vpop.xlane.xlu0 %1023
      %v1025 = vsel %vm967, %v1007, 0.0
      %1026 = vadd.xlane.f32.xlu0 %v1025
      %v1027 = vpop.xlane.xlu0 %1026
      %v1028 = vsel %vm967, %v1009, 0.0
      %1029 = vadd.xlane.f32.xlu0 %v1028
      %v1030 = vpop.xlane.xlu0 %1029
      %v1031 = vsel %vm967, %v1011, 0.0
      %1032 = vadd.xlane.f32.xlu0 %v1031
      %v1033 = vpop.xlane.xlu0 %1032
      %v1034 = vsel %vm967, %v1013, 0.0
      %1035 = vadd.xlane.f32.xlu0 %v1034
      %v1036 = vpop.xlane.xlu0 %1035
      %v1037 = vsel %vm967, %v1015, 0.0
      %1038 = vadd.xlane.f32.xlu0 %v1037
      %v1039 = vpop.xlane.xlu0 %1038
      %v1040 = vlog2.pop %v1018
      %v1041 = vmul.f32 %v1040, 0.6931472
      %v1042 = vlog2.pop %v1021
      %v1043 = vmul.f32 %v1042, 0.6931472
      %v1044 = vlog2.pop %v1024
      %v1045 = vmul.f32 %v1044, 0.6931472
      %v1046 = vlog2.pop %v1027
      %v1047 = vmul.f32 %v1046, 0.6931472
      %v1048 = vlog2.pop %v1030
      %v1049 = vmul.f32 %v1048, 0.6931472
      %v1050 = vlog2.pop %v1033
      %v1051 = vmul.f32 %v1050, 0.6931472
      %v1052 = vlog2.pop %v1036
      %v1053 = vmul.f32 %v1052, 0.6931472
      %v1054 = vlog2.pop %v1039
      %v1055 = vmul.f32 %v1054, 0.6931472
      %v1056 = vsub.f32 %v992, %v1041
      %v1057 = vsub.f32 %v993, %v1043
      %v1058 = vsub.f32 %v994, %v1045
      %v1059 = vsub.f32 %v995, %v1047
      %v1060 = vsub.f32 %v996, %v1049
      %v1061 = vsub.f32 %v997, %v1051
      %v1062 = vsub.f32 %v998, %v1053
      %v1063 = vsub.f32 %v999, %v1055
      %v1064 = vsel %vm967, %v1056, 0.0
      %v1065 = vsel %vm967, %v1057, 0.0
      %v1066 = vadd.f32 %v1064, %v1065
      %v1067 = vsel %vm967, %v1058, 0.0
      %v1068 = vadd.f32 %v1066, %v1067
      %v1069 = vsel %vm967, %v1059, 0.0
      %v1070 = vadd.f32 %v1068, %v1069
      %v1071 = vsel %vm967, %v1060, 0.0
      %v1072 = vadd.f32 %v1070, %v1071
      %v1073 = vsel %vm967, %v1061, 0.0
      %v1074 = vadd.f32 %v1072, %v1073
      %v1075 = vsel %vm967, %v1062, 0.0
      %v1076 = vadd.f32 %v1074, %v1075
      %v1077 = vsel %vm967, %v1063, 0.0
      %v1078 = vadd.f32 %v1076, %v1077
      %v1079 = vrot.slane %v1078, 4
      %v1080 = vadd.f32 %v1078, %v1079
      %v1081 = vrot.slane %v1080, 2
      %v1082 = vadd.f32 %v1080, %v1081
      %v1083 = vrot.slane %v1082, 1
      %v1084 = vadd.f32 %v1082, %v1083
      %v1085 = vstv %s741
      %v1086 = vmul.f32 %v1085, %v1084
      %s1087 = ssub.f32 1.0, %s741
      %v1088 = vstv %s1087
      %v1089 = vmul.f32 %v1088, %v1084
      %1091 = vrot.lane.b32.xlu0 %v1089, 1
      %v1092 = vpop.permute.xlu0 %1091
      %v1094 = vadd.f32 %v1086, %v1092
      %v1095 = vsub.f32 0.0, %v1094
      %v1096 = vrcp.pop 64.0
      %v1097 = vmul.f32 %v1095, %v1096
      %v1098 = vmul.f32 %v1056, 1.442695
      %v1099 = vpow.pop %v1098
      %v1100 = vmul.f32 %v1057, 1.442695
      %v1101 = vpow.pop %v1100
      %v1102 = vmul.f32 %v1058, 1.442695
      %v1103 = vpow.pop %v1102
      %v1104 = vmul.f32 %v1059, 1.442695
      %v1105 = vpow.pop %v1104
      %v1106 = vmul.f32 %v1060, 1.442695
      %v1107 = vpow.pop %v1106
      %v1108 = vmul.f32 %v1061, 1.442695
      %v1109 = vpow.pop %v1108
      %v1110 = vmul.f32 %v1062, 1.442695
      %v1111 = vpow.pop %v1110
      %v1112 = vmul.f32 %v1063, 1.442695
      %v1113 = vpow.pop %v1112
      %1122 = vrot.lane.b32.xlu0 %v1099, 127
      %v1123 = vpop.permute.xlu0 %1122
      %1124 = vrot.lane.b32.xlu0 %v1101, 127
      %v1125 = vpop.permute.xlu0 %1124
      %1126 = vrot.lane.b32.xlu0 %v1103, 127
      %v1127 = vpop.permute.xlu0 %1126
      %1128 = vrot.lane.b32.xlu0 %v1105, 127
      %v1129 = vpop.permute.xlu0 %1128
      %1130 = vrot.lane.b32.xlu0 %v1107, 127
      %v1131 = vpop.permute.xlu0 %1130
      %1132 = vrot.lane.b32.xlu0 %v1109, 127
      %v1133 = vpop.permute.xlu0 %1132
      %1134 = vrot.lane.b32.xlu0 %v1111, 127
      %v1135 = vpop.permute.xlu0 %1134
      %1136 = vrot.lane.b32.xlu0 %v1113, 127
      %v1137 = vpop.permute.xlu0 %1136
      %vm1146 = vcmask 7168
      %v1147 = vsel %vm1146, %v1123, 0.0
      %v1148 = vsel %vm1146, %v1125, 0.0
      %v1149 = vadd.f32 %v1147, %v1148
      %v1150 = vsel %vm1146, %v1127, 0.0
      %v1151 = vadd.f32 %v1149, %v1150
      %v1152 = vsel %vm1146, %v1129, 0.0
      %v1153 = vadd.f32 %v1151, %v1152
      %v1154 = vsel %vm1146, %v1131, 0.0
      %v1155 = vadd.f32 %v1153, %v1154
      %v1156 = vsel %vm1146, %v1133, 0.0
      %v1157 = vadd.f32 %v1155, %v1156
      %v1158 = vsel %vm1146, %v1135, 0.0
      %v1159 = vadd.f32 %v1157, %v1158
      %v1160 = vsel %vm1146, %v1137, 0.0
      %v1161 = vadd.f32 %v1159, %v1160
      %1162 = vadd.xlane.f32.xlu0 %v1161
      %v1163 = vpop.xlane.xlu0 %1162
      %v1164 = vrot.slane %v1163, 4
      %v1165 = vadd.f32 %v1163, %v1164
      %v1166 = vrot.slane %v1165, 2
      %v1167 = vadd.f32 %v1165, %v1166
      %v1168 = vrot.slane %v1167, 1
      %v1169 = vadd.f32 %v1167, %v1168
      %s1170 = vtos %v1169
      %v1171 = vrcp.pop 64.0
      %s1172 = vtos %v1171
      %s1173 = smul.f32 %s1170, %s1172
      %v1174 = vld [vmem:[%s682] sm:$0xff]
      %v1175 = vpack.c.bf16 %v1174, %v1174
      %v1176 = vld [vmem:[%s711] sm:$0xf]
      %v1177 = vld [vmem:[%s711 + $0x4] sm:$0xf]
      %v1178 = vld [vmem:[%s711 + $0x8] sm:$0xf]
      %v1179 = vld [vmem:[%s711 + $0xc] sm:$0xf]
      %v1180 = vld [vmem:[%s711 + $0x10] sm:$0xf]
      %v1181 = vld [vmem:[%s711 + $0x14] sm:$0xf]
      %v1182 = vld [vmem:[%s711 + $0x18] sm:$0xf]
      %v1183 = vld [vmem:[%s711 + $0x1c] sm:$0xf]
      %v1184 = vld [vmem:[%s714] sm:$0x1]
      %v1186 = vlaneseq
      %v1187 = vshrl.u32 %v1186, 7
      %v1188 = vsub.s32 0, %v1187
      %v1189 = vrot.slane %v1184, %v1188
      %v1199 = vunpack.c.l.b16 %v1176
      %v1200 = vunpack.c.l.b16 %v1177
      %v1201 = vunpack.c.l.b16 %v1178
      %v1202 = vunpack.c.l.b16 %v1179
      %v1203 = vunpack.c.l.b16 %v1180
      %v1204 = vunpack.c.l.b16 %v1181
      %v1205 = vunpack.c.l.b16 %v1182
      %v1206 = vunpack.c.l.b16 %v1183
      %v1207 = vpack.c.b16 %v1200, %v1199
      %v1208 = vpack.c.b16 %v1202, %v1201
      %v1209 = vpack.c.b16 %v1204, %v1203
      %v1210 = vpack.c.b16 %v1206, %v1205
      %vm1215 = vcmask 523264
      %v1217 = vsel %vm1215, %v1175, 0
      %1219 = vmatprep.subr.bf16.mxu0 0
      %1220 = vmatpush1.bf16.msra.mxu0 %v1207
      %1221 = vmatprep.subr.bf16.mxu0 0
      %1222 = vmatpush1.bf16.msra.mxu0 %v1208
      %1223 = vmatprep.subr.bf16.mxu0 0
      %1224 = vmatpush1.bf16.msra.mxu0 %v1209
      %1225 = vmatprep.subr.bf16.mxu0 0
      %1226 = vmatpush1.bf16.msra.mxu0 %v1210
      %1227 = vmatprep.subr.bf16.mxu0 0
      %1228 = vmatpush1.bf16.msra.mxu0 0
      %1229 = vmatprep.subr.bf16.mxu0 0
      %1230 = vmatpush1.bf16.msra.mxu0 0
      %1231 = vmatprep.subr.bf16.mxu0 0
      %1232 = vmatpush1.bf16.msra.mxu0 0
      %1233 = vmatprep.subr.bf16.mxu0 0
      %1234 = vmatpush1.bf16.msra.mxu0 0
      %1235 = vmatprep.subr.bf16.mxu0 0
      %1236 = vmatpush1.bf16.msra.mxu0 0
      %1237 = vmatprep.subr.bf16.mxu0 0
      %1238 = vmatpush1.bf16.msra.mxu0 0
      %1239 = vmatprep.subr.bf16.mxu0 0
      %1240 = vmatpush1.bf16.msra.mxu0 0
      %1241 = vmatprep.subr.bf16.mxu0 0
      %1242 = vmatpush1.bf16.msra.mxu0 0
      %1243 = vmatprep.subr.bf16.mxu0 0
      %1244 = vmatpush1.bf16.msra.mxu0 0
      %1245 = vmatprep.subr.bf16.mxu0 0
      %1246 = vmatpush1.bf16.msra.mxu0 0
      %1247 = vmatprep.subr.bf16.mxu0 0
      %1248 = vmatpush1.bf16.msra.mxu0 0
      %1249 = vmatprep.subr.bf16.mxu0 0
      %1250 = vmatpush1.bf16.msra.mxu0 0
      %1251 = vmatprep.mubr.bf16.mxu0 0
      %1252 = vmatmul.mubr.bf16.gmra.mrb[0].mxu0 %v1217
      %v1253 = vpop.f32.mrb[0].mxu0
      %v1254 = vadd.f32 %v1189, %v1253
      %v1255 = vpop.f32.mrb[0].mxu0
      %v1256 = vpop.f32.mrb[0].mxu0
      %v1257 = vpop.f32.mrb[0].mxu0
      %1258 = vdwg.mxu0
      %v1259 = vmax.f32 %v1254, 0.0
      %v1260 = vpack.c.bf16 %v1259, %v1259
      %v1261 = vld [vmem:[%s719] sm:$0xf]
      %v1262 = vld [vmem:[%s719 + $0x4] sm:$0xf]
      %v1263 = vld [vmem:[%s719 + $0x8] sm:$0xf]
      %v1264 = vld [vmem:[%s719 + $0xc] sm:$0xf]
      %v1265 = vld [vmem:[%s722] sm:$0x1]
      %v1267 = vlaneseq
      %v1268 = vshrl.u32 %v1267, 7
      %v1269 = vsub.s32 0, %v1268
      %v1270 = vrot.slane %v1265, %v1269
      %v1276 = vunpack.c.l.b16 %v1261
      %v1277 = vunpack.c.l.b16 %v1262
      %v1278 = vunpack.c.l.b16 %v1263
      %v1279 = vunpack.c.l.b16 %v1264
      %v1280 = vpack.c.b16 %v1277, %v1276
      %v1281 = vpack.c.b16 %v1279, %v1278
      %v1285 = vsel %vm777, %v1260, 0
      %1287 = vmatprep.subr.bf16.mxu0 0
      %1288 = vmatpush1.bf16.msra.mxu0 %v1280
      %1289 = vmatprep.subr.bf16.mxu0 0
      %1290 = vmatpush1.bf16.msra.mxu0 %v1281
      %1291 = vmatprep.subr.bf16.mxu0 0
      %1292 = vmatpush1.bf16.msra.mxu0 0
      %1293 = vmatprep.subr.bf16.mxu0 0
      %1294 = vmatpush1.bf16.msra.mxu0 0
      %1295 = vmatprep.subr.bf16.mxu0 0
      %1296 = vmatpush1.bf16.msra.mxu0 0
      %1297 = vmatprep.subr.bf16.mxu0 0
      %1298 = vmatpush1.bf16.msra.mxu0 0
      %1299 = vmatprep.subr.bf16.mxu0 0
      %1300 = vmatpush1.bf16.msra.mxu0 0
      %1301 = vmatprep.subr.bf16.mxu0 0
      %1302 = vmatpush1.bf16.msra.mxu0 0
      %1303 = vmatprep.subr.bf16.mxu0 0
      %1304 = vmatpush1.bf16.msra.mxu0 0
      %1305 = vmatprep.subr.bf16.mxu0 0
      %1306 = vmatpush1.bf16.msra.mxu0 0
      %1307 = vmatprep.subr.bf16.mxu0 0
      %1308 = vmatpush1.bf16.msra.mxu0 0
      %1309 = vmatprep.subr.bf16.mxu0 0
      %1310 = vmatpush1.bf16.msra.mxu0 0
      %1311 = vmatprep.subr.bf16.mxu0 0
      %1312 = vmatpush1.bf16.msra.mxu0 0
      %1313 = vmatprep.subr.bf16.mxu0 0
      %1314 = vmatpush1.bf16.msra.mxu0 0
      %1315 = vmatprep.subr.bf16.mxu0 0
      %1316 = vmatpush1.bf16.msra.mxu0 0
      %1317 = vmatprep.subr.bf16.mxu0 0
      %1318 = vmatpush1.bf16.msra.mxu0 0
      %1319 = vmatprep.mubr.bf16.mxu0 0
      %1320 = vmatmul.mubr.bf16.gmra.mrb[0].mxu0 %v1285
      %v1321 = vpop.f32.mrb[0].mxu0
      %v1322 = vadd.f32 %v1270, %v1321
      %v1323 = vpop.f32.mrb[0].mxu0
      %v1324 = vpop.f32.mrb[0].mxu0
      %v1325 = vpop.f32.mrb[0].mxu0
      %1326 = vdwg.mxu0
      %v1327 = vmax.f32 %v1322, 0.0
      %v1328 = vpack.c.bf16 %v1327, %v1327
      %v1329 = vld [vmem:[%s727] sm:$0xf]
      %v1330 = vld [vmem:[%s727 + $0x4] sm:$0xf]
      %v1331 = vld [vmem:[%s727 + $0x8] sm:$0xf]
      %v1332 = vld [vmem:[%s727 + $0xc] sm:$0xf]
      %v1333 = vld [vmem:[%s730] sm:$0x1]
      %v1335 = vlaneseq
      %v1336 = vshrl.u32 %v1335, 7
      %v1337 = vsub.s32 0, %v1336
      %v1338 = vrot.slane %v1333, %v1337
      %v1344 = vunpack.c.l.b16 %v1329
      %v1345 = vunpack.c.l.b16 %v1330
      %v1346 = vunpack.c.l.b16 %v1331
      %v1347 = vunpack.c.l.b16 %v1332
      %v1348 = vpack.c.b16 %v1345, %v1344
      %v1349 = vpack.c.b16 %v1347, %v1346
      %v1353 = vsel %vm777, %v1328, 0
      %1355 = vmatprep.subr.bf16.mxu0 0
      %1356 = vmatpush1.bf16.msra.mxu0 %v1348
      %1357 = vmatprep.subr.bf16.mxu0 0
      %1358 = vmatpush1.bf16.msra.mxu0 %v1349
      %1359 = vmatprep.subr.bf16.mxu0 0
      %1360 = vmatpush1.bf16.msra.mxu0 0
      %1361 = vmatprep.subr.bf16.mxu0 0
      %1362 = vmatpush1.bf16.msra.mxu0 0
      %1363 = vmatprep.subr.bf16.mxu0 0
      %1364 = vmatpush1.bf16.msra.mxu0 0
      %1365 = vmatprep.subr.bf16.mxu0 0
      %1366 = vmatpush1.bf16.msra.mxu0 0
      %1367 = vmatprep.subr.bf16.mxu0 0
      %1368 = vmatpush1.bf16.msra.mxu0 0
      %1369 = vmatprep.subr.bf16.mxu0 0
      %1370 = vmatpush1.bf16.msra.mxu0 0
      %1371 = vmatprep.subr.bf16.mxu0 0
      %1372 = vmatpush1.bf16.msra.mxu0 0
      %1373 = vmatprep.subr.bf16.mxu0 0
      %1374 = vmatpush1.bf16.msra.mxu0 0
      %1375 = vmatprep.subr.bf16.mxu0 0
      %1376 = vmatpush1.bf16.msra.mxu0 0
      %1377 = vmatprep.subr.bf16.mxu0 0
      %1378 = vmatpush1.bf16.msra.mxu0 0
      %1379 = vmatprep.subr.bf16.mxu0 0
      %1380 = vmatpush1.bf16.msra.mxu0 0
      %1381 = vmatprep.subr.bf16.mxu0 0
      %1382 = vmatpush1.bf16.msra.mxu0 0
      %1383 = vmatprep.subr.bf16.mxu0 0
      %1384 = vmatpush1.bf16.msra.mxu0 0
      %1385 = vmatprep.subr.bf16.mxu0 0
      %1386 = vmatpush1.bf16.msra.mxu0 0
      %1387 = vmatprep.mubr.bf16.mxu0 0
      %1388 = vmatmul.mubr.bf16.gmra.mrb[0].mxu0 %v1353
      %v1389 = vpop.f32.mrb[0].mxu0
      %v1390 = vadd.f32 %v1338, %v1389
      %v1391 = vpop.f32.mrb[0].mxu0
      %v1392 = vpop.f32.mrb[0].mxu0
      %v1393 = vpop.f32.mrb[0].mxu0
      %1394 = vdwg.mxu0
      %v1395 = vxor.u32 %v1390, 2147483648
      %v1396 = vmul.f32 %v1395, 1.442695
      %v1397 = vpow.pop %v1396
      %v1398 = vadd.f32 %v1397, 1.0
      %v1399 = vrcp.pop %v1398
      %v1400 = vmul.f32 1.0, %v1399
      %v1401 = vmax.f32 %v1400, 1e-07
      %v1402 = vmin.f32 %v1401, 0.9999999
      %v1403 = vlog2.pop %v1402
      %v1404 = vmul.f32 %v1403, 0.6931472
      %v1405 = vsub.f32 0.0, %v1404
      %v1406 = vmul.f32 %v1085, %v1405
      %v1407 = vsub.f32 1.0, %v1402
      %v1408 = vlog2.pop %v1407
      %v1409 = vmul.f32 %v1408, 0.6931472
      %v1410 = vsub.f32 0.0, %v1409
      %v1411 = vmul.f32 %v1088, %v1410
      %v1412 = vadd.f32 %v1406, %v1411
      %v1413 = vsel %vm1146, %v1412, 0.0
      %1414 = vadd.xlane.f32.xlu0 %v1413
      %v1415 = vpop.xlane.xlu0 %1414
      %v1416 = vrot.slane %v1415, 4
      %v1417 = vadd.f32 %v1415, %v1416
      %v1418 = vrot.slane %v1417, 2
      %v1419 = vadd.f32 %v1417, %v1418
      %v1420 = vrot.slane %v1419, 1
      %v1421 = vadd.f32 %v1419, %v1420
      %s1422 = vtos %v1421
      %v1423 = vrcp.pop 8.0
      %s1424 = vtos %v1423
      %s1425 = smul.f32 %s1422, %s1424
      %v1426 = vstv %s1173
      %v1427 = vsub.f32 %v1400, %v1426
      %v1428 = vmul.f32 %v1427, %v1427
      %v1429 = vsel %vm1146, %v1428, 0.0
      %1430 = vadd.xlane.f32.xlu0 %v1429
      %v1431 = vpop.xlane.xlu0 %1430
      %v1432 = vrot.slane %v1431, 4
      %v1433 = vadd.f32 %v1431, %v1432
      %v1434 = vrot.slane %v1433, 2
      %v1435 = vadd.f32 %v1433, %v1434
      %v1436 = vrot.slane %v1435, 1
      %v1437 = vadd.f32 %v1435, %v1436
      %s1438 = vtos %v1437
      %v1439 = vlaneseq
      %v1440 = vand.u32 %v1439, 127
      %vm1441 = vcmp.eq.s32.totalorder %v1440, 0
      %1443 = vset.pattern.permute.xlu0 1
      %1444 = vperm.xlu0 %1443, %v1097
      %v1445 = vpop.permute.xlu0 %1444
      %v1447 = vsel %vm1441, %v1445, 0.0
      %v1448 = vadd.f32 %v1447, 0.0
      %vm1449 = vcmp.eq.s32.totalorder %v1440, 1
      %v1450 = vstv %s1425
      %v1451 = vsel %vm1449, %v1450, 0.0
      %v1452 = vadd.f32 %v1448, %v1451
      %vm1453 = vcmp.eq.s32.totalorder %v1440, 2
      %v1454 = vstv %s1438
      %v1455 = vsel %vm1453, %v1454, 0.0
      %v1456 = vadd.f32 %v1452, %v1455
      %1457 = vst [vmem:[%s735] sm:$0x1] %v1456
      %s1458 = smul.u32 %s34, 2
      %s1459 = sadd.s32 %s1458, %s35
      %p1460 = scmp.lt.s32.totalorder %s1459, 5
      %s1461 = scalar_select %p1460, %s1459, 5
      %s1462 = scalar_lea.vmem %s13, %s1461
      // Predicated region
      $region69: #{faster_rcnn_forward.7} parent=67 // pred_check
        %p1463 = pneg %p408
      $region70: #{faster_rcnn_forward.7} parent=67 // pred_check_branch
        %1465 = sbr.rel (%p1463) target = $region72
      $region71: #{faster_rcnn_forward.7} parent=67 // pred_region
        %s1466 = smul.u32 %s34, 2
        %s1467 = sadd.s32 %s1466, %s35
      $region72: #{faster_rcnn_forward.7} parent=67 // pred_fallthru
        _
    $region68: #{faster_rcnn_forward.7} parent=5 // pred_fallthru
      _
    %p1468 = scmp.le.s32.totalorder 2, %s25
    // Predicated region
    $region73: #{faster_rcnn_forward.7} parent=5 // pred_check
      %p1469 = pneg %p1468
    $region74: #{faster_rcnn_forward.7} parent=5 // pred_check_branch
      %1471 = sbr.rel (%p1469) target = $region76
    $region75: #{faster_rcnn_forward.7} parent=5 // pred_region
      %s1472 = ssub.s32 %s25, 2
      // Predicated region
      $region77: #{faster_rcnn_forward.7} parent=75 // pred_check
        %p1473 = pneg %p414
      $region78: #{faster_rcnn_forward.7} parent=75 // pred_check_branch
        %1475 = sbr.rel (%p1473) target = $region80
      $region79: #{faster_rcnn_forward.7} parent=75 // pred_region
        %s1476 = smul.u32 %s36, 2
        %s1477 = sadd.s32 %s1476, %s37
        %p1478 = scmp.lt.s32.totalorder %s1477, 5
        %s1479 = scalar_select %p1478, %s1477, 5
        %s1480 = scalar_lea.vmem %s13, %s1479
      $region80: #{faster_rcnn_forward.7} parent=75 // pred_fallthru
        _
    $region76: #{faster_rcnn_forward.7} parent=5 // pred_fallthru
      _
  $region6: #{faster_rcnn_forward.7} parent=0 // loop_footer
    %s29 = sadd.s32 1, %s25
  $region7: #{faster_rcnn_forward.7} parent=0 // loop_footer_branch
    %24 = sbr.rel target = $region3
  $region8: #{faster_rcnn_forward.7} parent=0 // loop_exit
    _

</llo_original>
